<compile_context>
chip_gen: v5e
topology: v5e:2x2
jax: 0.10.0
libtpu: 0.0.40
codegen_flags: <defaults>
</compile_context>

<pallas_src>
import jax
import jax.numpy as jnp
from jax.experimental import pallas as pl
from jax.experimental.pallas import tpu as pltpu

input_size = 768
hl_size = 1024


def _nnue_kernel(x_ref, btm_ref, w1_ref, b1_ref, w2s_ref, w2d_ref, b2_ref,
                 out_ref):
    # Single bf16 MXU matmul producing both perspectives: (TB,768)@(768,2048).
    acc = jnp.dot(x_ref[...], w1_ref[...],
                  preferred_element_type=jnp.float32) + b1_ref[...]

    # SCReLU: clamp(., 0, 1) ** 2 — fused in-register, no HBM round-trip.
    h = jnp.clip(acc, 0.0, 1.0)
    h = h * h                                   # (TB, 2048) f32

    hw = h[:, :hl_size]                         # white-perspective half
    hb = h[:, hl_size:]                         # black-perspective half

    # Layer 2 via sum/diff algebra (w2s/w2d already carry the 0.5 factor):
    #   out_n = sum(hw*w2a + hb*w2b) + b2 = t + u + b2
    #   out_f = sum(hb*w2a + hw*w2b) + b2 = t - u + b2
    s = hw + hb
    d = hw - hb
    t = jnp.sum(s * w2s_ref[...], axis=-1, keepdims=True)   # (TB, 1)
    u = jnp.sum(d * w2d_ref[...], axis=-1, keepdims=True)   # (TB, 1)
    b2 = b2_ref[...]
    out_n = t + u + b2
    out_f = t - u + b2

    btm = btm_ref[...] > 0.5                    # (TB, 1) bool
    out_ref[...] = jnp.where(btm, -out_f, out_n).astype(out_ref.dtype)


def nnue_forward(x, black_to_move, w1, b1, w2, b2, *,
                 batch_tile=512, num_cores=1):
    """NNUE inference forward.

    x: (B, 768) 0/1 features; black_to_move: (B,1) or (B,) bool.
    w1: (1024, 768), b1: (1024,), w2: (1, 2048), b2: (1,).
    num_cores: set to 2 on v7x to balance grid steps across both TensorCores.
    """
    b = x.shape[0]
    x = x.astype(jnp.bfloat16)                  # 0/1 features are exact in bf16
    btm = black_to_move.reshape(b, 1).astype(jnp.float32)

    # Fold the perspective flip into the weights (one-time, tiny).
    # xf = x[:, perm] with perm the (involutive) flip permutation, so
    # xf @ W1^T = x @ W1^T[perm, :].
    perm = jnp.flip(jnp.arange(input_size).reshape(2, 6, 8, 8),
                    axis=(0, 2)).reshape(input_size)
    w1t = w1.T.astype(jnp.float32)                              # (768, 1024)
    w1cat = jnp.concatenate([w1t, w1t[perm, :]],
                            axis=1).astype(jnp.bfloat16)        # (768, 2048)
    b1cat = jnp.concatenate([b1, b1]).reshape(1, 2 * hl_size).astype(jnp.float32)

    w2a = w2[:, :hl_size].astype(jnp.float32)
    w2b = w2[:, hl_size:].astype(jnp.float32)
    w2s = (0.5 * (w2a + w2b)).reshape(1, hl_size)               # (1, 1024)
    w2d = (0.5 * (w2a - w2b)).reshape(1, hl_size)               # (1, 1024)
    b2r = b2.reshape(1, 1).astype(jnp.float32)

    # Batch tiling: pad only to a multiple of 8 (sublane); padded rows are
    # inert garbage sliced off at the end.
    b8 = -(-b // 8) * 8
    tb = min(batch_tile, b8)
    tb = -(-tb // 8) * 8
    n_steps = -(-b8 // tb)
    if num_cores > 1 and n_steps > 1 and n_steps % num_cores != 0:
        # v7x megacore: make the step count a multiple of num_cores so both
        # TensorCores get equal work (shrinks tb instead of adding padded tiles).
        n_steps = -(-n_steps // num_cores) * num_cores
        tb = -(-(-(-b8 // n_steps)) // 8) * 8
    b_pad = n_steps * tb
    if b_pad != b:
        pad = b_pad - b
        x = jnp.pad(x, ((0, pad), (0, 0)))
        btm = jnp.pad(btm, ((0, pad), (0, 0)))

    grid = (b_pad // tb,)

    out = pl.pallas_call(
        _nnue_kernel,
        out_shape=jax.ShapeDtypeStruct((b_pad, 1), jnp.float32),
        grid_spec=pltpu.PrefetchScalarGridSpec(
            num_scalar_prefetch=0,
            grid=grid,
            in_specs=[
                pl.BlockSpec((tb, input_size), lambda i: (i, 0)),        # x (bf16)
                pl.BlockSpec((tb, 1), lambda i: (i, 0)),                 # black_to_move
                pl.BlockSpec((input_size, 2 * hl_size), lambda i: (0, 0)),  # W1cat (bf16)
                pl.BlockSpec((1, 2 * hl_size), lambda i: (0, 0)),        # b1cat
                pl.BlockSpec((1, hl_size), lambda i: (0, 0)),            # w2s
                pl.BlockSpec((1, hl_size), lambda i: (0, 0)),            # w2d
                pl.BlockSpec((1, 1), lambda i: (0, 0)),                  # b2
            ],
            out_specs=pl.BlockSpec((tb, 1), lambda i: (i, 0)),
        ),
        compiler_params=pltpu.CompilerParams(
            dimension_semantics=("parallel",),
            # Capped so the (768,2048) bf16 weight + (TB,2048) f32 temporaries
            # leave headroom on v7x's 64 MiB VMEM; plenty for v5e/v6e too.
            vmem_limit_bytes=48 * 1024 * 1024,
        ),
    )(x, btm, w1cat, b1cat, w2s, w2d, b2r)

    return out[:b]


if __name__ == "__main__":
    key = jax.random.PRNGKey(0)
    k1, k2, k3, k4, k5, k6 = jax.random.split(key, 6)

    B = 8
    # NNUE features are binary occupancy planes (exact in bf16).  With torch's
    # default Linear init the pre-activations span both SCReLU clamp bounds.
    x = jax.random.bernoulli(k1, 0.5, (B, input_size)).astype(jnp.float32)
    black_to_move = jax.random.bernoulli(k2, 0.5, (B, 1))

    # torch nn.Linear default init: U(-1/sqrt(fan_in), 1/sqrt(fan_in))
    lim1 = 1.0 / (input_size ** 0.5)
    w1 = jax.random.uniform(k3, (hl_size, input_size), dtype=jnp.float32,
                            minval=-lim1, maxval=lim1)
    b1 = jax.random.uniform(k4, (hl_size,), dtype=jnp.float32,
                            minval=-lim1, maxval=lim1)
    lim2 = 1.0 / ((2 * hl_size) ** 0.5)
    w2 = jax.random.uniform(k5, (1, 2 * hl_size), dtype=jnp.float32,
                            minval=-lim2, maxval=lim2)
    b2 = jax.random.uniform(k6, (1,), dtype=jnp.float32,
                            minval=-lim2, maxval=lim2)

    y = jax.jit(nnue_forward)(x, black_to_move, w1, b1, w2, b2)
    jax.block_until_ready(y)

    # Pure-JAX reference (mirrors the PyTorch forward, dropouts = identity).
    xf_ref = jnp.flip(x.reshape(-1, 2, 6, 8, 8), axis=(1, 3)).reshape(-1, input_size)

    # One-time check of the weight-permutation trick against the flip path.
    perm = jnp.flip(jnp.arange(input_size).reshape(2, 6, 8, 8),
                    axis=(0, 2)).reshape(input_size)
    assert jnp.array_equal(x[:, perm], xf_ref), "flip permutation mismatch"

    aw = x @ w1.T + b1
    ab = xf_ref @ w1.T + b1
    acc = jnp.where(black_to_move,
                    jnp.concatenate([ab, aw], axis=1),
                    jnp.concatenate([aw, ab], axis=1))
    h = jnp.clip(acc, 0.0, 1.0) ** 2
    y_ref = h @ w2.T + b2
    y_ref = jnp.where(black_to_move, -y_ref, y_ref)

    assert y.shape == (B, 1) and y.dtype == jnp.float32
    # Tolerance covers bf16 rounding of W1 on the MXU path (inputs are exact
    # 0/1 in bf16; accumulation and layer 2 stay f32).
    assert jnp.allclose(y, y_ref, atol=2e-2, rtol=2e-2), "mismatch vs reference"
    print("KERNEL_OK")
</pallas_src>

<mosaic_0001>
module attributes {stable_mosaic.version = 11 : i64} {
  func.func @_nnue_kernel(%arg0: i32, %arg1: memref<8x768xbf16, #tpu.memory_space<vmem>>, %arg2: memref<8x1xf32, #tpu.memory_space<vmem>>, %arg3: memref<768x2048xbf16, #tpu.memory_space<vmem>>, %arg4: memref<1x2048xf32, #tpu.memory_space<vmem>>, %arg5: memref<1x1024xf32, #tpu.memory_space<vmem>>, %arg6: memref<1x1024xf32, #tpu.memory_space<vmem>>, %arg7: memref<1x1xf32, #tpu.memory_space<vmem>>, %arg8: memref<8x1xf32, #tpu.memory_space<vmem>>) attributes {dimension_semantics = [#tpu.dimension_semantics<parallel>], iteration_bounds = array<i64: 1>, scalar_prefetch = 0 : i64, scratch_operands = 0 : i64, tpu.core_type = #tpu.core_type<tc>, window_params = [{transform_indices = @transform_0, window_bounds = array<i64: 8, 768>}, {transform_indices = @transform_1, window_bounds = array<i64: 8, 1>}, {pipeline_mode = #tpu.pipeline_mode<synchronous>, transform_indices = @transform_2, window_bounds = array<i64: 768, 2048>}, {pipeline_mode = #tpu.pipeline_mode<synchronous>, transform_indices = @transform_3, window_bounds = array<i64: 1, 2048>}, {pipeline_mode = #tpu.pipeline_mode<synchronous>, transform_indices = @transform_4, window_bounds = array<i64: 1, 1024>}, {pipeline_mode = #tpu.pipeline_mode<synchronous>, transform_indices = @transform_5, window_bounds = array<i64: 1, 1024>}, {pipeline_mode = #tpu.pipeline_mode<synchronous>, transform_indices = @transform_6, window_bounds = array<i64: 1, 1>}, {transform_indices = @transform_7, window_bounds = array<i64: 8, 1>}]} {
    %c0 = arith.constant 0 : index
    %c0_0 = arith.constant 0 : index
    %0 = vector.load %arg1[%c0, %c0_0] : memref<8x768xbf16, #tpu.memory_space<vmem>>, vector<8x768xbf16>
    %c0_1 = arith.constant 0 : index
    %c0_2 = arith.constant 0 : index
    %1 = vector.load %arg3[%c0_1, %c0_2] : memref<768x2048xbf16, #tpu.memory_space<vmem>>, vector<768x2048xbf16>
    %cst = arith.constant dense<0.000000e+00> : vector<8x2048xf32>
    %2 = tpu.matmul %0, %1, %cst {dimension_numbers = #tpu.dot_dimension_numbers<[1], [0], [0], [1], [0, 0, 1, 1], [], []>} : vector<8x768xbf16>, vector<768x2048xbf16>, vector<8x2048xf32> -> vector<8x2048xf32>
    %c0_3 = arith.constant 0 : index
    %c0_4 = arith.constant 0 : index
    %3 = vector.load %arg4[%c0_3, %c0_4] : memref<1x2048xf32, #tpu.memory_space<vmem>>, vector<1x2048xf32>
    %4 = vector.broadcast %3 : vector<1x2048xf32> to vector<8x2048xf32>
    %5 = arith.addf %2, %4 : vector<8x2048xf32>
    %cst_5 = arith.constant 0.000000e+00 : f32
    %cst_6 = arith.constant 1.000000e+00 : f32
    %6 = vector.broadcast %cst_5 : f32 to vector<8x2048xf32>
    %7 = arith.maximumf %6, %5 : vector<8x2048xf32>
    %8 = vector.broadcast %cst_6 : f32 to vector<8x2048xf32>
    %9 = arith.minimumf %8, %7 : vector<8x2048xf32>
    %10 = arith.mulf %9, %9 : vector<8x2048xf32>
    %11 = vector.extract_strided_slice %10 {offsets = [0, 0], sizes = [8, 1024], strides = [1, 1]} : vector<8x2048xf32> to vector<8x1024xf32>
    %12 = vector.extract_strided_slice %10 {offsets = [0, 1024], sizes = [8, 1024], strides = [1, 1]} : vector<8x2048xf32> to vector<8x1024xf32>
    %13 = arith.addf %11, %12 : vector<8x1024xf32>
    %14 = arith.subf %11, %12 : vector<8x1024xf32>
    %c0_7 = arith.constant 0 : index
    %c0_8 = arith.constant 0 : index
    %15 = vector.load %arg5[%c0_7, %c0_8] : memref<1x1024xf32, #tpu.memory_space<vmem>>, vector<1x1024xf32>
    %16 = vector.broadcast %15 : vector<1x1024xf32> to vector<8x1024xf32>
    %17 = arith.mulf %13, %16 : vector<8x1024xf32>
    %cst_9 = arith.constant dense<0.000000e+00> : vector<8xf32>
    %18 = vector.multi_reduction <add>, %17, %cst_9 [1] : vector<8x1024xf32> to vector<8xf32>
    %19 = vector.shape_cast %18 : vector<8xf32> to vector<8x1xf32>
    %c0_10 = arith.constant 0 : index
    %c0_11 = arith.constant 0 : index
    %20 = vector.load %arg6[%c0_10, %c0_11] : memref<1x1024xf32, #tpu.memory_space<vmem>>, vector<1x1024xf32>
    %21 = vector.broadcast %20 : vector<1x1024xf32> to vector<8x1024xf32>
    %22 = arith.mulf %14, %21 : vector<8x1024xf32>
    %cst_12 = arith.constant dense<0.000000e+00> : vector<8xf32>
    %23 = vector.multi_reduction <add>, %22, %cst_12 [1] : vector<8x1024xf32> to vector<8xf32>
    %24 = vector.shape_cast %23 : vector<8xf32> to vector<8x1xf32>
    %c0_13 = arith.constant 0 : index
    %c0_14 = arith.constant 0 : index
    %25 = vector.load %arg7[%c0_13, %c0_14] : memref<1x1xf32, #tpu.memory_space<vmem>>, vector<1x1xf32>
    %26 = arith.addf %19, %24 : vector<8x1xf32>
    %27 = vector.broadcast %25 : vector<1x1xf32> to vector<8x1xf32>
    %28 = arith.addf %26, %27 : vector<8x1xf32>
    %29 = arith.subf %19, %24 : vector<8x1xf32>
    %30 = vector.broadcast %25 : vector<1x1xf32> to vector<8x1xf32>
    %31 = arith.addf %29, %30 : vector<8x1xf32>
    %c0_15 = arith.constant 0 : index
    %c0_16 = arith.constant 0 : index
    %32 = vector.load %arg2[%c0_15, %c0_16] : memref<8x1xf32, #tpu.memory_space<vmem>>, vector<8x1xf32>
    %cst_17 = arith.constant 5.000000e-01 : f32
    %33 = vector.broadcast %cst_17 : f32 to vector<8x1xf32>
    %34 = arith.cmpf ogt, %32, %33 : vector<8x1xf32>
    %cst_18 = arith.constant 0.000000e+00 : f32
    %35 = vector.broadcast %cst_18 : f32 to vector<8x1xf32>
    %36 = arith.subf %35, %31 : vector<8x1xf32>
    %37 = arith.select %34, %36, %28 : vector<8x1xi1>, vector<8x1xf32>
    %c0_19 = arith.constant 0 : index
    %c0_20 = arith.constant 0 : index
    %38 = vector.load %arg8[%c0_19, %c0_20] : memref<8x1xf32, #tpu.memory_space<vmem>>, vector<8x1xf32>
    tpu.vector_store %arg8[%c0_19, %c0_20], %37 {strides = array<i32>} : memref<8x1xf32, #tpu.memory_space<vmem>>, vector<8x1xf32>,
    return
  }
  func.func @transform_0(%arg0: i32) -> (i32, i32) {
    %c0_i32 = arith.constant 0 : i32
    %c0_i32_0 = arith.constant 0 : i32
    return %arg0, %c0_i32 : i32, i32
  }
  func.func @transform_1(%arg0: i32) -> (i32, i32) {
    %c0_i32 = arith.constant 0 : i32
    %c0_i32_0 = arith.constant 0 : i32
    return %arg0, %c0_i32 : i32, i32
  }
  func.func @transform_2(%arg0: i32) -> (i32, i32) {
    %c0_i32 = arith.constant 0 : i32
    %c0_i32_0 = arith.constant 0 : i32
    %c0_i32_1 = arith.constant 0 : i32
    return %c0_i32, %c0_i32_0 : i32, i32
  }
  func.func @transform_3(%arg0: i32) -> (i32, i32) {
    %c0_i32 = arith.constant 0 : i32
    %c0_i32_0 = arith.constant 0 : i32
    %c0_i32_1 = arith.constant 0 : i32
    return %c0_i32, %c0_i32_0 : i32, i32
  }
  func.func @transform_4(%arg0: i32) -> (i32, i32) {
    %c0_i32 = arith.constant 0 : i32
    %c0_i32_0 = arith.constant 0 : i32
    %c0_i32_1 = arith.constant 0 : i32
    return %c0_i32, %c0_i32_0 : i32, i32
  }
  func.func @transform_5(%arg0: i32) -> (i32, i32) {
    %c0_i32 = arith.constant 0 : i32
    %c0_i32_0 = arith.constant 0 : i32
    %c0_i32_1 = arith.constant 0 : i32
    return %c0_i32, %c0_i32_0 : i32, i32
  }
  func.func @transform_6(%arg0: i32) -> (i32, i32) {
    %c0_i32 = arith.constant 0 : i32
    %c0_i32_0 = arith.constant 0 : i32
    %c0_i32_1 = arith.constant 0 : i32
    return %c0_i32, %c0_i32_0 : i32, i32
  }
  func.func @transform_7(%arg0: i32) -> (i32, i32) {
    %c0_i32 = arith.constant 0 : i32
    %c0_i32_0 = arith.constant 0 : i32
    return %arg0, %c0_i32 : i32, i32
  }
}

</mosaic_0001>

<llo_original>
// kernel: nnue_forward.1
$region0: #{nnue_forward.1}
  #allocation0 [shape = 'u32[]', space=smem, size = 0x4, offset = 0x4, fixed_abs, tag = 'smem constant byte address 0x4 - core index']
  #allocation1 [shape = 'u32[72,128]{1,0:T(1,128)}', space=vmem, size = 0x9000, scoped, tag = 'internal scratch']
  #allocation2 [shape = 'f32[1,1]{1,0:T(1,128)S(1)}', space=vmem, size = 0x200, scoped, tag = 'scoped memory for nnue_forward.1']
  %s0 = inlined_call_operand.vmem [shape: bf16[8,768], index: 0, kind: input, shape index: {}]
  %s1 = inlined_call_operand.vmem [shape: f32[8,1], index: 1, kind: input, shape index: {}]
  %s2 = inlined_call_operand.vmem [shape: bf16[768,2048], index: 2, kind: input, shape index: {}]
  %s3 = inlined_call_operand.vmem [shape: f32[1,2048], index: 3, kind: input, shape index: {}]
  %s4 = inlined_call_operand.vmem [shape: f32[1,1024], index: 4, kind: input, shape index: {}]
  %s5 = inlined_call_operand.vmem [shape: f32[1,1024], index: 5, kind: input, shape index: {}]
  %s6 = inlined_call_operand.<no memory space> [shape: f32[1,1], index: 6, kind: input, shape index: {}]
  %s7 = inlined_call_operand.vmem [shape: f32[8,1], index: 7, kind: output, shape index: {}]
  %s8 = sld [smem:[#allocation0]]
  $region38: #{nnue_forward.1} parent=0
    _
  %s10 = ssub.s32 1, %s8
  %s11 = scalar_select 0, %s10, %s8
  %v12 = vstv %s6
  %13 = vst [vmem:[#allocation2] sm:$0x1] %v12
  // Predicated region
  $region2: #{nnue_forward.1} parent=0 // pred_check
    _
  $region3: #{nnue_forward.1} parent=0 // pred_check_branch
    %15 = sbr.rel (0) target = $region5
  $region4: #{nnue_forward.1} parent=0 // pred_region
    _
  $region5: #{nnue_forward.1} parent=0 // pred_fallthru
    _
  // Predicated region
  $region6: #{nnue_forward.1} parent=0 // pred_check
    _
  $region7: #{nnue_forward.1} parent=0 // pred_check_branch
    %17 = sbr.rel (0) target = $region9
  $region8: #{nnue_forward.1} parent=0 // pred_region
    _
  $region9: #{nnue_forward.1} parent=0 // pred_fallthru
    _
  // Predicated region
  $region10: #{nnue_forward.1} parent=0 // pred_check
    _
  $region11: #{nnue_forward.1} parent=0 // pred_check_branch
    %19 = sbr.rel (0) target = $region13
  $region12: #{nnue_forward.1} parent=0 // pred_region
    _
  $region13: #{nnue_forward.1} parent=0 // pred_fallthru
    _
  // Predicated region
  $region14: #{nnue_forward.1} parent=0 // pred_check
    _
  $region15: #{nnue_forward.1} parent=0 // pred_check_branch
    %21 = sbr.rel (0) target = $region17
  $region16: #{nnue_forward.1} parent=0 // pred_region
    _
  $region17: #{nnue_forward.1} parent=0 // pred_fallthru
    _
  // Predicated region
  $region18: #{nnue_forward.1} parent=0 // pred_check
    _
  $region19: #{nnue_forward.1} parent=0 // pred_check_branch
    %23 = sbr.rel (0) target = $region21
  $region20: #{nnue_forward.1} parent=0 // pred_region
    _
  $region21: #{nnue_forward.1} parent=0 // pred_fallthru
    _
  // Predicated region
  $region22: #{nnue_forward.1} parent=0 // pred_check
    _
  $region23: #{nnue_forward.1} parent=0 // pred_check_branch
    %25 = sbr.rel (0) target = $region25
  $region24: #{nnue_forward.1} parent=0 // pred_region
    _
  $region25: #{nnue_forward.1} parent=0 // pred_fallthru
    _
  // Predicated region
  $region26: #{nnue_forward.1} parent=0 // pred_check
    _
  $region27: #{nnue_forward.1} parent=0 // pred_check_branch
    %27 = sbr.rel (0) target = $region29
  $region28: #{nnue_forward.1} parent=0 // pred_region
    _
  $region29: #{nnue_forward.1} parent=0 // pred_fallthru
    _
  %v28 = vld [vmem:[%s0] sm:$0xff]
  %v29 = vld [vmem:[%s0 + $0x8] sm:$0xff]
  %v30 = vld [vmem:[%s0 + $0x10] sm:$0xff]
  %v31 = vld [vmem:[%s2] sm:$0xff]
  %v32 = vld [vmem:[%s2 + $0x8] sm:$0xff]
  %v33 = vld [vmem:[%s2 + $0x10] sm:$0xff]
  %v34 = vld [vmem:[%s2 + $0x18] sm:$0xff]
  %v35 = vld [vmem:[%s2 + $0x20] sm:$0xff]
  %v36 = vld [vmem:[%s2 + $0x28] sm:$0xff]
  %v37 = vld [vmem:[%s2 + $0x30] sm:$0xff]
  %v38 = vld [vmem:[%s2 + $0x38] sm:$0xff]
  %v39 = vld [vmem:[%s2 + $0x40] sm:$0xff]
  %v40 = vld [vmem:[%s2 + $0x48] sm:$0xff]
  %v41 = vld [vmem:[%s2 + $0x50] sm:$0xff]
  %v42 = vld [vmem:[%s2 + $0x58] sm:$0xff]
  %v43 = vld [vmem:[%s2 + $0x60] sm:$0xff]
  %v44 = vld [vmem:[%s2 + $0x68] sm:$0xff]
  %v45 = vld [vmem:[%s2 + $0x70] sm:$0xff]
  %v46 = vld [vmem:[%s2 + $0x78] sm:$0xff]
  %v47 = vld [vmem:[%s2 + $0x80] sm:$0xff]
  %v48 = vld [vmem:[%s2 + $0x88] sm:$0xff]
  %v49 = vld [vmem:[%s2 + $0x90] sm:$0xff]
  %v50 = vld [vmem:[%s2 + $0x98] sm:$0xff]
  %v51 = vld [vmem:[%s2 + $0xa0] sm:$0xff]
  %v52 = vld [vmem:[%s2 + $0xa8] sm:$0xff]
  %v53 = vld [vmem:[%s2 + $0xb0] sm:$0xff]
  %v54 = vld [vmem:[%s2 + $0xb8] sm:$0xff]
  %v55 = vld [vmem:[%s2 + $0xc0] sm:$0xff]
  %v56 = vld [vmem:[%s2 + $0xc8] sm:$0xff]
  %v57 = vld [vmem:[%s2 + $0xd0] sm:$0xff]
  %v58 = vld [vmem:[%s2 + $0xd8] sm:$0xff]
  %v59 = vld [vmem:[%s2 + $0xe0] sm:$0xff]
  %v60 = vld [vmem:[%s2 + $0xe8] sm:$0xff]
  %v61 = vld [vmem:[%s2 + $0xf0] sm:$0xff]
  %v62 = vld [vmem:[%s2 + $0xf8] sm:$0xff]
  %v63 = vld [vmem:[%s2 + $0x100] sm:$0xff]
  %v64 = vld [vmem:[%s2 + $0x108] sm:$0xff]
  %v65 = vld [vmem:[%s2 + $0x110] sm:$0xff]
  %v66 = vld [vmem:[%s2 + $0x118] sm:$0xff]
  %v67 = vld [vmem:[%s2 + $0x120] sm:$0xff]
  %v68 = vld [vmem:[%s2 + $0x128] sm:$0xff]
  %v69 = vld [vmem:[%s2 + $0x130] sm:$0xff]
  %v70 = vld [vmem:[%s2 + $0x138] sm:$0xff]
  %v71 = vld [vmem:[%s2 + $0x140] sm:$0xff]
  %v72 = vld [vmem:[%s2 + $0x148] sm:$0xff]
  %v73 = vld [vmem:[%s2 + $0x150] sm:$0xff]
  %v74 = vld [vmem:[%s2 + $0x158] sm:$0xff]
  %v75 = vld [vmem:[%s2 + $0x160] sm:$0xff]
  %v76 = vld [vmem:[%s2 + $0x168] sm:$0xff]
  %v77 = vld [vmem:[%s2 + $0x170] sm:$0xff]
  %v78 = vld [vmem:[%s2 + $0x178] sm:$0xff]
  %v79 = vld [vmem:[%s2 + $0x180] sm:$0xff]
  %v80 = vld [vmem:[%s2 + $0x188] sm:$0xff]
  %v81 = vld [vmem:[%s2 + $0x190] sm:$0xff]
  %v82 = vld [vmem:[%s2 + $0x198] sm:$0xff]
  %v83 = vld [vmem:[%s2 + $0x1a0] sm:$0xff]
  %v84 = vld [vmem:[%s2 + $0x1a8] sm:$0xff]
  %v85 = vld [vmem:[%s2 + $0x1b0] sm:$0xff]
  %v86 = vld [vmem:[%s2 + $0x1b8] sm:$0xff]
  %v87 = vld [vmem:[%s2 + $0x1c0] sm:$0xff]
  %v88 = vld [vmem:[%s2 + $0x1c8] sm:$0xff]
  %v89 = vld [vmem:[%s2 + $0x1d0] sm:$0xff]
  %v90 = vld [vmem:[%s2 + $0x1d8] sm:$0xff]
  %v91 = vld [vmem:[%s2 + $0x1e0] sm:$0xff]
  %v92 = vld [vmem:[%s2 + $0x1e8] sm:$0xff]
  %v93 = vld [vmem:[%s2 + $0x1f0] sm:$0xff]
  %v94 = vld [vmem:[%s2 + $0x1f8] sm:$0xff]
  %v95 = vld [vmem:[%s2 + $0x200] sm:$0xff]
  %v96 = vld [vmem:[%s2 + $0x208] sm:$0xff]
  %v97 = vld [vmem:[%s2 + $0x210] sm:$0xff]
  %v98 = vld [vmem:[%s2 + $0x218] sm:$0xff]
  %v99 = vld [vmem:[%s2 + $0x220] sm:$0xff]
  %v100 = vld [vmem:[%s2 + $0x228] sm:$0xff]
  %v101 = vld [vmem:[%s2 + $0x230] sm:$0xff]
  %v102 = vld [vmem:[%s2 + $0x238] sm:$0xff]
  %v103 = vld [vmem:[%s2 + $0x240] sm:$0xff]
  %v104 = vld [vmem:[%s2 + $0x248] sm:$0xff]
  %v105 = vld [vmem:[%s2 + $0x250] sm:$0xff]
  %v106 = vld [vmem:[%s2 + $0x258] sm:$0xff]
  %v107 = vld [vmem:[%s2 + $0x260] sm:$0xff]
  %v108 = vld [vmem:[%s2 + $0x268] sm:$0xff]
  %v109 = vld [vmem:[%s2 + $0x270] sm:$0xff]
  %v110 = vld [vmem:[%s2 + $0x278] sm:$0xff]
  %v111 = vld [vmem:[%s2 + $0x280] sm:$0xff]
  %v112 = vld [vmem:[%s2 + $0x288] sm:$0xff]
  %v113 = vld [vmem:[%s2 + $0x290] sm:$0xff]
  %v114 = vld [vmem:[%s2 + $0x298] sm:$0xff]
  %v115 = vld [vmem:[%s2 + $0x2a0] sm:$0xff]
  %v116 = vld [vmem:[%s2 + $0x2a8] sm:$0xff]
  %v117 = vld [vmem:[%s2 + $0x2b0] sm:$0xff]
  %v118 = vld [vmem:[%s2 + $0x2b8] sm:$0xff]
  %v119 = vld [vmem:[%s2 + $0x2c0] sm:$0xff]
  %v120 = vld [vmem:[%s2 + $0x2c8] sm:$0xff]
  %v121 = vld [vmem:[%s2 + $0x2d0] sm:$0xff]
  %v122 = vld [vmem:[%s2 + $0x2d8] sm:$0xff]
  %v123 = vld [vmem:[%s2 + $0x2e0] sm:$0xff]
  %v124 = vld [vmem:[%s2 + $0x2e8] sm:$0xff]
  %v125 = vld [vmem:[%s2 + $0x2f0] sm:$0xff]
  %v126 = vld [vmem:[%s2 + $0x2f8] sm:$0xff]
  %v127 = vld [vmem:[%s2 + $0x300] sm:$0xff]
  %v128 = vld [vmem:[%s2 + $0x308] sm:$0xff]
  %v129 = vld [vmem:[%s2 + $0x310] sm:$0xff]
  %v130 = vld [vmem:[%s2 + $0x318] sm:$0xff]
  %v131 = vld [vmem:[%s2 + $0x320] sm:$0xff]
  %v132 = vld [vmem:[%s2 + $0x328] sm:$0xff]
  %v133 = vld [vmem:[%s2 + $0x330] sm:$0xff]
  %v134 = vld [vmem:[%s2 + $0x338] sm:$0xff]
  %v135 = vld [vmem:[%s2 + $0x340] sm:$0xff]
  %v136 = vld [vmem:[%s2 + $0x348] sm:$0xff]
  %v137 = vld [vmem:[%s2 + $0x350] sm:$0xff]
  %v138 = vld [vmem:[%s2 + $0x358] sm:$0xff]
  %v139 = vld [vmem:[%s2 + $0x360] sm:$0xff]
  %v140 = vld [vmem:[%s2 + $0x368] sm:$0xff]
  %v141 = vld [vmem:[%s2 + $0x370] sm:$0xff]
  %v142 = vld [vmem:[%s2 + $0x378] sm:$0xff]
  %v143 = vld [vmem:[%s2 + $0x380] sm:$0xff]
  %v144 = vld [vmem:[%s2 + $0x388] sm:$0xff]
  %v145 = vld [vmem:[%s2 + $0x390] sm:$0xff]
  %v146 = vld [vmem:[%s2 + $0x398] sm:$0xff]
  %v147 = vld [vmem:[%s2 + $0x3a0] sm:$0xff]
  %v148 = vld [vmem:[%s2 + $0x3a8] sm:$0xff]
  %v149 = vld [vmem:[%s2 + $0x3b0] sm:$0xff]
  %v150 = vld [vmem:[%s2 + $0x3b8] sm:$0xff]
  %v151 = vld [vmem:[%s2 + $0x3c0] sm:$0xff]
  %v152 = vld [vmem:[%s2 + $0x3c8] sm:$0xff]
  %v153 = vld [vmem:[%s2 + $0x3d0] sm:$0xff]
  %v154 = vld [vmem:[%s2 + $0x3d8] sm:$0xff]
  %v155 = vld [vmem:[%s2 + $0x3e0] sm:$0xff]
  %v156 = vld [vmem:[%s2 + $0x3e8] sm:$0xff]
  %v157 = vld [vmem:[%s2 + $0x3f0] sm:$0xff]
  %v158 = vld [vmem:[%s2 + $0x3f8] sm:$0xff]
  %v159 = vld [vmem:[%s2 + $0x400] sm:$0xff]
  %v160 = vld [vmem:[%s2 + $0x408] sm:$0xff]
  %v161 = vld [vmem:[%s2 + $0x410] sm:$0xff]
  %v162 = vld [vmem:[%s2 + $0x418] sm:$0xff]
  %v163 = vld [vmem:[%s2 + $0x420] sm:$0xff]
  %v164 = vld [vmem:[%s2 + $0x428] sm:$0xff]
  %v165 = vld [vmem:[%s2 + $0x430] sm:$0xff]
  %v166 = vld [vmem:[%s2 + $0x438] sm:$0xff]
  %v167 = vld [vmem:[%s2 + $0x440] sm:$0xff]
  %v168 = vld [vmem:[%s2 + $0x448] sm:$0xff]
  %v169 = vld [vmem:[%s2 + $0x450] sm:$0xff]
  %v170 = vld [vmem:[%s2 + $0x458] sm:$0xff]
  %v171 = vld [vmem:[%s2 + $0x460] sm:$0xff]
  %v172 = vld [vmem:[%s2 + $0x468] sm:$0xff]
  %v173 = vld [vmem:[%s2 + $0x470] sm:$0xff]
  %v174 = vld [vmem:[%s2 + $0x478] sm:$0xff]
  %v175 = vld [vmem:[%s2 + $0x480] sm:$0xff]
  %v176 = vld [vmem:[%s2 + $0x488] sm:$0xff]
  %v177 = vld [vmem:[%s2 + $0x490] sm:$0xff]
  %v178 = vld [vmem:[%s2 + $0x498] sm:$0xff]
  %v179 = vld [vmem:[%s2 + $0x4a0] sm:$0xff]
  %v180 = vld [vmem:[%s2 + $0x4a8] sm:$0xff]
  %v181 = vld [vmem:[%s2 + $0x4b0] sm:$0xff]
  %v182 = vld [vmem:[%s2 + $0x4b8] sm:$0xff]
  %v183 = vld [vmem:[%s2 + $0x4c0] sm:$0xff]
  %v184 = vld [vmem:[%s2 + $0x4c8] sm:$0xff]
  %v185 = vld [vmem:[%s2 + $0x4d0] sm:$0xff]
  %v186 = vld [vmem:[%s2 + $0x4d8] sm:$0xff]
  %v187 = vld [vmem:[%s2 + $0x4e0] sm:$0xff]
  %v188 = vld [vmem:[%s2 + $0x4e8] sm:$0xff]
  %v189 = vld [vmem:[%s2 + $0x4f0] sm:$0xff]
  %v190 = vld [vmem:[%s2 + $0x4f8] sm:$0xff]
  %v191 = vld [vmem:[%s2 + $0x500] sm:$0xff]
  %v192 = vld [vmem:[%s2 + $0x508] sm:$0xff]
  %v193 = vld [vmem:[%s2 + $0x510] sm:$0xff]
  %v194 = vld [vmem:[%s2 + $0x518] sm:$0xff]
  %v195 = vld [vmem:[%s2 + $0x520] sm:$0xff]
  %v196 = vld [vmem:[%s2 + $0x528] sm:$0xff]
  %v197 = vld [vmem:[%s2 + $0x530] sm:$0xff]
  %v198 = vld [vmem:[%s2 + $0x538] sm:$0xff]
  %v199 = vld [vmem:[%s2 + $0x540] sm:$0xff]
  %v200 = vld [vmem:[%s2 + $0x548] sm:$0xff]
  %v201 = vld [vmem:[%s2 + $0x550] sm:$0xff]
  %v202 = vld [vmem:[%s2 + $0x558] sm:$0xff]
  %v203 = vld [vmem:[%s2 + $0x560] sm:$0xff]
  %v204 = vld [vmem:[%s2 + $0x568] sm:$0xff]
  %v205 = vld [vmem:[%s2 + $0x570] sm:$0xff]
  %v206 = vld [vmem:[%s2 + $0x578] sm:$0xff]
  %v207 = vld [vmem:[%s2 + $0x580] sm:$0xff]
  %v208 = vld [vmem:[%s2 + $0x588] sm:$0xff]
  %v209 = vld [vmem:[%s2 + $0x590] sm:$0xff]
  %v210 = vld [vmem:[%s2 + $0x598] sm:$0xff]
  %v211 = vld [vmem:[%s2 + $0x5a0] sm:$0xff]
  %v212 = vld [vmem:[%s2 + $0x5a8] sm:$0xff]
  %v213 = vld [vmem:[%s2 + $0x5b0] sm:$0xff]
  %v214 = vld [vmem:[%s2 + $0x5b8] sm:$0xff]
  %v215 = vld [vmem:[%s2 + $0x5c0] sm:$0xff]
  %v216 = vld [vmem:[%s2 + $0x5c8] sm:$0xff]
  %v217 = vld [vmem:[%s2 + $0x5d0] sm:$0xff]
  %v218 = vld [vmem:[%s2 + $0x5d8] sm:$0xff]
  %v219 = vld [vmem:[%s2 + $0x5e0] sm:$0xff]
  %v220 = vld [vmem:[%s2 + $0x5e8] sm:$0xff]
  %v221 = vld [vmem:[%s2 + $0x5f0] sm:$0xff]
  %v222 = vld [vmem:[%s2 + $0x5f8] sm:$0xff]
  %v223 = vld [vmem:[%s2 + $0x600] sm:$0xff]
  %v224 = vld [vmem:[%s2 + $0x608] sm:$0xff]
  %v225 = vld [vmem:[%s2 + $0x610] sm:$0xff]
  %v226 = vld [vmem:[%s2 + $0x618] sm:$0xff]
  %v227 = vld [vmem:[%s2 + $0x620] sm:$0xff]
  %v228 = vld [vmem:[%s2 + $0x628] sm:$0xff]
  %v229 = vld [vmem:[%s2 + $0x630] sm:$0xff]
  %v230 = vld [vmem:[%s2 + $0x638] sm:$0xff]
  %v231 = vld [vmem:[%s2 + $0x640] sm:$0xff]
  %v232 = vld [vmem:[%s2 + $0x648] sm:$0xff]
  %v233 = vld [vmem:[%s2 + $0x650] sm:$0xff]
  %v234 = vld [vmem:[%s2 + $0x658] sm:$0xff]
  %v235 = vld [vmem:[%s2 + $0x660] sm:$0xff]
  %v236 = vld [vmem:[%s2 + $0x668] sm:$0xff]
  %v237 = vld [vmem:[%s2 + $0x670] sm:$0xff]
  %v238 = vld [vmem:[%s2 + $0x678] sm:$0xff]
  %v239 = vld [vmem:[%s2 + $0x680] sm:$0xff]
  %v240 = vld [vmem:[%s2 + $0x688] sm:$0xff]
  %v241 = vld [vmem:[%s2 + $0x690] sm:$0xff]
  %v242 = vld [vmem:[%s2 + $0x698] sm:$0xff]
  %v243 = vld [vmem:[%s2 + $0x6a0] sm:$0xff]
  %v244 = vld [vmem:[%s2 + $0x6a8] sm:$0xff]
  %v245 = vld [vmem:[%s2 + $0x6b0] sm:$0xff]
  %v246 = vld [vmem:[%s2 + $0x6b8] sm:$0xff]
  %v247 = vld [vmem:[%s2 + $0x6c0] sm:$0xff]
  %v248 = vld [vmem:[%s2 + $0x6c8] sm:$0xff]
  %v249 = vld [vmem:[%s2 + $0x6d0] sm:$0xff]
  %v250 = vld [vmem:[%s2 + $0x6d8] sm:$0xff]
  %v251 = vld [vmem:[%s2 + $0x6e0] sm:$0xff]
  %v252 = vld [vmem:[%s2 + $0x6e8] sm:$0xff]
  %v253 = vld [vmem:[%s2 + $0x6f0] sm:$0xff]
  %v254 = vld [vmem:[%s2 + $0x6f8] sm:$0xff]
  %v255 = vld [vmem:[%s2 + $0x700] sm:$0xff]
  %v256 = vld [vmem:[%s2 + $0x708] sm:$0xff]
  %v257 = vld [vmem:[%s2 + $0x710] sm:$0xff]
  %v258 = vld [vmem:[%s2 + $0x718] sm:$0xff]
  %v259 = vld [vmem:[%s2 + $0x720] sm:$0xff]
  %v260 = vld [vmem:[%s2 + $0x728] sm:$0xff]
  %v261 = vld [vmem:[%s2 + $0x730] sm:$0xff]
  %v262 = vld [vmem:[%s2 + $0x738] sm:$0xff]
  %v263 = vld [vmem:[%s2 + $0x740] sm:$0xff]
  %v264 = vld [vmem:[%s2 + $0x748] sm:$0xff]
  %v265 = vld [vmem:[%s2 + $0x750] sm:$0xff]
  %v266 = vld [vmem:[%s2 + $0x758] sm:$0xff]
  %v267 = vld [vmem:[%s2 + $0x760] sm:$0xff]
  %v268 = vld [vmem:[%s2 + $0x768] sm:$0xff]
  %v269 = vld [vmem:[%s2 + $0x770] sm:$0xff]
  %v270 = vld [vmem:[%s2 + $0x778] sm:$0xff]
  %v271 = vld [vmem:[%s2 + $0x780] sm:$0xff]
  %v272 = vld [vmem:[%s2 + $0x788] sm:$0xff]
  %v273 = vld [vmem:[%s2 + $0x790] sm:$0xff]
  %v274 = vld [vmem:[%s2 + $0x798] sm:$0xff]
  %v275 = vld [vmem:[%s2 + $0x7a0] sm:$0xff]
  %v276 = vld [vmem:[%s2 + $0x7a8] sm:$0xff]
  %v277 = vld [vmem:[%s2 + $0x7b0] sm:$0xff]
  %v278 = vld [vmem:[%s2 + $0x7b8] sm:$0xff]
  %v279 = vld [vmem:[%s2 + $0x7c0] sm:$0xff]
  %v280 = vld [vmem:[%s2 + $0x7c8] sm:$0xff]
  %v281 = vld [vmem:[%s2 + $0x7d0] sm:$0xff]
  %v282 = vld [vmem:[%s2 + $0x7d8] sm:$0xff]
  %v283 = vld [vmem:[%s2 + $0x7e0] sm:$0xff]
  %v284 = vld [vmem:[%s2 + $0x7e8] sm:$0xff]
  %v285 = vld [vmem:[%s2 + $0x7f0] sm:$0xff]
  %v286 = vld [vmem:[%s2 + $0x7f8] sm:$0xff]
  %v287 = vld [vmem:[%s2 + $0x800] sm:$0xff]
  %v288 = vld [vmem:[%s2 + $0x808] sm:$0xff]
  %v289 = vld [vmem:[%s2 + $0x810] sm:$0xff]
  %v290 = vld [vmem:[%s2 + $0x818] sm:$0xff]
  %v291 = vld [vmem:[%s2 + $0x820] sm:$0xff]
  %v292 = vld [vmem:[%s2 + $0x828] sm:$0xff]
  %v293 = vld [vmem:[%s2 + $0x830] sm:$0xff]
  %v294 = vld [vmem:[%s2 + $0x838] sm:$0xff]
  %v295 = vld [vmem:[%s2 + $0x840] sm:$0xff]
  %v296 = vld [vmem:[%s2 + $0x848] sm:$0xff]
  %v297 = vld [vmem:[%s2 + $0x850] sm:$0xff]
  %v298 = vld [vmem:[%s2 + $0x858] sm:$0xff]
  %v299 = vld [vmem:[%s2 + $0x860] sm:$0xff]
  %v300 = vld [vmem:[%s2 + $0x868] sm:$0xff]
  %v301 = vld [vmem:[%s2 + $0x870] sm:$0xff]
  %v302 = vld [vmem:[%s2 + $0x878] sm:$0xff]
  %v303 = vld [vmem:[%s2 + $0x880] sm:$0xff]
  %v304 = vld [vmem:[%s2 + $0x888] sm:$0xff]
  %v305 = vld [vmem:[%s2 + $0x890] sm:$0xff]
  %v306 = vld [vmem:[%s2 + $0x898] sm:$0xff]
  %v307 = vld [vmem:[%s2 + $0x8a0] sm:$0xff]
  %v308 = vld [vmem:[%s2 + $0x8a8] sm:$0xff]
  %v309 = vld [vmem:[%s2 + $0x8b0] sm:$0xff]
  %v310 = vld [vmem:[%s2 + $0x8b8] sm:$0xff]
  %v311 = vld [vmem:[%s2 + $0x8c0] sm:$0xff]
  %v312 = vld [vmem:[%s2 + $0x8c8] sm:$0xff]
  %v313 = vld [vmem:[%s2 + $0x8d0] sm:$0xff]
  %v314 = vld [vmem:[%s2 + $0x8d8] sm:$0xff]
  %v315 = vld [vmem:[%s2 + $0x8e0] sm:$0xff]
  %v316 = vld [vmem:[%s2 + $0x8e8] sm:$0xff]
  %v317 = vld [vmem:[%s2 + $0x8f0] sm:$0xff]
  %v318 = vld [vmem:[%s2 + $0x8f8] sm:$0xff]
  %v319 = vld [vmem:[%s2 + $0x900] sm:$0xff]
  %v320 = vld [vmem:[%s2 + $0x908] sm:$0xff]
  %v321 = vld [vmem:[%s2 + $0x910] sm:$0xff]
  %v322 = vld [vmem:[%s2 + $0x918] sm:$0xff]
  %v323 = vld [vmem:[%s2 + $0x920] sm:$0xff]
  %v324 = vld [vmem:[%s2 + $0x928] sm:$0xff]
  %v325 = vld [vmem:[%s2 + $0x930] sm:$0xff]
  %v326 = vld [vmem:[%s2 + $0x938] sm:$0xff]
  %v327 = vld [vmem:[%s2 + $0x940] sm:$0xff]
  %v328 = vld [vmem:[%s2 + $0x948] sm:$0xff]
  %v329 = vld [vmem:[%s2 + $0x950] sm:$0xff]
  %v330 = vld [vmem:[%s2 + $0x958] sm:$0xff]
  %v331 = vld [vmem:[%s2 + $0x960] sm:$0xff]
  %v332 = vld [vmem:[%s2 + $0x968] sm:$0xff]
  %v333 = vld [vmem:[%s2 + $0x970] sm:$0xff]
  %v334 = vld [vmem:[%s2 + $0x978] sm:$0xff]
  %v335 = vld [vmem:[%s2 + $0x980] sm:$0xff]
  %v336 = vld [vmem:[%s2 + $0x988] sm:$0xff]
  %v337 = vld [vmem:[%s2 + $0x990] sm:$0xff]
  %v338 = vld [vmem:[%s2 + $0x998] sm:$0xff]
  %v339 = vld [vmem:[%s2 + $0x9a0] sm:$0xff]
  %v340 = vld [vmem:[%s2 + $0x9a8] sm:$0xff]
  %v341 = vld [vmem:[%s2 + $0x9b0] sm:$0xff]
  %v342 = vld [vmem:[%s2 + $0x9b8] sm:$0xff]
  %v343 = vld [vmem:[%s2 + $0x9c0] sm:$0xff]
  %v344 = vld [vmem:[%s2 + $0x9c8] sm:$0xff]
  %v345 = vld [vmem:[%s2 + $0x9d0] sm:$0xff]
  %v346 = vld [vmem:[%s2 + $0x9d8] sm:$0xff]
  %v347 = vld [vmem:[%s2 + $0x9e0] sm:$0xff]
  %v348 = vld [vmem:[%s2 + $0x9e8] sm:$0xff]
  %v349 = vld [vmem:[%s2 + $0x9f0] sm:$0xff]
  %v350 = vld [vmem:[%s2 + $0x9f8] sm:$0xff]
  %v351 = vld [vmem:[%s2 + $0xa00] sm:$0xff]
  %v352 = vld [vmem:[%s2 + $0xa08] sm:$0xff]
  %v353 = vld [vmem:[%s2 + $0xa10] sm:$0xff]
  %v354 = vld [vmem:[%s2 + $0xa18] sm:$0xff]
  %v355 = vld [vmem:[%s2 + $0xa20] sm:$0xff]
  %v356 = vld [vmem:[%s2 + $0xa28] sm:$0xff]
  %v357 = vld [vmem:[%s2 + $0xa30] sm:$0xff]
  %v358 = vld [vmem:[%s2 + $0xa38] sm:$0xff]
  %v359 = vld [vmem:[%s2 + $0xa40] sm:$0xff]
  %v360 = vld [vmem:[%s2 + $0xa48] sm:$0xff]
  %v361 = vld [vmem:[%s2 + $0xa50] sm:$0xff]
  %v362 = vld [vmem:[%s2 + $0xa58] sm:$0xff]
  %v363 = vld [vmem:[%s2 + $0xa60] sm:$0xff]
  %v364 = vld [vmem:[%s2 + $0xa68] sm:$0xff]
  %v365 = vld [vmem:[%s2 + $0xa70] sm:$0xff]
  %v366 = vld [vmem:[%s2 + $0xa78] sm:$0xff]
  %v367 = vld [vmem:[%s2 + $0xa80] sm:$0xff]
  %v368 = vld [vmem:[%s2 + $0xa88] sm:$0xff]
  %v369 = vld [vmem:[%s2 + $0xa90] sm:$0xff]
  %v370 = vld [vmem:[%s2 + $0xa98] sm:$0xff]
  %v371 = vld [vmem:[%s2 + $0xaa0] sm:$0xff]
  %v372 = vld [vmem:[%s2 + $0xaa8] sm:$0xff]
  %v373 = vld [vmem:[%s2 + $0xab0] sm:$0xff]
  %v374 = vld [vmem:[%s2 + $0xab8] sm:$0xff]
  %v375 = vld [vmem:[%s2 + $0xac0] sm:$0xff]
  %v376 = vld [vmem:[%s2 + $0xac8] sm:$0xff]
  %v377 = vld [vmem:[%s2 + $0xad0] sm:$0xff]
  %v378 = vld [vmem:[%s2 + $0xad8] sm:$0xff]
  %v379 = vld [vmem:[%s2 + $0xae0] sm:$0xff]
  %v380 = vld [vmem:[%s2 + $0xae8] sm:$0xff]
  %v381 = vld [vmem:[%s2 + $0xaf0] sm:$0xff]
  %v382 = vld [vmem:[%s2 + $0xaf8] sm:$0xff]
  %v383 = vld [vmem:[%s2 + $0xb00] sm:$0xff]
  %v384 = vld [vmem:[%s2 + $0xb08] sm:$0xff]
  %v385 = vld [vmem:[%s2 + $0xb10] sm:$0xff]
  %v386 = vld [vmem:[%s2 + $0xb18] sm:$0xff]
  %v387 = vld [vmem:[%s2 + $0xb20] sm:$0xff]
  %v388 = vld [vmem:[%s2 + $0xb28] sm:$0xff]
  %v389 = vld [vmem:[%s2 + $0xb30] sm:$0xff]
  %v390 = vld [vmem:[%s2 + $0xb38] sm:$0xff]
  %v391 = vld [vmem:[%s2 + $0xb40] sm:$0xff]
  %v392 = vld [vmem:[%s2 + $0xb48] sm:$0xff]
  %v393 = vld [vmem:[%s2 + $0xb50] sm:$0xff]
  %v394 = vld [vmem:[%s2 + $0xb58] sm:$0xff]
  %v395 = vld [vmem:[%s2 + $0xb60] sm:$0xff]
  %v396 = vld [vmem:[%s2 + $0xb68] sm:$0xff]
  %v397 = vld [vmem:[%s2 + $0xb70] sm:$0xff]
  %v398 = vld [vmem:[%s2 + $0xb78] sm:$0xff]
  %v399 = vld [vmem:[%s2 + $0xb80] sm:$0xff]
  %v400 = vld [vmem:[%s2 + $0xb88] sm:$0xff]
  %v401 = vld [vmem:[%s2 + $0xb90] sm:$0xff]
  %v402 = vld [vmem:[%s2 + $0xb98] sm:$0xff]
  %v403 = vld [vmem:[%s2 + $0xba0] sm:$0xff]
  %v404 = vld [vmem:[%s2 + $0xba8] sm:$0xff]
  %v405 = vld [vmem:[%s2 + $0xbb0] sm:$0xff]
  %v406 = vld [vmem:[%s2 + $0xbb8] sm:$0xff]
  %v407 = vld [vmem:[%s2 + $0xbc0] sm:$0xff]
  %v408 = vld [vmem:[%s2 + $0xbc8] sm:$0xff]
  %v409 = vld [vmem:[%s2 + $0xbd0] sm:$0xff]
  %v410 = vld [vmem:[%s2 + $0xbd8] sm:$0xff]
  %v411 = vld [vmem:[%s2 + $0xbe0] sm:$0xff]
  %v412 = vld [vmem:[%s2 + $0xbe8] sm:$0xff]
  %v413 = vld [vmem:[%s2 + $0xbf0] sm:$0xff]
  %v414 = vld [vmem:[%s2 + $0xbf8] sm:$0xff]
  %v415 = vld [vmem:[%s2 + $0xc00] sm:$0xff]
  %v416 = vld [vmem:[%s2 + $0xc08] sm:$0xff]
  %v417 = vld [vmem:[%s2 + $0xc10] sm:$0xff]
  %v418 = vld [vmem:[%s2 + $0xc18] sm:$0xff]
  %v419 = vld [vmem:[%s2 + $0xc20] sm:$0xff]
  %v420 = vld [vmem:[%s2 + $0xc28] sm:$0xff]
  %v421 = vld [vmem:[%s2 + $0xc30] sm:$0xff]
  %v422 = vld [vmem:[%s2 + $0xc38] sm:$0xff]
  %v423 = vld [vmem:[%s2 + $0xc40] sm:$0xff]
  %v424 = vld [vmem:[%s2 + $0xc48] sm:$0xff]
  %v425 = vld [vmem:[%s2 + $0xc50] sm:$0xff]
  %v426 = vld [vmem:[%s2 + $0xc58] sm:$0xff]
  %v427 = vld [vmem:[%s2 + $0xc60] sm:$0xff]
  %v428 = vld [vmem:[%s2 + $0xc68] sm:$0xff]
  %v429 = vld [vmem:[%s2 + $0xc70] sm:$0xff]
  %v430 = vld [vmem:[%s2 + $0xc78] sm:$0xff]
  %v431 = vld [vmem:[%s2 + $0xc80] sm:$0xff]
  %v432 = vld [vmem:[%s2 + $0xc88] sm:$0xff]
  %v433 = vld [vmem:[%s2 + $0xc90] sm:$0xff]
  %v434 = vld [vmem:[%s2 + $0xc98] sm:$0xff]
  %v435 = vld [vmem:[%s2 + $0xca0] sm:$0xff]
  %v436 = vld [vmem:[%s2 + $0xca8] sm:$0xff]
  %v437 = vld [vmem:[%s2 + $0xcb0] sm:$0xff]
  %v438 = vld [vmem:[%s2 + $0xcb8] sm:$0xff]
  %v439 = vld [vmem:[%s2 + $0xcc0] sm:$0xff]
  %v440 = vld [vmem:[%s2 + $0xcc8] sm:$0xff]
  %v441 = vld [vmem:[%s2 + $0xcd0] sm:$0xff]
  %v442 = vld [vmem:[%s2 + $0xcd8] sm:$0xff]
  %v443 = vld [vmem:[%s2 + $0xce0] sm:$0xff]
  %v444 = vld [vmem:[%s2 + $0xce8] sm:$0xff]
  %v445 = vld [vmem:[%s2 + $0xcf0] sm:$0xff]
  %v446 = vld [vmem:[%s2 + $0xcf8] sm:$0xff]
  %v447 = vld [vmem:[%s2 + $0xd00] sm:$0xff]
  %v448 = vld [vmem:[%s2 + $0xd08] sm:$0xff]
  %v449 = vld [vmem:[%s2 + $0xd10] sm:$0xff]
  %v450 = vld [vmem:[%s2 + $0xd18] sm:$0xff]
  %v451 = vld [vmem:[%s2 + $0xd20] sm:$0xff]
  %v452 = vld [vmem:[%s2 + $0xd28] sm:$0xff]
  %v453 = vld [vmem:[%s2 + $0xd30] sm:$0xff]
  %v454 = vld [vmem:[%s2 + $0xd38] sm:$0xff]
  %v455 = vld [vmem:[%s2 + $0xd40] sm:$0xff]
  %v456 = vld [vmem:[%s2 + $0xd48] sm:$0xff]
  %v457 = vld [vmem:[%s2 + $0xd50] sm:$0xff]
  %v458 = vld [vmem:[%s2 + $0xd58] sm:$0xff]
  %v459 = vld [vmem:[%s2 + $0xd60] sm:$0xff]
  %v460 = vld [vmem:[%s2 + $0xd68] sm:$0xff]
  %v461 = vld [vmem:[%s2 + $0xd70] sm:$0xff]
  %v462 = vld [vmem:[%s2 + $0xd78] sm:$0xff]
  %v463 = vld [vmem:[%s2 + $0xd80] sm:$0xff]
  %v464 = vld [vmem:[%s2 + $0xd88] sm:$0xff]
  %v465 = vld [vmem:[%s2 + $0xd90] sm:$0xff]
  %v466 = vld [vmem:[%s2 + $0xd98] sm:$0xff]
  %v467 = vld [vmem:[%s2 + $0xda0] sm:$0xff]
  %v468 = vld [vmem:[%s2 + $0xda8] sm:$0xff]
  %v469 = vld [vmem:[%s2 + $0xdb0] sm:$0xff]
  %v470 = vld [vmem:[%s2 + $0xdb8] sm:$0xff]
  %v471 = vld [vmem:[%s2 + $0xdc0] sm:$0xff]
  %v472 = vld [vmem:[%s2 + $0xdc8] sm:$0xff]
  %v473 = vld [vmem:[%s2 + $0xdd0] sm:$0xff]
  %v474 = vld [vmem:[%s2 + $0xdd8] sm:$0xff]
  %v475 = vld [vmem:[%s2 + $0xde0] sm:$0xff]
  %v476 = vld [vmem:[%s2 + $0xde8] sm:$0xff]
  %v477 = vld [vmem:[%s2 + $0xdf0] sm:$0xff]
  %v478 = vld [vmem:[%s2 + $0xdf8] sm:$0xff]
  %v479 = vld [vmem:[%s2 + $0xe00] sm:$0xff]
  %v480 = vld [vmem:[%s2 + $0xe08] sm:$0xff]
  %v481 = vld [vmem:[%s2 + $0xe10] sm:$0xff]
  %v482 = vld [vmem:[%s2 + $0xe18] sm:$0xff]
  %v483 = vld [vmem:[%s2 + $0xe20] sm:$0xff]
  %v484 = vld [vmem:[%s2 + $0xe28] sm:$0xff]
  %v485 = vld [vmem:[%s2 + $0xe30] sm:$0xff]
  %v486 = vld [vmem:[%s2 + $0xe38] sm:$0xff]
  %v487 = vld [vmem:[%s2 + $0xe40] sm:$0xff]
  %v488 = vld [vmem:[%s2 + $0xe48] sm:$0xff]
  %v489 = vld [vmem:[%s2 + $0xe50] sm:$0xff]
  %v490 = vld [vmem:[%s2 + $0xe58] sm:$0xff]
  %v491 = vld [vmem:[%s2 + $0xe60] sm:$0xff]
  %v492 = vld [vmem:[%s2 + $0xe68] sm:$0xff]
  %v493 = vld [vmem:[%s2 + $0xe70] sm:$0xff]
  %v494 = vld [vmem:[%s2 + $0xe78] sm:$0xff]
  %v495 = vld [vmem:[%s2 + $0xe80] sm:$0xff]
  %v496 = vld [vmem:[%s2 + $0xe88] sm:$0xff]
  %v497 = vld [vmem:[%s2 + $0xe90] sm:$0xff]
  %v498 = vld [vmem:[%s2 + $0xe98] sm:$0xff]
  %v499 = vld [vmem:[%s2 + $0xea0] sm:$0xff]
  %v500 = vld [vmem:[%s2 + $0xea8] sm:$0xff]
  %v501 = vld [vmem:[%s2 + $0xeb0] sm:$0xff]
  %v502 = vld [vmem:[%s2 + $0xeb8] sm:$0xff]
  %v503 = vld [vmem:[%s2 + $0xec0] sm:$0xff]
  %v504 = vld [vmem:[%s2 + $0xec8] sm:$0xff]
  %v505 = vld [vmem:[%s2 + $0xed0] sm:$0xff]
  %v506 = vld [vmem:[%s2 + $0xed8] sm:$0xff]
  %v507 = vld [vmem:[%s2 + $0xee0] sm:$0xff]
  %v508 = vld [vmem:[%s2 + $0xee8] sm:$0xff]
  %v509 = vld [vmem:[%s2 + $0xef0] sm:$0xff]
  %v510 = vld [vmem:[%s2 + $0xef8] sm:$0xff]
  %v511 = vld [vmem:[%s2 + $0xf00] sm:$0xff]
  %v512 = vld [vmem:[%s2 + $0xf08] sm:$0xff]
  %v513 = vld [vmem:[%s2 + $0xf10] sm:$0xff]
  %v514 = vld [vmem:[%s2 + $0xf18] sm:$0xff]
  %v515 = vld [vmem:[%s2 + $0xf20] sm:$0xff]
  %v516 = vld [vmem:[%s2 + $0xf28] sm:$0xff]
  %v517 = vld [vmem:[%s2 + $0xf30] sm:$0xff]
  %v518 = vld [vmem:[%s2 + $0xf38] sm:$0xff]
  %v519 = vld [vmem:[%s2 + $0xf40] sm:$0xff]
  %v520 = vld [vmem:[%s2 + $0xf48] sm:$0xff]
  %v521 = vld [vmem:[%s2 + $0xf50] sm:$0xff]
  %v522 = vld [vmem:[%s2 + $0xf58] sm:$0xff]
  %v523 = vld [vmem:[%s2 + $0xf60] sm:$0xff]
  %v524 = vld [vmem:[%s2 + $0xf68] sm:$0xff]
  %v525 = vld [vmem:[%s2 + $0xf70] sm:$0xff]
  %v526 = vld [vmem:[%s2 + $0xf78] sm:$0xff]
  %v527 = vld [vmem:[%s2 + $0xf80] sm:$0xff]
  %v528 = vld [vmem:[%s2 + $0xf88] sm:$0xff]
  %v529 = vld [vmem:[%s2 + $0xf90] sm:$0xff]
  %v530 = vld [vmem:[%s2 + $0xf98] sm:$0xff]
  %v531 = vld [vmem:[%s2 + $0xfa0] sm:$0xff]
  %v532 = vld [vmem:[%s2 + $0xfa8] sm:$0xff]
  %v533 = vld [vmem:[%s2 + $0xfb0] sm:$0xff]
  %v534 = vld [vmem:[%s2 + $0xfb8] sm:$0xff]
  %v535 = vld [vmem:[%s2 + $0xfc0] sm:$0xff]
  %v536 = vld [vmem:[%s2 + $0xfc8] sm:$0xff]
  %v537 = vld [vmem:[%s2 + $0xfd0] sm:$0xff]
  %v538 = vld [vmem:[%s2 + $0xfd8] sm:$0xff]
  %v539 = vld [vmem:[%s2 + $0xfe0] sm:$0xff]
  %v540 = vld [vmem:[%s2 + $0xfe8] sm:$0xff]
  %v541 = vld [vmem:[%s2 + $0xff0] sm:$0xff]
  %v542 = vld [vmem:[%s2 + $0xff8] sm:$0xff]
  %v543 = vld [vmem:[%s2 + $0x1000] sm:$0xff]
  %v544 = vld [vmem:[%s2 + $0x1008] sm:$0xff]
  %v545 = vld [vmem:[%s2 + $0x1010] sm:$0xff]
  %v546 = vld [vmem:[%s2 + $0x1018] sm:$0xff]
  %v547 = vld [vmem:[%s2 + $0x1020] sm:$0xff]
  %v548 = vld [vmem:[%s2 + $0x1028] sm:$0xff]
  %v549 = vld [vmem:[%s2 + $0x1030] sm:$0xff]
  %v550 = vld [vmem:[%s2 + $0x1038] sm:$0xff]
  %v551 = vld [vmem:[%s2 + $0x1040] sm:$0xff]
  %v552 = vld [vmem:[%s2 + $0x1048] sm:$0xff]
  %v553 = vld [vmem:[%s2 + $0x1050] sm:$0xff]
  %v554 = vld [vmem:[%s2 + $0x1058] sm:$0xff]
  %v555 = vld [vmem:[%s2 + $0x1060] sm:$0xff]
  %v556 = vld [vmem:[%s2 + $0x1068] sm:$0xff]
  %v557 = vld [vmem:[%s2 + $0x1070] sm:$0xff]
  %v558 = vld [vmem:[%s2 + $0x1078] sm:$0xff]
  %v559 = vld [vmem:[%s2 + $0x1080] sm:$0xff]
  %v560 = vld [vmem:[%s2 + $0x1088] sm:$0xff]
  %v561 = vld [vmem:[%s2 + $0x1090] sm:$0xff]
  %v562 = vld [vmem:[%s2 + $0x1098] sm:$0xff]
  %v563 = vld [vmem:[%s2 + $0x10a0] sm:$0xff]
  %v564 = vld [vmem:[%s2 + $0x10a8] sm:$0xff]
  %v565 = vld [vmem:[%s2 + $0x10b0] sm:$0xff]
  %v566 = vld [vmem:[%s2 + $0x10b8] sm:$0xff]
  %v567 = vld [vmem:[%s2 + $0x10c0] sm:$0xff]
  %v568 = vld [vmem:[%s2 + $0x10c8] sm:$0xff]
  %v569 = vld [vmem:[%s2 + $0x10d0] sm:$0xff]
  %v570 = vld [vmem:[%s2 + $0x10d8] sm:$0xff]
  %v571 = vld [vmem:[%s2 + $0x10e0] sm:$0xff]
  %v572 = vld [vmem:[%s2 + $0x10e8] sm:$0xff]
  %v573 = vld [vmem:[%s2 + $0x10f0] sm:$0xff]
  %v574 = vld [vmem:[%s2 + $0x10f8] sm:$0xff]
  %v575 = vld [vmem:[%s2 + $0x1100] sm:$0xff]
  %v576 = vld [vmem:[%s2 + $0x1108] sm:$0xff]
  %v577 = vld [vmem:[%s2 + $0x1110] sm:$0xff]
  %v578 = vld [vmem:[%s2 + $0x1118] sm:$0xff]
  %v579 = vld [vmem:[%s2 + $0x1120] sm:$0xff]
  %v580 = vld [vmem:[%s2 + $0x1128] sm:$0xff]
  %v581 = vld [vmem:[%s2 + $0x1130] sm:$0xff]
  %v582 = vld [vmem:[%s2 + $0x1138] sm:$0xff]
  %v583 = vld [vmem:[%s2 + $0x1140] sm:$0xff]
  %v584 = vld [vmem:[%s2 + $0x1148] sm:$0xff]
  %v585 = vld [vmem:[%s2 + $0x1150] sm:$0xff]
  %v586 = vld [vmem:[%s2 + $0x1158] sm:$0xff]
  %v587 = vld [vmem:[%s2 + $0x1160] sm:$0xff]
  %v588 = vld [vmem:[%s2 + $0x1168] sm:$0xff]
  %v589 = vld [vmem:[%s2 + $0x1170] sm:$0xff]
  %v590 = vld [vmem:[%s2 + $0x1178] sm:$0xff]
  %v591 = vld [vmem:[%s2 + $0x1180] sm:$0xff]
  %v592 = vld [vmem:[%s2 + $0x1188] sm:$0xff]
  %v593 = vld [vmem:[%s2 + $0x1190] sm:$0xff]
  %v594 = vld [vmem:[%s2 + $0x1198] sm:$0xff]
  %v595 = vld [vmem:[%s2 + $0x11a0] sm:$0xff]
  %v596 = vld [vmem:[%s2 + $0x11a8] sm:$0xff]
  %v597 = vld [vmem:[%s2 + $0x11b0] sm:$0xff]
  %v598 = vld [vmem:[%s2 + $0x11b8] sm:$0xff]
  %v599 = vld [vmem:[%s2 + $0x11c0] sm:$0xff]
  %v600 = vld [vmem:[%s2 + $0x11c8] sm:$0xff]
  %v601 = vld [vmem:[%s2 + $0x11d0] sm:$0xff]
  %v602 = vld [vmem:[%s2 + $0x11d8] sm:$0xff]
  %v603 = vld [vmem:[%s2 + $0x11e0] sm:$0xff]
  %v604 = vld [vmem:[%s2 + $0x11e8] sm:$0xff]
  %v605 = vld [vmem:[%s2 + $0x11f0] sm:$0xff]
  %v606 = vld [vmem:[%s2 + $0x11f8] sm:$0xff]
  %v607 = vld [vmem:[%s2 + $0x1200] sm:$0xff]
  %v608 = vld [vmem:[%s2 + $0x1208] sm:$0xff]
  %v609 = vld [vmem:[%s2 + $0x1210] sm:$0xff]
  %v610 = vld [vmem:[%s2 + $0x1218] sm:$0xff]
  %v611 = vld [vmem:[%s2 + $0x1220] sm:$0xff]
  %v612 = vld [vmem:[%s2 + $0x1228] sm:$0xff]
  %v613 = vld [vmem:[%s2 + $0x1230] sm:$0xff]
  %v614 = vld [vmem:[%s2 + $0x1238] sm:$0xff]
  %v615 = vld [vmem:[%s2 + $0x1240] sm:$0xff]
  %v616 = vld [vmem:[%s2 + $0x1248] sm:$0xff]
  %v617 = vld [vmem:[%s2 + $0x1250] sm:$0xff]
  %v618 = vld [vmem:[%s2 + $0x1258] sm:$0xff]
  %v619 = vld [vmem:[%s2 + $0x1260] sm:$0xff]
  %v620 = vld [vmem:[%s2 + $0x1268] sm:$0xff]
  %v621 = vld [vmem:[%s2 + $0x1270] sm:$0xff]
  %v622 = vld [vmem:[%s2 + $0x1278] sm:$0xff]
  %v623 = vld [vmem:[%s2 + $0x1280] sm:$0xff]
  %v624 = vld [vmem:[%s2 + $0x1288] sm:$0xff]
  %v625 = vld [vmem:[%s2 + $0x1290] sm:$0xff]
  %v626 = vld [vmem:[%s2 + $0x1298] sm:$0xff]
  %v627 = vld [vmem:[%s2 + $0x12a0] sm:$0xff]
  %v628 = vld [vmem:[%s2 + $0x12a8] sm:$0xff]
  %v629 = vld [vmem:[%s2 + $0x12b0] sm:$0xff]
  %v630 = vld [vmem:[%s2 + $0x12b8] sm:$0xff]
  %v631 = vld [vmem:[%s2 + $0x12c0] sm:$0xff]
  %v632 = vld [vmem:[%s2 + $0x12c8] sm:$0xff]
  %v633 = vld [vmem:[%s2 + $0x12d0] sm:$0xff]
  %v634 = vld [vmem:[%s2 + $0x12d8] sm:$0xff]
  %v635 = vld [vmem:[%s2 + $0x12e0] sm:$0xff]
  %v636 = vld [vmem:[%s2 + $0x12e8] sm:$0xff]
  %v637 = vld [vmem:[%s2 + $0x12f0] sm:$0xff]
  %v638 = vld [vmem:[%s2 + $0x12f8] sm:$0xff]
  %v639 = vld [vmem:[%s2 + $0x1300] sm:$0xff]
  %v640 = vld [vmem:[%s2 + $0x1308] sm:$0xff]
  %v641 = vld [vmem:[%s2 + $0x1310] sm:$0xff]
  %v642 = vld [vmem:[%s2 + $0x1318] sm:$0xff]
  %v643 = vld [vmem:[%s2 + $0x1320] sm:$0xff]
  %v644 = vld [vmem:[%s2 + $0x1328] sm:$0xff]
  %v645 = vld [vmem:[%s2 + $0x1330] sm:$0xff]
  %v646 = vld [vmem:[%s2 + $0x1338] sm:$0xff]
  %v647 = vld [vmem:[%s2 + $0x1340] sm:$0xff]
  %v648 = vld [vmem:[%s2 + $0x1348] sm:$0xff]
  %v649 = vld [vmem:[%s2 + $0x1350] sm:$0xff]
  %v650 = vld [vmem:[%s2 + $0x1358] sm:$0xff]
  %v651 = vld [vmem:[%s2 + $0x1360] sm:$0xff]
  %v652 = vld [vmem:[%s2 + $0x1368] sm:$0xff]
  %v653 = vld [vmem:[%s2 + $0x1370] sm:$0xff]
  %v654 = vld [vmem:[%s2 + $0x1378] sm:$0xff]
  %v655 = vld [vmem:[%s2 + $0x1380] sm:$0xff]
  %v656 = vld [vmem:[%s2 + $0x1388] sm:$0xff]
  %v657 = vld [vmem:[%s2 + $0x1390] sm:$0xff]
  %v658 = vld [vmem:[%s2 + $0x1398] sm:$0xff]
  %v659 = vld [vmem:[%s2 + $0x13a0] sm:$0xff]
  %v660 = vld [vmem:[%s2 + $0x13a8] sm:$0xff]
  %v661 = vld [vmem:[%s2 + $0x13b0] sm:$0xff]
  %v662 = vld [vmem:[%s2 + $0x13b8] sm:$0xff]
  %v663 = vld [vmem:[%s2 + $0x13c0] sm:$0xff]
  %v664 = vld [vmem:[%s2 + $0x13c8] sm:$0xff]
  %v665 = vld [vmem:[%s2 + $0x13d0] sm:$0xff]
  %v666 = vld [vmem:[%s2 + $0x13d8] sm:$0xff]
  %v667 = vld [vmem:[%s2 + $0x13e0] sm:$0xff]
  %v668 = vld [vmem:[%s2 + $0x13e8] sm:$0xff]
  %v669 = vld [vmem:[%s2 + $0x13f0] sm:$0xff]
  %v670 = vld [vmem:[%s2 + $0x13f8] sm:$0xff]
  %v671 = vld [vmem:[%s2 + $0x1400] sm:$0xff]
  %v672 = vld [vmem:[%s2 + $0x1408] sm:$0xff]
  %v673 = vld [vmem:[%s2 + $0x1410] sm:$0xff]
  %v674 = vld [vmem:[%s2 + $0x1418] sm:$0xff]
  %v675 = vld [vmem:[%s2 + $0x1420] sm:$0xff]
  %v676 = vld [vmem:[%s2 + $0x1428] sm:$0xff]
  %v677 = vld [vmem:[%s2 + $0x1430] sm:$0xff]
  %v678 = vld [vmem:[%s2 + $0x1438] sm:$0xff]
  %v679 = vld [vmem:[%s2 + $0x1440] sm:$0xff]
  %v680 = vld [vmem:[%s2 + $0x1448] sm:$0xff]
  %v681 = vld [vmem:[%s2 + $0x1450] sm:$0xff]
  %v682 = vld [vmem:[%s2 + $0x1458] sm:$0xff]
  %v683 = vld [vmem:[%s2 + $0x1460] sm:$0xff]
  %v684 = vld [vmem:[%s2 + $0x1468] sm:$0xff]
  %v685 = vld [vmem:[%s2 + $0x1470] sm:$0xff]
  %v686 = vld [vmem:[%s2 + $0x1478] sm:$0xff]
  %v687 = vld [vmem:[%s2 + $0x1480] sm:$0xff]
  %v688 = vld [vmem:[%s2 + $0x1488] sm:$0xff]
  %v689 = vld [vmem:[%s2 + $0x1490] sm:$0xff]
  %v690 = vld [vmem:[%s2 + $0x1498] sm:$0xff]
  %v691 = vld [vmem:[%s2 + $0x14a0] sm:$0xff]
  %v692 = vld [vmem:[%s2 + $0x14a8] sm:$0xff]
  %v693 = vld [vmem:[%s2 + $0x14b0] sm:$0xff]
  %v694 = vld [vmem:[%s2 + $0x14b8] sm:$0xff]
  %v695 = vld [vmem:[%s2 + $0x14c0] sm:$0xff]
  %v696 = vld [vmem:[%s2 + $0x14c8] sm:$0xff]
  %v697 = vld [vmem:[%s2 + $0x14d0] sm:$0xff]
  %v698 = vld [vmem:[%s2 + $0x14d8] sm:$0xff]
  %v699 = vld [vmem:[%s2 + $0x14e0] sm:$0xff]
  %v700 = vld [vmem:[%s2 + $0x14e8] sm:$0xff]
  %v701 = vld [vmem:[%s2 + $0x14f0] sm:$0xff]
  %v702 = vld [vmem:[%s2 + $0x14f8] sm:$0xff]
  %v703 = vld [vmem:[%s2 + $0x1500] sm:$0xff]
  %v704 = vld [vmem:[%s2 + $0x1508] sm:$0xff]
  %v705 = vld [vmem:[%s2 + $0x1510] sm:$0xff]
  %v706 = vld [vmem:[%s2 + $0x1518] sm:$0xff]
  %v707 = vld [vmem:[%s2 + $0x1520] sm:$0xff]
  %v708 = vld [vmem:[%s2 + $0x1528] sm:$0xff]
  %v709 = vld [vmem:[%s2 + $0x1530] sm:$0xff]
  %v710 = vld [vmem:[%s2 + $0x1538] sm:$0xff]
  %v711 = vld [vmem:[%s2 + $0x1540] sm:$0xff]
  %v712 = vld [vmem:[%s2 + $0x1548] sm:$0xff]
  %v713 = vld [vmem:[%s2 + $0x1550] sm:$0xff]
  %v714 = vld [vmem:[%s2 + $0x1558] sm:$0xff]
  %v715 = vld [vmem:[%s2 + $0x1560] sm:$0xff]
  %v716 = vld [vmem:[%s2 + $0x1568] sm:$0xff]
  %v717 = vld [vmem:[%s2 + $0x1570] sm:$0xff]
  %v718 = vld [vmem:[%s2 + $0x1578] sm:$0xff]
  %v719 = vld [vmem:[%s2 + $0x1580] sm:$0xff]
  %v720 = vld [vmem:[%s2 + $0x1588] sm:$0xff]
  %v721 = vld [vmem:[%s2 + $0x1590] sm:$0xff]
  %v722 = vld [vmem:[%s2 + $0x1598] sm:$0xff]
  %v723 = vld [vmem:[%s2 + $0x15a0] sm:$0xff]
  %v724 = vld [vmem:[%s2 + $0x15a8] sm:$0xff]
  %v725 = vld [vmem:[%s2 + $0x15b0] sm:$0xff]
  %v726 = vld [vmem:[%s2 + $0x15b8] sm:$0xff]
  %v727 = vld [vmem:[%s2 + $0x15c0] sm:$0xff]
  %v728 = vld [vmem:[%s2 + $0x15c8] sm:$0xff]
  %v729 = vld [vmem:[%s2 + $0x15d0] sm:$0xff]
  %v730 = vld [vmem:[%s2 + $0x15d8] sm:$0xff]
  %v731 = vld [vmem:[%s2 + $0x15e0] sm:$0xff]
  %v732 = vld [vmem:[%s2 + $0x15e8] sm:$0xff]
  %v733 = vld [vmem:[%s2 + $0x15f0] sm:$0xff]
  %v734 = vld [vmem:[%s2 + $0x15f8] sm:$0xff]
  %v735 = vld [vmem:[%s2 + $0x1600] sm:$0xff]
  %v736 = vld [vmem:[%s2 + $0x1608] sm:$0xff]
  %v737 = vld [vmem:[%s2 + $0x1610] sm:$0xff]
  %v738 = vld [vmem:[%s2 + $0x1618] sm:$0xff]
  %v739 = vld [vmem:[%s2 + $0x1620] sm:$0xff]
  %v740 = vld [vmem:[%s2 + $0x1628] sm:$0xff]
  %v741 = vld [vmem:[%s2 + $0x1630] sm:$0xff]
  %v742 = vld [vmem:[%s2 + $0x1638] sm:$0xff]
  %v743 = vld [vmem:[%s2 + $0x1640] sm:$0xff]
  %v744 = vld [vmem:[%s2 + $0x1648] sm:$0xff]
  %v745 = vld [vmem:[%s2 + $0x1650] sm:$0xff]
  %v746 = vld [vmem:[%s2 + $0x1658] sm:$0xff]
  %v747 = vld [vmem:[%s2 + $0x1660] sm:$0xff]
  %v748 = vld [vmem:[%s2 + $0x1668] sm:$0xff]
  %v749 = vld [vmem:[%s2 + $0x1670] sm:$0xff]
  %v750 = vld [vmem:[%s2 + $0x1678] sm:$0xff]
  %v751 = vld [vmem:[%s2 + $0x1680] sm:$0xff]
  %v752 = vld [vmem:[%s2 + $0x1688] sm:$0xff]
  %v753 = vld [vmem:[%s2 + $0x1690] sm:$0xff]
  %v754 = vld [vmem:[%s2 + $0x1698] sm:$0xff]
  %v755 = vld [vmem:[%s2 + $0x16a0] sm:$0xff]
  %v756 = vld [vmem:[%s2 + $0x16a8] sm:$0xff]
  %v757 = vld [vmem:[%s2 + $0x16b0] sm:$0xff]
  %v758 = vld [vmem:[%s2 + $0x16b8] sm:$0xff]
  %v759 = vld [vmem:[%s2 + $0x16c0] sm:$0xff]
  %v760 = vld [vmem:[%s2 + $0x16c8] sm:$0xff]
  %v761 = vld [vmem:[%s2 + $0x16d0] sm:$0xff]
  %v762 = vld [vmem:[%s2 + $0x16d8] sm:$0xff]
  %v763 = vld [vmem:[%s2 + $0x16e0] sm:$0xff]
  %v764 = vld [vmem:[%s2 + $0x16e8] sm:$0xff]
  %v765 = vld [vmem:[%s2 + $0x16f0] sm:$0xff]
  %v766 = vld [vmem:[%s2 + $0x16f8] sm:$0xff]
  %v767 = vld [vmem:[%s2 + $0x1700] sm:$0xff]
  %v768 = vld [vmem:[%s2 + $0x1708] sm:$0xff]
  %v769 = vld [vmem:[%s2 + $0x1710] sm:$0xff]
  %v770 = vld [vmem:[%s2 + $0x1718] sm:$0xff]
  %v771 = vld [vmem:[%s2 + $0x1720] sm:$0xff]
  %v772 = vld [vmem:[%s2 + $0x1728] sm:$0xff]
  %v773 = vld [vmem:[%s2 + $0x1730] sm:$0xff]
  %v774 = vld [vmem:[%s2 + $0x1738] sm:$0xff]
  %v775 = vld [vmem:[%s2 + $0x1740] sm:$0xff]
  %v776 = vld [vmem:[%s2 + $0x1748] sm:$0xff]
  %v777 = vld [vmem:[%s2 + $0x1750] sm:$0xff]
  %v778 = vld [vmem:[%s2 + $0x1758] sm:$0xff]
  %v779 = vld [vmem:[%s2 + $0x1760] sm:$0xff]
  %v780 = vld [vmem:[%s2 + $0x1768] sm:$0xff]
  %v781 = vld [vmem:[%s2 + $0x1770] sm:$0xff]
  %v782 = vld [vmem:[%s2 + $0x1778] sm:$0xff]
  %v783 = vld [vmem:[%s2 + $0x1780] sm:$0xff]
  %v784 = vld [vmem:[%s2 + $0x1788] sm:$0xff]
  %v785 = vld [vmem:[%s2 + $0x1790] sm:$0xff]
  %v786 = vld [vmem:[%s2 + $0x1798] sm:$0xff]
  %v787 = vld [vmem:[%s2 + $0x17a0] sm:$0xff]
  %v788 = vld [vmem:[%s2 + $0x17a8] sm:$0xff]
  %v789 = vld [vmem:[%s2 + $0x17b0] sm:$0xff]
  %v790 = vld [vmem:[%s2 + $0x17b8] sm:$0xff]
  %v791 = vld [vmem:[%s2 + $0x17c0] sm:$0xff]
  %v792 = vld [vmem:[%s2 + $0x17c8] sm:$0xff]
  %v793 = vld [vmem:[%s2 + $0x17d0] sm:$0xff]
  %v794 = vld [vmem:[%s2 + $0x17d8] sm:$0xff]
  %v795 = vld [vmem:[%s2 + $0x17e0] sm:$0xff]
  %v796 = vld [vmem:[%s2 + $0x17e8] sm:$0xff]
  %v797 = vld [vmem:[%s2 + $0x17f0] sm:$0xff]
  %v798 = vld [vmem:[%s2 + $0x17f8] sm:$0xff]
  %v799 = vld [vmem:[%s3] sm:$0xff]
  %v800 = vld [vmem:[%s3 + $0x8] sm:$0xff]
  %v803 = vperm.slane %v799, 0
  %v804 = vperm.slane %v799, 1
  %v805 = vperm.slane %v799, 2
  %v806 = vperm.slane %v799, 3
  %v807 = vperm.slane %v799, 4
  %v808 = vperm.slane %v799, 5
  %v809 = vperm.slane %v799, 6
  %v810 = vperm.slane %v799, 7
  %v811 = vperm.slane %v800, 0
  %v812 = vperm.slane %v800, 1
  %v813 = vperm.slane %v800, 2
  %v814 = vperm.slane %v800, 3
  %v815 = vperm.slane %v800, 4
  %v816 = vperm.slane %v800, 5
  %v817 = vperm.slane %v800, 6
  %v818 = vperm.slane %v800, 7
  %v838 = vunpack.c.l.b16 %v28
  %v839 = vunpack.c.h.b16 %v28
  %v840 = vunpack.c.l.b16 %v29
  %v841 = vunpack.c.h.b16 %v29
  %v842 = vunpack.c.l.b16 %v30
  %v843 = vunpack.c.h.b16 %v30
  %v844 = vpack.c.b16 %v838, %v838
  %v845 = vpack.c.b16 %v839, %v839
  %v846 = vpack.c.b16 %v840, %v840
  %v847 = vpack.c.b16 %v841, %v841
  %v848 = vpack.c.b16 %v842, %v842
  %v849 = vpack.c.b16 %v843, %v843
  %v1624 = vunpack.c.l.b16 %v31
  %v1625 = vunpack.c.h.b16 %v31
  %v1626 = vunpack.c.l.b16 %v32
  %v1627 = vunpack.c.h.b16 %v32
  %v1628 = vunpack.c.l.b16 %v33
  %v1629 = vunpack.c.h.b16 %v33
  %v1630 = vunpack.c.l.b16 %v34
  %v1631 = vunpack.c.h.b16 %v34
  %v1632 = vunpack.c.l.b16 %v35
  %v1633 = vunpack.c.h.b16 %v35
  %v1634 = vunpack.c.l.b16 %v36
  %v1635 = vunpack.c.h.b16 %v36
  %v1636 = vunpack.c.l.b16 %v37
  %v1637 = vunpack.c.h.b16 %v37
  %v1638 = vunpack.c.l.b16 %v38
  %v1639 = vunpack.c.h.b16 %v38
  %v1640 = vunpack.c.l.b16 %v39
  %v1641 = vunpack.c.h.b16 %v39
  %v1642 = vunpack.c.l.b16 %v40
  %v1643 = vunpack.c.h.b16 %v40
  %v1644 = vunpack.c.l.b16 %v41
  %v1645 = vunpack.c.h.b16 %v41
  %v1646 = vunpack.c.l.b16 %v42
  %v1647 = vunpack.c.h.b16 %v42
  %v1648 = vunpack.c.l.b16 %v43
  %v1649 = vunpack.c.h.b16 %v43
  %v1650 = vunpack.c.l.b16 %v44
  %v1651 = vunpack.c.h.b16 %v44
  %v1652 = vunpack.c.l.b16 %v45
  %v1653 = vunpack.c.h.b16 %v45
  %v1654 = vunpack.c.l.b16 %v46
  %v1655 = vunpack.c.h.b16 %v46
  %v1656 = vunpack.c.l.b16 %v47
  %v1657 = vunpack.c.h.b16 %v47
  %v1658 = vunpack.c.l.b16 %v48
  %v1659 = vunpack.c.h.b16 %v48
  %v1660 = vunpack.c.l.b16 %v49
  %v1661 = vunpack.c.h.b16 %v49
  %v1662 = vunpack.c.l.b16 %v50
  %v1663 = vunpack.c.h.b16 %v50
  %v1664 = vunpack.c.l.b16 %v51
  %v1665 = vunpack.c.h.b16 %v51
  %v1666 = vunpack.c.l.b16 %v52
  %v1667 = vunpack.c.h.b16 %v52
  %v1668 = vunpack.c.l.b16 %v53
  %v1669 = vunpack.c.h.b16 %v53
  %v1670 = vunpack.c.l.b16 %v54
  %v1671 = vunpack.c.h.b16 %v54
  %v1672 = vunpack.c.l.b16 %v55
  %v1673 = vunpack.c.h.b16 %v55
  %v1674 = vunpack.c.l.b16 %v56
  %v1675 = vunpack.c.h.b16 %v56
  %v1676 = vunpack.c.l.b16 %v57
  %v1677 = vunpack.c.h.b16 %v57
  %v1678 = vunpack.c.l.b16 %v58
  %v1679 = vunpack.c.h.b16 %v58
  %v1680 = vunpack.c.l.b16 %v59
  %v1681 = vunpack.c.h.b16 %v59
  %v1682 = vunpack.c.l.b16 %v60
  %v1683 = vunpack.c.h.b16 %v60
  %v1684 = vunpack.c.l.b16 %v61
  %v1685 = vunpack.c.h.b16 %v61
  %v1686 = vunpack.c.l.b16 %v62
  %v1687 = vunpack.c.h.b16 %v62
  %v1688 = vunpack.c.l.b16 %v63
  %v1689 = vunpack.c.h.b16 %v63
  %v1690 = vunpack.c.l.b16 %v64
  %v1691 = vunpack.c.h.b16 %v64
  %v1692 = vunpack.c.l.b16 %v65
  %v1693 = vunpack.c.h.b16 %v65
  %v1694 = vunpack.c.l.b16 %v66
  %v1695 = vunpack.c.h.b16 %v66
  %v1696 = vunpack.c.l.b16 %v67
  %v1697 = vunpack.c.h.b16 %v67
  %v1698 = vunpack.c.l.b16 %v68
  %v1699 = vunpack.c.h.b16 %v68
  %v1700 = vunpack.c.l.b16 %v69
  %v1701 = vunpack.c.h.b16 %v69
  %v1702 = vunpack.c.l.b16 %v70
  %v1703 = vunpack.c.h.b16 %v70
  %v1704 = vunpack.c.l.b16 %v71
  %v1705 = vunpack.c.h.b16 %v71
  %v1706 = vunpack.c.l.b16 %v72
  %v1707 = vunpack.c.h.b16 %v72
  %v1708 = vunpack.c.l.b16 %v73
  %v1709 = vunpack.c.h.b16 %v73
  %v1710 = vunpack.c.l.b16 %v74
  %v1711 = vunpack.c.h.b16 %v74
  %v1712 = vunpack.c.l.b16 %v75
  %v1713 = vunpack.c.h.b16 %v75
  %v1714 = vunpack.c.l.b16 %v76
  %v1715 = vunpack.c.h.b16 %v76
  %v1716 = vunpack.c.l.b16 %v77
  %v1717 = vunpack.c.h.b16 %v77
  %v1718 = vunpack.c.l.b16 %v78
  %v1719 = vunpack.c.h.b16 %v78
  %v1720 = vunpack.c.l.b16 %v79
  %v1721 = vunpack.c.h.b16 %v79
  %v1722 = vunpack.c.l.b16 %v80
  %v1723 = vunpack.c.h.b16 %v80
  %v1724 = vunpack.c.l.b16 %v81
  %v1725 = vunpack.c.h.b16 %v81
  %v1726 = vunpack.c.l.b16 %v82
  %v1727 = vunpack.c.h.b16 %v82
  %v1728 = vunpack.c.l.b16 %v83
  %v1729 = vunpack.c.h.b16 %v83
  %v1730 = vunpack.c.l.b16 %v84
  %v1731 = vunpack.c.h.b16 %v84
  %v1732 = vunpack.c.l.b16 %v85
  %v1733 = vunpack.c.h.b16 %v85
  %v1734 = vunpack.c.l.b16 %v86
  %v1735 = vunpack.c.h.b16 %v86
  %v1736 = vunpack.c.l.b16 %v87
  %v1737 = vunpack.c.h.b16 %v87
  %v1738 = vunpack.c.l.b16 %v88
  %v1739 = vunpack.c.h.b16 %v88
  %v1740 = vunpack.c.l.b16 %v89
  %v1741 = vunpack.c.h.b16 %v89
  %v1742 = vunpack.c.l.b16 %v90
  %v1743 = vunpack.c.h.b16 %v90
  %v1744 = vunpack.c.l.b16 %v91
  %v1745 = vunpack.c.h.b16 %v91
  %v1746 = vunpack.c.l.b16 %v92
  %v1747 = vunpack.c.h.b16 %v92
  %v1748 = vunpack.c.l.b16 %v93
  %v1749 = vunpack.c.h.b16 %v93
  %v1750 = vunpack.c.l.b16 %v94
  %v1751 = vunpack.c.h.b16 %v94
  %v1752 = vunpack.c.l.b16 %v95
  %v1753 = vunpack.c.h.b16 %v95
  %v1754 = vunpack.c.l.b16 %v96
  %v1755 = vunpack.c.h.b16 %v96
  %v1756 = vunpack.c.l.b16 %v97
  %v1757 = vunpack.c.h.b16 %v97
  %v1758 = vunpack.c.l.b16 %v98
  %v1759 = vunpack.c.h.b16 %v98
  %v1760 = vunpack.c.l.b16 %v99
  %v1761 = vunpack.c.h.b16 %v99
  %v1762 = vunpack.c.l.b16 %v100
  %v1763 = vunpack.c.h.b16 %v100
  %v1764 = vunpack.c.l.b16 %v101
  %v1765 = vunpack.c.h.b16 %v101
  %v1766 = vunpack.c.l.b16 %v102
  %v1767 = vunpack.c.h.b16 %v102
  %v1768 = vunpack.c.l.b16 %v103
  %v1769 = vunpack.c.h.b16 %v103
  %v1770 = vunpack.c.l.b16 %v104
  %v1771 = vunpack.c.h.b16 %v104
  %v1772 = vunpack.c.l.b16 %v105
  %v1773 = vunpack.c.h.b16 %v105
  %v1774 = vunpack.c.l.b16 %v106
  %v1775 = vunpack.c.h.b16 %v106
  %v1776 = vunpack.c.l.b16 %v107
  %v1777 = vunpack.c.h.b16 %v107
  %v1778 = vunpack.c.l.b16 %v108
  %v1779 = vunpack.c.h.b16 %v108
  %v1780 = vunpack.c.l.b16 %v109
  %v1781 = vunpack.c.h.b16 %v109
  %v1782 = vunpack.c.l.b16 %v110
  %v1783 = vunpack.c.h.b16 %v110
  %v1784 = vunpack.c.l.b16 %v111
  %v1785 = vunpack.c.h.b16 %v111
  %v1786 = vunpack.c.l.b16 %v112
  %v1787 = vunpack.c.h.b16 %v112
  %v1788 = vunpack.c.l.b16 %v113
  %v1789 = vunpack.c.h.b16 %v113
  %v1790 = vunpack.c.l.b16 %v114
  %v1791 = vunpack.c.h.b16 %v114
  %v1792 = vunpack.c.l.b16 %v115
  %v1793 = vunpack.c.h.b16 %v115
  %v1794 = vunpack.c.l.b16 %v116
  %v1795 = vunpack.c.h.b16 %v116
  %v1796 = vunpack.c.l.b16 %v117
  %v1797 = vunpack.c.h.b16 %v117
  %v1798 = vunpack.c.l.b16 %v118
  %v1799 = vunpack.c.h.b16 %v118
  %v1800 = vunpack.c.l.b16 %v119
  %v1801 = vunpack.c.h.b16 %v119
  %v1802 = vunpack.c.l.b16 %v120
  %v1803 = vunpack.c.h.b16 %v120
  %v1804 = vunpack.c.l.b16 %v121
  %v1805 = vunpack.c.h.b16 %v121
  %v1806 = vunpack.c.l.b16 %v122
  %v1807 = vunpack.c.h.b16 %v122
  %v1808 = vunpack.c.l.b16 %v123
  %v1809 = vunpack.c.h.b16 %v123
  %v1810 = vunpack.c.l.b16 %v124
  %v1811 = vunpack.c.h.b16 %v124
  %v1812 = vunpack.c.l.b16 %v125
  %v1813 = vunpack.c.h.b16 %v125
  %v1814 = vunpack.c.l.b16 %v126
  %v1815 = vunpack.c.h.b16 %v126
  %v1816 = vunpack.c.l.b16 %v127
  %v1817 = vunpack.c.h.b16 %v127
  %v1818 = vunpack.c.l.b16 %v128
  %v1819 = vunpack.c.h.b16 %v128
  %v1820 = vunpack.c.l.b16 %v129
  %v1821 = vunpack.c.h.b16 %v129
  %v1822 = vunpack.c.l.b16 %v130
  %v1823 = vunpack.c.h.b16 %v130
  %v1824 = vunpack.c.l.b16 %v131
  %v1825 = vunpack.c.h.b16 %v131
  %v1826 = vunpack.c.l.b16 %v132
  %v1827 = vunpack.c.h.b16 %v132
  %v1828 = vunpack.c.l.b16 %v133
  %v1829 = vunpack.c.h.b16 %v133
  %v1830 = vunpack.c.l.b16 %v134
  %v1831 = vunpack.c.h.b16 %v134
  %v1832 = vunpack.c.l.b16 %v135
  %v1833 = vunpack.c.h.b16 %v135
  %v1834 = vunpack.c.l.b16 %v136
  %v1835 = vunpack.c.h.b16 %v136
  %v1836 = vunpack.c.l.b16 %v137
  %v1837 = vunpack.c.h.b16 %v137
  %v1838 = vunpack.c.l.b16 %v138
  %v1839 = vunpack.c.h.b16 %v138
  %v1840 = vunpack.c.l.b16 %v139
  %v1841 = vunpack.c.h.b16 %v139
  %v1842 = vunpack.c.l.b16 %v140
  %v1843 = vunpack.c.h.b16 %v140
  %v1844 = vunpack.c.l.b16 %v141
  %v1845 = vunpack.c.h.b16 %v141
  %v1846 = vunpack.c.l.b16 %v142
  %v1847 = vunpack.c.h.b16 %v142
  %v1848 = vunpack.c.l.b16 %v143
  %v1849 = vunpack.c.h.b16 %v143
  %v1850 = vunpack.c.l.b16 %v144
  %v1851 = vunpack.c.h.b16 %v144
  %v1852 = vunpack.c.l.b16 %v145
  %v1853 = vunpack.c.h.b16 %v145
  %v1854 = vunpack.c.l.b16 %v146
  %v1855 = vunpack.c.h.b16 %v146
  %v1856 = vunpack.c.l.b16 %v147
  %v1857 = vunpack.c.h.b16 %v147
  %v1858 = vunpack.c.l.b16 %v148
  %v1859 = vunpack.c.h.b16 %v148
  %v1860 = vunpack.c.l.b16 %v149
  %v1861 = vunpack.c.h.b16 %v149
  %v1862 = vunpack.c.l.b16 %v150
  %v1863 = vunpack.c.h.b16 %v150
  %v1864 = vunpack.c.l.b16 %v151
  %v1865 = vunpack.c.h.b16 %v151
  %v1866 = vunpack.c.l.b16 %v152
  %v1867 = vunpack.c.h.b16 %v152
  %v1868 = vunpack.c.l.b16 %v153
  %v1869 = vunpack.c.h.b16 %v153
  %v1870 = vunpack.c.l.b16 %v154
  %v1871 = vunpack.c.h.b16 %v154
  %v1872 = vunpack.c.l.b16 %v155
  %v1873 = vunpack.c.h.b16 %v155
  %v1874 = vunpack.c.l.b16 %v156
  %v1875 = vunpack.c.h.b16 %v156
  %v1876 = vunpack.c.l.b16 %v157
  %v1877 = vunpack.c.h.b16 %v157
  %v1878 = vunpack.c.l.b16 %v158
  %v1879 = vunpack.c.h.b16 %v158
  %v1880 = vunpack.c.l.b16 %v159
  %v1881 = vunpack.c.h.b16 %v159
  %v1882 = vunpack.c.l.b16 %v160
  %v1883 = vunpack.c.h.b16 %v160
  %v1884 = vunpack.c.l.b16 %v161
  %v1885 = vunpack.c.h.b16 %v161
  %v1886 = vunpack.c.l.b16 %v162
  %v1887 = vunpack.c.h.b16 %v162
  %v1888 = vunpack.c.l.b16 %v163
  %v1889 = vunpack.c.h.b16 %v163
  %v1890 = vunpack.c.l.b16 %v164
  %v1891 = vunpack.c.h.b16 %v164
  %v1892 = vunpack.c.l.b16 %v165
  %v1893 = vunpack.c.h.b16 %v165
  %v1894 = vunpack.c.l.b16 %v166
  %v1895 = vunpack.c.h.b16 %v166
  %v1896 = vunpack.c.l.b16 %v167
  %v1897 = vunpack.c.h.b16 %v167
  %v1898 = vunpack.c.l.b16 %v168
  %v1899 = vunpack.c.h.b16 %v168
  %v1900 = vunpack.c.l.b16 %v169
  %v1901 = vunpack.c.h.b16 %v169
  %v1902 = vunpack.c.l.b16 %v170
  %v1903 = vunpack.c.h.b16 %v170
  %v1904 = vunpack.c.l.b16 %v171
  %v1905 = vunpack.c.h.b16 %v171
  %v1906 = vunpack.c.l.b16 %v172
  %v1907 = vunpack.c.h.b16 %v172
  %v1908 = vunpack.c.l.b16 %v173
  %v1909 = vunpack.c.h.b16 %v173
  %v1910 = vunpack.c.l.b16 %v174
  %v1911 = vunpack.c.h.b16 %v174
  %v1912 = vunpack.c.l.b16 %v175
  %v1913 = vunpack.c.h.b16 %v175
  %v1914 = vunpack.c.l.b16 %v176
  %v1915 = vunpack.c.h.b16 %v176
  %v1916 = vunpack.c.l.b16 %v177
  %v1917 = vunpack.c.h.b16 %v177
  %v1918 = vunpack.c.l.b16 %v178
  %v1919 = vunpack.c.h.b16 %v178
  %v1920 = vunpack.c.l.b16 %v179
  %v1921 = vunpack.c.h.b16 %v179
  %v1922 = vunpack.c.l.b16 %v180
  %v1923 = vunpack.c.h.b16 %v180
  %v1924 = vunpack.c.l.b16 %v181
  %v1925 = vunpack.c.h.b16 %v181
  %v1926 = vunpack.c.l.b16 %v182
  %v1927 = vunpack.c.h.b16 %v182
  %v1928 = vunpack.c.l.b16 %v183
  %v1929 = vunpack.c.h.b16 %v183
  %v1930 = vunpack.c.l.b16 %v184
  %v1931 = vunpack.c.h.b16 %v184
  %v1932 = vunpack.c.l.b16 %v185
  %v1933 = vunpack.c.h.b16 %v185
  %v1934 = vunpack.c.l.b16 %v186
  %v1935 = vunpack.c.h.b16 %v186
  %v1936 = vunpack.c.l.b16 %v187
  %v1937 = vunpack.c.h.b16 %v187
  %v1938 = vunpack.c.l.b16 %v188
  %v1939 = vunpack.c.h.b16 %v188
  %v1940 = vunpack.c.l.b16 %v189
  %v1941 = vunpack.c.h.b16 %v189
  %v1942 = vunpack.c.l.b16 %v190
  %v1943 = vunpack.c.h.b16 %v190
  %v1944 = vunpack.c.l.b16 %v191
  %v1945 = vunpack.c.h.b16 %v191
  %v1946 = vunpack.c.l.b16 %v192
  %v1947 = vunpack.c.h.b16 %v192
  %v1948 = vunpack.c.l.b16 %v193
  %v1949 = vunpack.c.h.b16 %v193
  %v1950 = vunpack.c.l.b16 %v194
  %v1951 = vunpack.c.h.b16 %v194
  %v1952 = vunpack.c.l.b16 %v195
  %v1953 = vunpack.c.h.b16 %v195
  %v1954 = vunpack.c.l.b16 %v196
  %v1955 = vunpack.c.h.b16 %v196
  %v1956 = vunpack.c.l.b16 %v197
  %v1957 = vunpack.c.h.b16 %v197
  %v1958 = vunpack.c.l.b16 %v198
  %v1959 = vunpack.c.h.b16 %v198
  %v1960 = vunpack.c.l.b16 %v199
  %v1961 = vunpack.c.h.b16 %v199
  %v1962 = vunpack.c.l.b16 %v200
  %v1963 = vunpack.c.h.b16 %v200
  %v1964 = vunpack.c.l.b16 %v201
  %v1965 = vunpack.c.h.b16 %v201
  %v1966 = vunpack.c.l.b16 %v202
  %v1967 = vunpack.c.h.b16 %v202
  %v1968 = vunpack.c.l.b16 %v203
  %v1969 = vunpack.c.h.b16 %v203
  %v1970 = vunpack.c.l.b16 %v204
  %v1971 = vunpack.c.h.b16 %v204
  %v1972 = vunpack.c.l.b16 %v205
  %v1973 = vunpack.c.h.b16 %v205
  %v1974 = vunpack.c.l.b16 %v206
  %v1975 = vunpack.c.h.b16 %v206
  %v1976 = vunpack.c.l.b16 %v207
  %v1977 = vunpack.c.h.b16 %v207
  %v1978 = vunpack.c.l.b16 %v208
  %v1979 = vunpack.c.h.b16 %v208
  %v1980 = vunpack.c.l.b16 %v209
  %v1981 = vunpack.c.h.b16 %v209
  %v1982 = vunpack.c.l.b16 %v210
  %v1983 = vunpack.c.h.b16 %v210
  %v1984 = vunpack.c.l.b16 %v211
  %v1985 = vunpack.c.h.b16 %v211
  %v1986 = vunpack.c.l.b16 %v212
  %v1987 = vunpack.c.h.b16 %v212
  %v1988 = vunpack.c.l.b16 %v213
  %v1989 = vunpack.c.h.b16 %v213
  %v1990 = vunpack.c.l.b16 %v214
  %v1991 = vunpack.c.h.b16 %v214
  %v1992 = vunpack.c.l.b16 %v215
  %v1993 = vunpack.c.h.b16 %v215
  %v1994 = vunpack.c.l.b16 %v216
  %v1995 = vunpack.c.h.b16 %v216
  %v1996 = vunpack.c.l.b16 %v217
  %v1997 = vunpack.c.h.b16 %v217
  %v1998 = vunpack.c.l.b16 %v218
  %v1999 = vunpack.c.h.b16 %v218
  %v2000 = vunpack.c.l.b16 %v219
  %v2001 = vunpack.c.h.b16 %v219
  %v2002 = vunpack.c.l.b16 %v220
  %v2003 = vunpack.c.h.b16 %v220
  %v2004 = vunpack.c.l.b16 %v221
  %v2005 = vunpack.c.h.b16 %v221
  %v2006 = vunpack.c.l.b16 %v222
  %v2007 = vunpack.c.h.b16 %v222
  %v2008 = vunpack.c.l.b16 %v223
  %v2009 = vunpack.c.h.b16 %v223
  %v2010 = vunpack.c.l.b16 %v224
  %v2011 = vunpack.c.h.b16 %v224
  %v2012 = vunpack.c.l.b16 %v225
  %v2013 = vunpack.c.h.b16 %v225
  %v2014 = vunpack.c.l.b16 %v226
  %v2015 = vunpack.c.h.b16 %v226
  %v2016 = vunpack.c.l.b16 %v227
  %v2017 = vunpack.c.h.b16 %v227
  %v2018 = vunpack.c.l.b16 %v228
  %v2019 = vunpack.c.h.b16 %v228
  %v2020 = vunpack.c.l.b16 %v229
  %v2021 = vunpack.c.h.b16 %v229
  %v2022 = vunpack.c.l.b16 %v230
  %v2023 = vunpack.c.h.b16 %v230
  %v2024 = vunpack.c.l.b16 %v231
  %v2025 = vunpack.c.h.b16 %v231
  %v2026 = vunpack.c.l.b16 %v232
  %v2027 = vunpack.c.h.b16 %v232
  %v2028 = vunpack.c.l.b16 %v233
  %v2029 = vunpack.c.h.b16 %v233
  %v2030 = vunpack.c.l.b16 %v234
  %v2031 = vunpack.c.h.b16 %v234
  %v2032 = vunpack.c.l.b16 %v235
  %v2033 = vunpack.c.h.b16 %v235
  %v2034 = vunpack.c.l.b16 %v236
  %v2035 = vunpack.c.h.b16 %v236
  %v2036 = vunpack.c.l.b16 %v237
  %v2037 = vunpack.c.h.b16 %v237
  %v2038 = vunpack.c.l.b16 %v238
  %v2039 = vunpack.c.h.b16 %v238
  %v2040 = vunpack.c.l.b16 %v239
  %v2041 = vunpack.c.h.b16 %v239
  %v2042 = vunpack.c.l.b16 %v240
  %v2043 = vunpack.c.h.b16 %v240
  %v2044 = vunpack.c.l.b16 %v241
  %v2045 = vunpack.c.h.b16 %v241
  %v2046 = vunpack.c.l.b16 %v242
  %v2047 = vunpack.c.h.b16 %v242
  %v2048 = vunpack.c.l.b16 %v243
  %v2049 = vunpack.c.h.b16 %v243
  %v2050 = vunpack.c.l.b16 %v244
  %v2051 = vunpack.c.h.b16 %v244
  %v2052 = vunpack.c.l.b16 %v245
  %v2053 = vunpack.c.h.b16 %v245
  %v2054 = vunpack.c.l.b16 %v246
  %v2055 = vunpack.c.h.b16 %v246
  %v2056 = vunpack.c.l.b16 %v247
  %v2057 = vunpack.c.h.b16 %v247
  %v2058 = vunpack.c.l.b16 %v248
  %v2059 = vunpack.c.h.b16 %v248
  %v2060 = vunpack.c.l.b16 %v249
  %v2061 = vunpack.c.h.b16 %v249
  %v2062 = vunpack.c.l.b16 %v250
  %v2063 = vunpack.c.h.b16 %v250
  %v2064 = vunpack.c.l.b16 %v251
  %v2065 = vunpack.c.h.b16 %v251
  %v2066 = vunpack.c.l.b16 %v252
  %v2067 = vunpack.c.h.b16 %v252
  %v2068 = vunpack.c.l.b16 %v253
  %v2069 = vunpack.c.h.b16 %v253
  %v2070 = vunpack.c.l.b16 %v254
  %v2071 = vunpack.c.h.b16 %v254
  %v2072 = vunpack.c.l.b16 %v255
  %v2073 = vunpack.c.h.b16 %v255
  %v2074 = vunpack.c.l.b16 %v256
  %v2075 = vunpack.c.h.b16 %v256
  %v2076 = vunpack.c.l.b16 %v257
  %v2077 = vunpack.c.h.b16 %v257
  %v2078 = vunpack.c.l.b16 %v258
  %v2079 = vunpack.c.h.b16 %v258
  %v2080 = vunpack.c.l.b16 %v259
  %v2081 = vunpack.c.h.b16 %v259
  %v2082 = vunpack.c.l.b16 %v260
  %v2083 = vunpack.c.h.b16 %v260
  %v2084 = vunpack.c.l.b16 %v261
  %v2085 = vunpack.c.h.b16 %v261
  %v2086 = vunpack.c.l.b16 %v262
  %v2087 = vunpack.c.h.b16 %v262
  %v2088 = vunpack.c.l.b16 %v263
  %v2089 = vunpack.c.h.b16 %v263
  %v2090 = vunpack.c.l.b16 %v264
  %v2091 = vunpack.c.h.b16 %v264
  %v2092 = vunpack.c.l.b16 %v265
  %v2093 = vunpack.c.h.b16 %v265
  %v2094 = vunpack.c.l.b16 %v266
  %v2095 = vunpack.c.h.b16 %v266
  %v2096 = vunpack.c.l.b16 %v267
  %v2097 = vunpack.c.h.b16 %v267
  %v2098 = vunpack.c.l.b16 %v268
  %v2099 = vunpack.c.h.b16 %v268
  %v2100 = vunpack.c.l.b16 %v269
  %v2101 = vunpack.c.h.b16 %v269
  %v2102 = vunpack.c.l.b16 %v270
  %v2103 = vunpack.c.h.b16 %v270
  %v2104 = vunpack.c.l.b16 %v271
  %v2105 = vunpack.c.h.b16 %v271
  %v2106 = vunpack.c.l.b16 %v272
  %v2107 = vunpack.c.h.b16 %v272
  %v2108 = vunpack.c.l.b16 %v273
  %v2109 = vunpack.c.h.b16 %v273
  %v2110 = vunpack.c.l.b16 %v274
  %v2111 = vunpack.c.h.b16 %v274
  %v2112 = vunpack.c.l.b16 %v275
  %v2113 = vunpack.c.h.b16 %v275
  %v2114 = vunpack.c.l.b16 %v276
  %v2115 = vunpack.c.h.b16 %v276
  %v2116 = vunpack.c.l.b16 %v277
  %v2117 = vunpack.c.h.b16 %v277
  %v2118 = vunpack.c.l.b16 %v278
  %v2119 = vunpack.c.h.b16 %v278
  %v2120 = vunpack.c.l.b16 %v279
  %v2121 = vunpack.c.h.b16 %v279
  %v2122 = vunpack.c.l.b16 %v280
  %v2123 = vunpack.c.h.b16 %v280
  %v2124 = vunpack.c.l.b16 %v281
  %v2125 = vunpack.c.h.b16 %v281
  %v2126 = vunpack.c.l.b16 %v282
  %v2127 = vunpack.c.h.b16 %v282
  %v2128 = vunpack.c.l.b16 %v283
  %v2129 = vunpack.c.h.b16 %v283
  %v2130 = vunpack.c.l.b16 %v284
  %v2131 = vunpack.c.h.b16 %v284
  %v2132 = vunpack.c.l.b16 %v285
  %v2133 = vunpack.c.h.b16 %v285
  %v2134 = vunpack.c.l.b16 %v286
  %v2135 = vunpack.c.h.b16 %v286
  %v2136 = vunpack.c.l.b16 %v287
  %v2137 = vunpack.c.h.b16 %v287
  %v2138 = vunpack.c.l.b16 %v288
  %v2139 = vunpack.c.h.b16 %v288
  %v2140 = vunpack.c.l.b16 %v289
  %v2141 = vunpack.c.h.b16 %v289
  %v2142 = vunpack.c.l.b16 %v290
  %v2143 = vunpack.c.h.b16 %v290
  %v2144 = vunpack.c.l.b16 %v291
  %v2145 = vunpack.c.h.b16 %v291
  %v2146 = vunpack.c.l.b16 %v292
  %v2147 = vunpack.c.h.b16 %v292
  %v2148 = vunpack.c.l.b16 %v293
  %v2149 = vunpack.c.h.b16 %v293
  %v2150 = vunpack.c.l.b16 %v294
  %v2151 = vunpack.c.h.b16 %v294
  %v2152 = vunpack.c.l.b16 %v295
  %v2153 = vunpack.c.h.b16 %v295
  %v2154 = vunpack.c.l.b16 %v296
  %v2155 = vunpack.c.h.b16 %v296
  %v2156 = vunpack.c.l.b16 %v297
  %v2157 = vunpack.c.h.b16 %v297
  %v2158 = vunpack.c.l.b16 %v298
  %v2159 = vunpack.c.h.b16 %v298
  %v2160 = vunpack.c.l.b16 %v299
  %v2161 = vunpack.c.h.b16 %v299
  %v2162 = vunpack.c.l.b16 %v300
  %v2163 = vunpack.c.h.b16 %v300
  %v2164 = vunpack.c.l.b16 %v301
  %v2165 = vunpack.c.h.b16 %v301
  %v2166 = vunpack.c.l.b16 %v302
  %v2167 = vunpack.c.h.b16 %v302
  %v2168 = vunpack.c.l.b16 %v303
  %v2169 = vunpack.c.h.b16 %v303
  %v2170 = vunpack.c.l.b16 %v304
  %v2171 = vunpack.c.h.b16 %v304
  %v2172 = vunpack.c.l.b16 %v305
  %v2173 = vunpack.c.h.b16 %v305
  %v2174 = vunpack.c.l.b16 %v306
  %v2175 = vunpack.c.h.b16 %v306
  %v2176 = vunpack.c.l.b16 %v307
  %v2177 = vunpack.c.h.b16 %v307
  %v2178 = vunpack.c.l.b16 %v308
  %v2179 = vunpack.c.h.b16 %v308
  %v2180 = vunpack.c.l.b16 %v309
  %v2181 = vunpack.c.h.b16 %v309
  %v2182 = vunpack.c.l.b16 %v310
  %v2183 = vunpack.c.h.b16 %v310
  %v2184 = vunpack.c.l.b16 %v311
  %v2185 = vunpack.c.h.b16 %v311
  %v2186 = vunpack.c.l.b16 %v312
  %v2187 = vunpack.c.h.b16 %v312
  %v2188 = vunpack.c.l.b16 %v313
  %v2189 = vunpack.c.h.b16 %v313
  %v2190 = vunpack.c.l.b16 %v314
  %v2191 = vunpack.c.h.b16 %v314
  %v2192 = vunpack.c.l.b16 %v315
  %v2193 = vunpack.c.h.b16 %v315
  %v2194 = vunpack.c.l.b16 %v316
  %v2195 = vunpack.c.h.b16 %v316
  %v2196 = vunpack.c.l.b16 %v317
  %v2197 = vunpack.c.h.b16 %v317
  %v2198 = vunpack.c.l.b16 %v318
  %v2199 = vunpack.c.h.b16 %v318
  %v2200 = vunpack.c.l.b16 %v319
  %v2201 = vunpack.c.h.b16 %v319
  %v2202 = vunpack.c.l.b16 %v320
  %v2203 = vunpack.c.h.b16 %v320
  %v2204 = vunpack.c.l.b16 %v321
  %v2205 = vunpack.c.h.b16 %v321
  %v2206 = vunpack.c.l.b16 %v322
  %v2207 = vunpack.c.h.b16 %v322
  %v2208 = vunpack.c.l.b16 %v323
  %v2209 = vunpack.c.h.b16 %v323
  %v2210 = vunpack.c.l.b16 %v324
  %v2211 = vunpack.c.h.b16 %v324
  %v2212 = vunpack.c.l.b16 %v325
  %v2213 = vunpack.c.h.b16 %v325
  %v2214 = vunpack.c.l.b16 %v326
  %v2215 = vunpack.c.h.b16 %v326
  %v2216 = vunpack.c.l.b16 %v327
  %v2217 = vunpack.c.h.b16 %v327
  %v2218 = vunpack.c.l.b16 %v328
  %v2219 = vunpack.c.h.b16 %v328
  %v2220 = vunpack.c.l.b16 %v329
  %v2221 = vunpack.c.h.b16 %v329
  %v2222 = vunpack.c.l.b16 %v330
  %v2223 = vunpack.c.h.b16 %v330
  %v2224 = vunpack.c.l.b16 %v331
  %v2225 = vunpack.c.h.b16 %v331
  %v2226 = vunpack.c.l.b16 %v332
  %v2227 = vunpack.c.h.b16 %v332
  %v2228 = vunpack.c.l.b16 %v333
  %v2229 = vunpack.c.h.b16 %v333
  %v2230 = vunpack.c.l.b16 %v334
  %v2231 = vunpack.c.h.b16 %v334
  %v2232 = vunpack.c.l.b16 %v335
  %v2233 = vunpack.c.h.b16 %v335
  %v2234 = vunpack.c.l.b16 %v336
  %v2235 = vunpack.c.h.b16 %v336
  %v2236 = vunpack.c.l.b16 %v337
  %v2237 = vunpack.c.h.b16 %v337
  %v2238 = vunpack.c.l.b16 %v338
  %v2239 = vunpack.c.h.b16 %v338
  %v2240 = vunpack.c.l.b16 %v339
  %v2241 = vunpack.c.h.b16 %v339
  %v2242 = vunpack.c.l.b16 %v340
  %v2243 = vunpack.c.h.b16 %v340
  %v2244 = vunpack.c.l.b16 %v341
  %v2245 = vunpack.c.h.b16 %v341
  %v2246 = vunpack.c.l.b16 %v342
  %v2247 = vunpack.c.h.b16 %v342
  %v2248 = vunpack.c.l.b16 %v343
  %v2249 = vunpack.c.h.b16 %v343
  %v2250 = vunpack.c.l.b16 %v344
  %v2251 = vunpack.c.h.b16 %v344
  %v2252 = vunpack.c.l.b16 %v345
  %v2253 = vunpack.c.h.b16 %v345
  %v2254 = vunpack.c.l.b16 %v346
  %v2255 = vunpack.c.h.b16 %v346
  %v2256 = vunpack.c.l.b16 %v347
  %v2257 = vunpack.c.h.b16 %v347
  %v2258 = vunpack.c.l.b16 %v348
  %v2259 = vunpack.c.h.b16 %v348
  %v2260 = vunpack.c.l.b16 %v349
  %v2261 = vunpack.c.h.b16 %v349
  %v2262 = vunpack.c.l.b16 %v350
  %v2263 = vunpack.c.h.b16 %v350
  %v2264 = vunpack.c.l.b16 %v351
  %v2265 = vunpack.c.h.b16 %v351
  %v2266 = vunpack.c.l.b16 %v352
  %v2267 = vunpack.c.h.b16 %v352
  %v2268 = vunpack.c.l.b16 %v353
  %v2269 = vunpack.c.h.b16 %v353
  %v2270 = vunpack.c.l.b16 %v354
  %v2271 = vunpack.c.h.b16 %v354
  %v2272 = vunpack.c.l.b16 %v355
  %v2273 = vunpack.c.h.b16 %v355
  %v2274 = vunpack.c.l.b16 %v356
  %v2275 = vunpack.c.h.b16 %v356
  %v2276 = vunpack.c.l.b16 %v357
  %v2277 = vunpack.c.h.b16 %v357
  %v2278 = vunpack.c.l.b16 %v358
  %v2279 = vunpack.c.h.b16 %v358
  %v2280 = vunpack.c.l.b16 %v359
  %v2281 = vunpack.c.h.b16 %v359
  %v2282 = vunpack.c.l.b16 %v360
  %v2283 = vunpack.c.h.b16 %v360
  %v2284 = vunpack.c.l.b16 %v361
  %v2285 = vunpack.c.h.b16 %v361
  %v2286 = vunpack.c.l.b16 %v362
  %v2287 = vunpack.c.h.b16 %v362
  %v2288 = vunpack.c.l.b16 %v363
  %v2289 = vunpack.c.h.b16 %v363
  %v2290 = vunpack.c.l.b16 %v364
  %v2291 = vunpack.c.h.b16 %v364
  %v2292 = vunpack.c.l.b16 %v365
  %v2293 = vunpack.c.h.b16 %v365
  %v2294 = vunpack.c.l.b16 %v366
  %v2295 = vunpack.c.h.b16 %v366
  %v2296 = vunpack.c.l.b16 %v367
  %v2297 = vunpack.c.h.b16 %v367
  %v2298 = vunpack.c.l.b16 %v368
  %v2299 = vunpack.c.h.b16 %v368
  %v2300 = vunpack.c.l.b16 %v369
  %v2301 = vunpack.c.h.b16 %v369
  %v2302 = vunpack.c.l.b16 %v370
  %v2303 = vunpack.c.h.b16 %v370
  %v2304 = vunpack.c.l.b16 %v371
  %v2305 = vunpack.c.h.b16 %v371
  %v2306 = vunpack.c.l.b16 %v372
  %v2307 = vunpack.c.h.b16 %v372
  %v2308 = vunpack.c.l.b16 %v373
  %v2309 = vunpack.c.h.b16 %v373
  %v2310 = vunpack.c.l.b16 %v374
  %v2311 = vunpack.c.h.b16 %v374
  %v2312 = vunpack.c.l.b16 %v375
  %v2313 = vunpack.c.h.b16 %v375
  %v2314 = vunpack.c.l.b16 %v376
  %v2315 = vunpack.c.h.b16 %v376
  %v2316 = vunpack.c.l.b16 %v377
  %v2317 = vunpack.c.h.b16 %v377
  %v2318 = vunpack.c.l.b16 %v378
  %v2319 = vunpack.c.h.b16 %v378
  %v2320 = vunpack.c.l.b16 %v379
  %v2321 = vunpack.c.h.b16 %v379
  %v2322 = vunpack.c.l.b16 %v380
  %v2323 = vunpack.c.h.b16 %v380
  %v2324 = vunpack.c.l.b16 %v381
  %v2325 = vunpack.c.h.b16 %v381
  %v2326 = vunpack.c.l.b16 %v382
  %v2327 = vunpack.c.h.b16 %v382
  %v2328 = vunpack.c.l.b16 %v383
  %v2329 = vunpack.c.h.b16 %v383
  %v2330 = vunpack.c.l.b16 %v384
  %v2331 = vunpack.c.h.b16 %v384
  %v2332 = vunpack.c.l.b16 %v385
  %v2333 = vunpack.c.h.b16 %v385
  %v2334 = vunpack.c.l.b16 %v386
  %v2335 = vunpack.c.h.b16 %v386
  %v2336 = vunpack.c.l.b16 %v387
  %v2337 = vunpack.c.h.b16 %v387
  %v2338 = vunpack.c.l.b16 %v388
  %v2339 = vunpack.c.h.b16 %v388
  %v2340 = vunpack.c.l.b16 %v389
  %v2341 = vunpack.c.h.b16 %v389
  %v2342 = vunpack.c.l.b16 %v390
  %v2343 = vunpack.c.h.b16 %v390
  %v2344 = vunpack.c.l.b16 %v391
  %v2345 = vunpack.c.h.b16 %v391
  %v2346 = vunpack.c.l.b16 %v392
  %v2347 = vunpack.c.h.b16 %v392
  %v2348 = vunpack.c.l.b16 %v393
  %v2349 = vunpack.c.h.b16 %v393
  %v2350 = vunpack.c.l.b16 %v394
  %v2351 = vunpack.c.h.b16 %v394
  %v2352 = vunpack.c.l.b16 %v395
  %v2353 = vunpack.c.h.b16 %v395
  %v2354 = vunpack.c.l.b16 %v396
  %v2355 = vunpack.c.h.b16 %v396
  %v2356 = vunpack.c.l.b16 %v397
  %v2357 = vunpack.c.h.b16 %v397
  %v2358 = vunpack.c.l.b16 %v398
  %v2359 = vunpack.c.h.b16 %v398
  %v2360 = vunpack.c.l.b16 %v399
  %v2361 = vunpack.c.h.b16 %v399
  %v2362 = vunpack.c.l.b16 %v400
  %v2363 = vunpack.c.h.b16 %v400
  %v2364 = vunpack.c.l.b16 %v401
  %v2365 = vunpack.c.h.b16 %v401
  %v2366 = vunpack.c.l.b16 %v402
  %v2367 = vunpack.c.h.b16 %v402
  %v2368 = vunpack.c.l.b16 %v403
  %v2369 = vunpack.c.h.b16 %v403
  %v2370 = vunpack.c.l.b16 %v404
  %v2371 = vunpack.c.h.b16 %v404
  %v2372 = vunpack.c.l.b16 %v405
  %v2373 = vunpack.c.h.b16 %v405
  %v2374 = vunpack.c.l.b16 %v406
  %v2375 = vunpack.c.h.b16 %v406
  %v2376 = vunpack.c.l.b16 %v407
  %v2377 = vunpack.c.h.b16 %v407
  %v2378 = vunpack.c.l.b16 %v408
  %v2379 = vunpack.c.h.b16 %v408
  %v2380 = vunpack.c.l.b16 %v409
  %v2381 = vunpack.c.h.b16 %v409
  %v2382 = vunpack.c.l.b16 %v410
  %v2383 = vunpack.c.h.b16 %v410
  %v2384 = vunpack.c.l.b16 %v411
  %v2385 = vunpack.c.h.b16 %v411
  %v2386 = vunpack.c.l.b16 %v412
  %v2387 = vunpack.c.h.b16 %v412
  %v2388 = vunpack.c.l.b16 %v413
  %v2389 = vunpack.c.h.b16 %v413
  %v2390 = vunpack.c.l.b16 %v414
  %v2391 = vunpack.c.h.b16 %v414
  %v2392 = vunpack.c.l.b16 %v415
  %v2393 = vunpack.c.h.b16 %v415
  %v2394 = vunpack.c.l.b16 %v416
  %v2395 = vunpack.c.h.b16 %v416
  %v2396 = vunpack.c.l.b16 %v417
  %v2397 = vunpack.c.h.b16 %v417
  %v2398 = vunpack.c.l.b16 %v418
  %v2399 = vunpack.c.h.b16 %v418
  %v2400 = vunpack.c.l.b16 %v419
  %v2401 = vunpack.c.h.b16 %v419
  %v2402 = vunpack.c.l.b16 %v420
  %v2403 = vunpack.c.h.b16 %v420
  %v2404 = vunpack.c.l.b16 %v421
  %v2405 = vunpack.c.h.b16 %v421
  %v2406 = vunpack.c.l.b16 %v422
  %v2407 = vunpack.c.h.b16 %v422
  %v2408 = vunpack.c.l.b16 %v423
  %v2409 = vunpack.c.h.b16 %v423
  %v2410 = vunpack.c.l.b16 %v424
  %v2411 = vunpack.c.h.b16 %v424
  %v2412 = vunpack.c.l.b16 %v425
  %v2413 = vunpack.c.h.b16 %v425
  %v2414 = vunpack.c.l.b16 %v426
  %v2415 = vunpack.c.h.b16 %v426
  %v2416 = vunpack.c.l.b16 %v427
  %v2417 = vunpack.c.h.b16 %v427
  %v2418 = vunpack.c.l.b16 %v428
  %v2419 = vunpack.c.h.b16 %v428
  %v2420 = vunpack.c.l.b16 %v429
  %v2421 = vunpack.c.h.b16 %v429
  %v2422 = vunpack.c.l.b16 %v430
  %v2423 = vunpack.c.h.b16 %v430
  %v2424 = vunpack.c.l.b16 %v431
  %v2425 = vunpack.c.h.b16 %v431
  %v2426 = vunpack.c.l.b16 %v432
  %v2427 = vunpack.c.h.b16 %v432
  %v2428 = vunpack.c.l.b16 %v433
  %v2429 = vunpack.c.h.b16 %v433
  %v2430 = vunpack.c.l.b16 %v434
  %v2431 = vunpack.c.h.b16 %v434
  %v2432 = vunpack.c.l.b16 %v435
  %v2433 = vunpack.c.h.b16 %v435
  %v2434 = vunpack.c.l.b16 %v436
  %v2435 = vunpack.c.h.b16 %v436
  %v2436 = vunpack.c.l.b16 %v437
  %v2437 = vunpack.c.h.b16 %v437
  %v2438 = vunpack.c.l.b16 %v438
  %v2439 = vunpack.c.h.b16 %v438
  %v2440 = vunpack.c.l.b16 %v439
  %v2441 = vunpack.c.h.b16 %v439
  %v2442 = vunpack.c.l.b16 %v440
  %v2443 = vunpack.c.h.b16 %v440
  %v2444 = vunpack.c.l.b16 %v441
  %v2445 = vunpack.c.h.b16 %v441
  %v2446 = vunpack.c.l.b16 %v442
  %v2447 = vunpack.c.h.b16 %v442
  %v2448 = vunpack.c.l.b16 %v443
  %v2449 = vunpack.c.h.b16 %v443
  %v2450 = vunpack.c.l.b16 %v444
  %v2451 = vunpack.c.h.b16 %v444
  %v2452 = vunpack.c.l.b16 %v445
  %v2453 = vunpack.c.h.b16 %v445
  %v2454 = vunpack.c.l.b16 %v446
  %v2455 = vunpack.c.h.b16 %v446
  %v2456 = vunpack.c.l.b16 %v447
  %v2457 = vunpack.c.h.b16 %v447
  %v2458 = vunpack.c.l.b16 %v448
  %v2459 = vunpack.c.h.b16 %v448
  %v2460 = vunpack.c.l.b16 %v449
  %v2461 = vunpack.c.h.b16 %v449
  %v2462 = vunpack.c.l.b16 %v450
  %v2463 = vunpack.c.h.b16 %v450
  %v2464 = vunpack.c.l.b16 %v451
  %v2465 = vunpack.c.h.b16 %v451
  %v2466 = vunpack.c.l.b16 %v452
  %v2467 = vunpack.c.h.b16 %v452
  %v2468 = vunpack.c.l.b16 %v453
  %v2469 = vunpack.c.h.b16 %v453
  %v2470 = vunpack.c.l.b16 %v454
  %v2471 = vunpack.c.h.b16 %v454
  %v2472 = vunpack.c.l.b16 %v455
  %v2473 = vunpack.c.h.b16 %v455
  %v2474 = vunpack.c.l.b16 %v456
  %v2475 = vunpack.c.h.b16 %v456
  %v2476 = vunpack.c.l.b16 %v457
  %v2477 = vunpack.c.h.b16 %v457
  %v2478 = vunpack.c.l.b16 %v458
  %v2479 = vunpack.c.h.b16 %v458
  %v2480 = vunpack.c.l.b16 %v459
  %v2481 = vunpack.c.h.b16 %v459
  %v2482 = vunpack.c.l.b16 %v460
  %v2483 = vunpack.c.h.b16 %v460
  %v2484 = vunpack.c.l.b16 %v461
  %v2485 = vunpack.c.h.b16 %v461
  %v2486 = vunpack.c.l.b16 %v462
  %v2487 = vunpack.c.h.b16 %v462
  %v2488 = vunpack.c.l.b16 %v463
  %v2489 = vunpack.c.h.b16 %v463
  %v2490 = vunpack.c.l.b16 %v464
  %v2491 = vunpack.c.h.b16 %v464
  %v2492 = vunpack.c.l.b16 %v465
  %v2493 = vunpack.c.h.b16 %v465
  %v2494 = vunpack.c.l.b16 %v466
  %v2495 = vunpack.c.h.b16 %v466
  %v2496 = vunpack.c.l.b16 %v467
  %v2497 = vunpack.c.h.b16 %v467
  %v2498 = vunpack.c.l.b16 %v468
  %v2499 = vunpack.c.h.b16 %v468
  %v2500 = vunpack.c.l.b16 %v469
  %v2501 = vunpack.c.h.b16 %v469
  %v2502 = vunpack.c.l.b16 %v470
  %v2503 = vunpack.c.h.b16 %v470
  %v2504 = vunpack.c.l.b16 %v471
  %v2505 = vunpack.c.h.b16 %v471
  %v2506 = vunpack.c.l.b16 %v472
  %v2507 = vunpack.c.h.b16 %v472
  %v2508 = vunpack.c.l.b16 %v473
  %v2509 = vunpack.c.h.b16 %v473
  %v2510 = vunpack.c.l.b16 %v474
  %v2511 = vunpack.c.h.b16 %v474
  %v2512 = vunpack.c.l.b16 %v475
  %v2513 = vunpack.c.h.b16 %v475
  %v2514 = vunpack.c.l.b16 %v476
  %v2515 = vunpack.c.h.b16 %v476
  %v2516 = vunpack.c.l.b16 %v477
  %v2517 = vunpack.c.h.b16 %v477
  %v2518 = vunpack.c.l.b16 %v478
  %v2519 = vunpack.c.h.b16 %v478
  %v2520 = vunpack.c.l.b16 %v479
  %v2521 = vunpack.c.h.b16 %v479
  %v2522 = vunpack.c.l.b16 %v480
  %v2523 = vunpack.c.h.b16 %v480
  %v2524 = vunpack.c.l.b16 %v481
  %v2525 = vunpack.c.h.b16 %v481
  %v2526 = vunpack.c.l.b16 %v482
  %v2527 = vunpack.c.h.b16 %v482
  %v2528 = vunpack.c.l.b16 %v483
  %v2529 = vunpack.c.h.b16 %v483
  %v2530 = vunpack.c.l.b16 %v484
  %v2531 = vunpack.c.h.b16 %v484
  %v2532 = vunpack.c.l.b16 %v485
  %v2533 = vunpack.c.h.b16 %v485
  %v2534 = vunpack.c.l.b16 %v486
  %v2535 = vunpack.c.h.b16 %v486
  %v2536 = vunpack.c.l.b16 %v487
  %v2537 = vunpack.c.h.b16 %v487
  %v2538 = vunpack.c.l.b16 %v488
  %v2539 = vunpack.c.h.b16 %v488
  %v2540 = vunpack.c.l.b16 %v489
  %v2541 = vunpack.c.h.b16 %v489
  %v2542 = vunpack.c.l.b16 %v490
  %v2543 = vunpack.c.h.b16 %v490
  %v2544 = vunpack.c.l.b16 %v491
  %v2545 = vunpack.c.h.b16 %v491
  %v2546 = vunpack.c.l.b16 %v492
  %v2547 = vunpack.c.h.b16 %v492
  %v2548 = vunpack.c.l.b16 %v493
  %v2549 = vunpack.c.h.b16 %v493
  %v2550 = vunpack.c.l.b16 %v494
  %v2551 = vunpack.c.h.b16 %v494
  %v2552 = vunpack.c.l.b16 %v495
  %v2553 = vunpack.c.h.b16 %v495
  %v2554 = vunpack.c.l.b16 %v496
  %v2555 = vunpack.c.h.b16 %v496
  %v2556 = vunpack.c.l.b16 %v497
  %v2557 = vunpack.c.h.b16 %v497
  %v2558 = vunpack.c.l.b16 %v498
  %v2559 = vunpack.c.h.b16 %v498
  %v2560 = vunpack.c.l.b16 %v499
  %v2561 = vunpack.c.h.b16 %v499
  %v2562 = vunpack.c.l.b16 %v500
  %v2563 = vunpack.c.h.b16 %v500
  %v2564 = vunpack.c.l.b16 %v501
  %v2565 = vunpack.c.h.b16 %v501
  %v2566 = vunpack.c.l.b16 %v502
  %v2567 = vunpack.c.h.b16 %v502
  %v2568 = vunpack.c.l.b16 %v503
  %v2569 = vunpack.c.h.b16 %v503
  %v2570 = vunpack.c.l.b16 %v504
  %v2571 = vunpack.c.h.b16 %v504
  %v2572 = vunpack.c.l.b16 %v505
  %v2573 = vunpack.c.h.b16 %v505
  %v2574 = vunpack.c.l.b16 %v506
  %v2575 = vunpack.c.h.b16 %v506
  %v2576 = vunpack.c.l.b16 %v507
  %v2577 = vunpack.c.h.b16 %v507
  %v2578 = vunpack.c.l.b16 %v508
  %v2579 = vunpack.c.h.b16 %v508
  %v2580 = vunpack.c.l.b16 %v509
  %v2581 = vunpack.c.h.b16 %v509
  %v2582 = vunpack.c.l.b16 %v510
  %v2583 = vunpack.c.h.b16 %v510
  %v2584 = vunpack.c.l.b16 %v511
  %v2585 = vunpack.c.h.b16 %v511
  %v2586 = vunpack.c.l.b16 %v512
  %v2587 = vunpack.c.h.b16 %v512
  %v2588 = vunpack.c.l.b16 %v513
  %v2589 = vunpack.c.h.b16 %v513
  %v2590 = vunpack.c.l.b16 %v514
  %v2591 = vunpack.c.h.b16 %v514
  %v2592 = vunpack.c.l.b16 %v515
  %v2593 = vunpack.c.h.b16 %v515
  %v2594 = vunpack.c.l.b16 %v516
  %v2595 = vunpack.c.h.b16 %v516
  %v2596 = vunpack.c.l.b16 %v517
  %v2597 = vunpack.c.h.b16 %v517
  %v2598 = vunpack.c.l.b16 %v518
  %v2599 = vunpack.c.h.b16 %v518
  %v2600 = vunpack.c.l.b16 %v519
  %v2601 = vunpack.c.h.b16 %v519
  %v2602 = vunpack.c.l.b16 %v520
  %v2603 = vunpack.c.h.b16 %v520
  %v2604 = vunpack.c.l.b16 %v521
  %v2605 = vunpack.c.h.b16 %v521
  %v2606 = vunpack.c.l.b16 %v522
  %v2607 = vunpack.c.h.b16 %v522
  %v2608 = vunpack.c.l.b16 %v523
  %v2609 = vunpack.c.h.b16 %v523
  %v2610 = vunpack.c.l.b16 %v524
  %v2611 = vunpack.c.h.b16 %v524
  %v2612 = vunpack.c.l.b16 %v525
  %v2613 = vunpack.c.h.b16 %v525
  %v2614 = vunpack.c.l.b16 %v526
  %v2615 = vunpack.c.h.b16 %v526
  %v2616 = vunpack.c.l.b16 %v527
  %v2617 = vunpack.c.h.b16 %v527
  %v2618 = vunpack.c.l.b16 %v528
  %v2619 = vunpack.c.h.b16 %v528
  %v2620 = vunpack.c.l.b16 %v529
  %v2621 = vunpack.c.h.b16 %v529
  %v2622 = vunpack.c.l.b16 %v530
  %v2623 = vunpack.c.h.b16 %v530
  %v2624 = vunpack.c.l.b16 %v531
  %v2625 = vunpack.c.h.b16 %v531
  %v2626 = vunpack.c.l.b16 %v532
  %v2627 = vunpack.c.h.b16 %v532
  %v2628 = vunpack.c.l.b16 %v533
  %v2629 = vunpack.c.h.b16 %v533
  %v2630 = vunpack.c.l.b16 %v534
  %v2631 = vunpack.c.h.b16 %v534
  %v2632 = vunpack.c.l.b16 %v535
  %v2633 = vunpack.c.h.b16 %v535
  %v2634 = vunpack.c.l.b16 %v536
  %v2635 = vunpack.c.h.b16 %v536
  %v2636 = vunpack.c.l.b16 %v537
  %v2637 = vunpack.c.h.b16 %v537
  %v2638 = vunpack.c.l.b16 %v538
  %v2639 = vunpack.c.h.b16 %v538
  %v2640 = vunpack.c.l.b16 %v539
  %v2641 = vunpack.c.h.b16 %v539
  %v2642 = vunpack.c.l.b16 %v540
  %v2643 = vunpack.c.h.b16 %v540
  %v2644 = vunpack.c.l.b16 %v541
  %v2645 = vunpack.c.h.b16 %v541
  %v2646 = vunpack.c.l.b16 %v542
  %v2647 = vunpack.c.h.b16 %v542
  %v2648 = vunpack.c.l.b16 %v543
  %v2649 = vunpack.c.h.b16 %v543
  %v2650 = vunpack.c.l.b16 %v544
  %v2651 = vunpack.c.h.b16 %v544
  %v2652 = vunpack.c.l.b16 %v545
  %v2653 = vunpack.c.h.b16 %v545
  %v2654 = vunpack.c.l.b16 %v546
  %v2655 = vunpack.c.h.b16 %v546
  %v2656 = vunpack.c.l.b16 %v547
  %v2657 = vunpack.c.h.b16 %v547
  %v2658 = vunpack.c.l.b16 %v548
  %v2659 = vunpack.c.h.b16 %v548
  %v2660 = vunpack.c.l.b16 %v549
  %v2661 = vunpack.c.h.b16 %v549
  %v2662 = vunpack.c.l.b16 %v550
  %v2663 = vunpack.c.h.b16 %v550
  %v2664 = vunpack.c.l.b16 %v551
  %v2665 = vunpack.c.h.b16 %v551
  %v2666 = vunpack.c.l.b16 %v552
  %v2667 = vunpack.c.h.b16 %v552
  %v2668 = vunpack.c.l.b16 %v553
  %v2669 = vunpack.c.h.b16 %v553
  %v2670 = vunpack.c.l.b16 %v554
  %v2671 = vunpack.c.h.b16 %v554
  %v2672 = vunpack.c.l.b16 %v555
  %v2673 = vunpack.c.h.b16 %v555
  %v2674 = vunpack.c.l.b16 %v556
  %v2675 = vunpack.c.h.b16 %v556
  %v2676 = vunpack.c.l.b16 %v557
  %v2677 = vunpack.c.h.b16 %v557
  %v2678 = vunpack.c.l.b16 %v558
  %v2679 = vunpack.c.h.b16 %v558
  %v2680 = vunpack.c.l.b16 %v559
  %v2681 = vunpack.c.h.b16 %v559
  %v2682 = vunpack.c.l.b16 %v560
  %v2683 = vunpack.c.h.b16 %v560
  %v2684 = vunpack.c.l.b16 %v561
  %v2685 = vunpack.c.h.b16 %v561
  %v2686 = vunpack.c.l.b16 %v562
  %v2687 = vunpack.c.h.b16 %v562
  %v2688 = vunpack.c.l.b16 %v563
  %v2689 = vunpack.c.h.b16 %v563
  %v2690 = vunpack.c.l.b16 %v564
  %v2691 = vunpack.c.h.b16 %v564
  %v2692 = vunpack.c.l.b16 %v565
  %v2693 = vunpack.c.h.b16 %v565
  %v2694 = vunpack.c.l.b16 %v566
  %v2695 = vunpack.c.h.b16 %v566
  %v2696 = vunpack.c.l.b16 %v567
  %v2697 = vunpack.c.h.b16 %v567
  %v2698 = vunpack.c.l.b16 %v568
  %v2699 = vunpack.c.h.b16 %v568
  %v2700 = vunpack.c.l.b16 %v569
  %v2701 = vunpack.c.h.b16 %v569
  %v2702 = vunpack.c.l.b16 %v570
  %v2703 = vunpack.c.h.b16 %v570
  %v2704 = vunpack.c.l.b16 %v571
  %v2705 = vunpack.c.h.b16 %v571
  %v2706 = vunpack.c.l.b16 %v572
  %v2707 = vunpack.c.h.b16 %v572
  %v2708 = vunpack.c.l.b16 %v573
  %v2709 = vunpack.c.h.b16 %v573
  %v2710 = vunpack.c.l.b16 %v574
  %v2711 = vunpack.c.h.b16 %v574
  %v2712 = vunpack.c.l.b16 %v575
  %v2713 = vunpack.c.h.b16 %v575
  %v2714 = vunpack.c.l.b16 %v576
  %v2715 = vunpack.c.h.b16 %v576
  %v2716 = vunpack.c.l.b16 %v577
  %v2717 = vunpack.c.h.b16 %v577
  %v2718 = vunpack.c.l.b16 %v578
  %v2719 = vunpack.c.h.b16 %v578
  %v2720 = vunpack.c.l.b16 %v579
  %v2721 = vunpack.c.h.b16 %v579
  %v2722 = vunpack.c.l.b16 %v580
  %v2723 = vunpack.c.h.b16 %v580
  %v2724 = vunpack.c.l.b16 %v581
  %v2725 = vunpack.c.h.b16 %v581
  %v2726 = vunpack.c.l.b16 %v582
  %v2727 = vunpack.c.h.b16 %v582
  %v2728 = vunpack.c.l.b16 %v583
  %v2729 = vunpack.c.h.b16 %v583
  %v2730 = vunpack.c.l.b16 %v584
  %v2731 = vunpack.c.h.b16 %v584
  %v2732 = vunpack.c.l.b16 %v585
  %v2733 = vunpack.c.h.b16 %v585
  %v2734 = vunpack.c.l.b16 %v586
  %v2735 = vunpack.c.h.b16 %v586
  %v2736 = vunpack.c.l.b16 %v587
  %v2737 = vunpack.c.h.b16 %v587
  %v2738 = vunpack.c.l.b16 %v588
  %v2739 = vunpack.c.h.b16 %v588
  %v2740 = vunpack.c.l.b16 %v589
  %v2741 = vunpack.c.h.b16 %v589
  %v2742 = vunpack.c.l.b16 %v590
  %v2743 = vunpack.c.h.b16 %v590
  %v2744 = vunpack.c.l.b16 %v591
  %v2745 = vunpack.c.h.b16 %v591
  %v2746 = vunpack.c.l.b16 %v592
  %v2747 = vunpack.c.h.b16 %v592
  %v2748 = vunpack.c.l.b16 %v593
  %v2749 = vunpack.c.h.b16 %v593
  %v2750 = vunpack.c.l.b16 %v594
  %v2751 = vunpack.c.h.b16 %v594
  %v2752 = vunpack.c.l.b16 %v595
  %v2753 = vunpack.c.h.b16 %v595
  %v2754 = vunpack.c.l.b16 %v596
  %v2755 = vunpack.c.h.b16 %v596
  %v2756 = vunpack.c.l.b16 %v597
  %v2757 = vunpack.c.h.b16 %v597
  %v2758 = vunpack.c.l.b16 %v598
  %v2759 = vunpack.c.h.b16 %v598
  %v2760 = vunpack.c.l.b16 %v599
  %v2761 = vunpack.c.h.b16 %v599
  %v2762 = vunpack.c.l.b16 %v600
  %v2763 = vunpack.c.h.b16 %v600
  %v2764 = vunpack.c.l.b16 %v601
  %v2765 = vunpack.c.h.b16 %v601
  %v2766 = vunpack.c.l.b16 %v602
  %v2767 = vunpack.c.h.b16 %v602
  %v2768 = vunpack.c.l.b16 %v603
  %v2769 = vunpack.c.h.b16 %v603
  %v2770 = vunpack.c.l.b16 %v604
  %v2771 = vunpack.c.h.b16 %v604
  %v2772 = vunpack.c.l.b16 %v605
  %v2773 = vunpack.c.h.b16 %v605
  %v2774 = vunpack.c.l.b16 %v606
  %v2775 = vunpack.c.h.b16 %v606
  %v2776 = vunpack.c.l.b16 %v607
  %v2777 = vunpack.c.h.b16 %v607
  %v2778 = vunpack.c.l.b16 %v608
  %v2779 = vunpack.c.h.b16 %v608
  %v2780 = vunpack.c.l.b16 %v609
  %v2781 = vunpack.c.h.b16 %v609
  %v2782 = vunpack.c.l.b16 %v610
  %v2783 = vunpack.c.h.b16 %v610
  %v2784 = vunpack.c.l.b16 %v611
  %v2785 = vunpack.c.h.b16 %v611
  %v2786 = vunpack.c.l.b16 %v612
  %v2787 = vunpack.c.h.b16 %v612
  %v2788 = vunpack.c.l.b16 %v613
  %v2789 = vunpack.c.h.b16 %v613
  %v2790 = vunpack.c.l.b16 %v614
  %v2791 = vunpack.c.h.b16 %v614
  %v2792 = vunpack.c.l.b16 %v615
  %v2793 = vunpack.c.h.b16 %v615
  %v2794 = vunpack.c.l.b16 %v616
  %v2795 = vunpack.c.h.b16 %v616
  %v2796 = vunpack.c.l.b16 %v617
  %v2797 = vunpack.c.h.b16 %v617
  %v2798 = vunpack.c.l.b16 %v618
  %v2799 = vunpack.c.h.b16 %v618
  %v2800 = vunpack.c.l.b16 %v619
  %v2801 = vunpack.c.h.b16 %v619
  %v2802 = vunpack.c.l.b16 %v620
  %v2803 = vunpack.c.h.b16 %v620
  %v2804 = vunpack.c.l.b16 %v621
  %v2805 = vunpack.c.h.b16 %v621
  %v2806 = vunpack.c.l.b16 %v622
  %v2807 = vunpack.c.h.b16 %v622
  %v2808 = vunpack.c.l.b16 %v623
  %v2809 = vunpack.c.h.b16 %v623
  %v2810 = vunpack.c.l.b16 %v624
  %v2811 = vunpack.c.h.b16 %v624
  %v2812 = vunpack.c.l.b16 %v625
  %v2813 = vunpack.c.h.b16 %v625
  %v2814 = vunpack.c.l.b16 %v626
  %v2815 = vunpack.c.h.b16 %v626
  %v2816 = vunpack.c.l.b16 %v627
  %v2817 = vunpack.c.h.b16 %v627
  %v2818 = vunpack.c.l.b16 %v628
  %v2819 = vunpack.c.h.b16 %v628
  %v2820 = vunpack.c.l.b16 %v629
  %v2821 = vunpack.c.h.b16 %v629
  %v2822 = vunpack.c.l.b16 %v630
  %v2823 = vunpack.c.h.b16 %v630
  %v2824 = vunpack.c.l.b16 %v631
  %v2825 = vunpack.c.h.b16 %v631
  %v2826 = vunpack.c.l.b16 %v632
  %v2827 = vunpack.c.h.b16 %v632
  %v2828 = vunpack.c.l.b16 %v633
  %v2829 = vunpack.c.h.b16 %v633
  %v2830 = vunpack.c.l.b16 %v634
  %v2831 = vunpack.c.h.b16 %v634
  %v2832 = vunpack.c.l.b16 %v635
  %v2833 = vunpack.c.h.b16 %v635
  %v2834 = vunpack.c.l.b16 %v636
  %v2835 = vunpack.c.h.b16 %v636
  %v2836 = vunpack.c.l.b16 %v637
  %v2837 = vunpack.c.h.b16 %v637
  %v2838 = vunpack.c.l.b16 %v638
  %v2839 = vunpack.c.h.b16 %v638
  %v2840 = vunpack.c.l.b16 %v639
  %v2841 = vunpack.c.h.b16 %v639
  %v2842 = vunpack.c.l.b16 %v640
  %v2843 = vunpack.c.h.b16 %v640
  %v2844 = vunpack.c.l.b16 %v641
  %v2845 = vunpack.c.h.b16 %v641
  %v2846 = vunpack.c.l.b16 %v642
  %v2847 = vunpack.c.h.b16 %v642
  %v2848 = vunpack.c.l.b16 %v643
  %v2849 = vunpack.c.h.b16 %v643
  %v2850 = vunpack.c.l.b16 %v644
  %v2851 = vunpack.c.h.b16 %v644
  %v2852 = vunpack.c.l.b16 %v645
  %v2853 = vunpack.c.h.b16 %v645
  %v2854 = vunpack.c.l.b16 %v646
  %v2855 = vunpack.c.h.b16 %v646
  %v2856 = vunpack.c.l.b16 %v647
  %v2857 = vunpack.c.h.b16 %v647
  %v2858 = vunpack.c.l.b16 %v648
  %v2859 = vunpack.c.h.b16 %v648
  %v2860 = vunpack.c.l.b16 %v649
  %v2861 = vunpack.c.h.b16 %v649
  %v2862 = vunpack.c.l.b16 %v650
  %v2863 = vunpack.c.h.b16 %v650
  %v2864 = vunpack.c.l.b16 %v651
  %v2865 = vunpack.c.h.b16 %v651
  %v2866 = vunpack.c.l.b16 %v652
  %v2867 = vunpack.c.h.b16 %v652
  %v2868 = vunpack.c.l.b16 %v653
  %v2869 = vunpack.c.h.b16 %v653
  %v2870 = vunpack.c.l.b16 %v654
  %v2871 = vunpack.c.h.b16 %v654
  %v2872 = vunpack.c.l.b16 %v655
  %v2873 = vunpack.c.h.b16 %v655
  %v2874 = vunpack.c.l.b16 %v656
  %v2875 = vunpack.c.h.b16 %v656
  %v2876 = vunpack.c.l.b16 %v657
  %v2877 = vunpack.c.h.b16 %v657
  %v2878 = vunpack.c.l.b16 %v658
  %v2879 = vunpack.c.h.b16 %v658
  %v2880 = vunpack.c.l.b16 %v659
  %v2881 = vunpack.c.h.b16 %v659
  %v2882 = vunpack.c.l.b16 %v660
  %v2883 = vunpack.c.h.b16 %v660
  %v2884 = vunpack.c.l.b16 %v661
  %v2885 = vunpack.c.h.b16 %v661
  %v2886 = vunpack.c.l.b16 %v662
  %v2887 = vunpack.c.h.b16 %v662
  %v2888 = vunpack.c.l.b16 %v663
  %v2889 = vunpack.c.h.b16 %v663
  %v2890 = vunpack.c.l.b16 %v664
  %v2891 = vunpack.c.h.b16 %v664
  %v2892 = vunpack.c.l.b16 %v665
  %v2893 = vunpack.c.h.b16 %v665
  %v2894 = vunpack.c.l.b16 %v666
  %v2895 = vunpack.c.h.b16 %v666
  %v2896 = vunpack.c.l.b16 %v667
  %v2897 = vunpack.c.h.b16 %v667
  %v2898 = vunpack.c.l.b16 %v668
  %v2899 = vunpack.c.h.b16 %v668
  %v2900 = vunpack.c.l.b16 %v669
  %v2901 = vunpack.c.h.b16 %v669
  %v2902 = vunpack.c.l.b16 %v670
  %v2903 = vunpack.c.h.b16 %v670
  %v2904 = vunpack.c.l.b16 %v671
  %v2905 = vunpack.c.h.b16 %v671
  %v2906 = vunpack.c.l.b16 %v672
  %v2907 = vunpack.c.h.b16 %v672
  %v2908 = vunpack.c.l.b16 %v673
  %v2909 = vunpack.c.h.b16 %v673
  %v2910 = vunpack.c.l.b16 %v674
  %v2911 = vunpack.c.h.b16 %v674
  %v2912 = vunpack.c.l.b16 %v675
  %v2913 = vunpack.c.h.b16 %v675
  %v2914 = vunpack.c.l.b16 %v676
  %v2915 = vunpack.c.h.b16 %v676
  %v2916 = vunpack.c.l.b16 %v677
  %v2917 = vunpack.c.h.b16 %v677
  %v2918 = vunpack.c.l.b16 %v678
  %v2919 = vunpack.c.h.b16 %v678
  %v2920 = vunpack.c.l.b16 %v679
  %v2921 = vunpack.c.h.b16 %v679
  %v2922 = vunpack.c.l.b16 %v680
  %v2923 = vunpack.c.h.b16 %v680
  %v2924 = vunpack.c.l.b16 %v681
  %v2925 = vunpack.c.h.b16 %v681
  %v2926 = vunpack.c.l.b16 %v682
  %v2927 = vunpack.c.h.b16 %v682
  %v2928 = vunpack.c.l.b16 %v683
  %v2929 = vunpack.c.h.b16 %v683
  %v2930 = vunpack.c.l.b16 %v684
  %v2931 = vunpack.c.h.b16 %v684
  %v2932 = vunpack.c.l.b16 %v685
  %v2933 = vunpack.c.h.b16 %v685
  %v2934 = vunpack.c.l.b16 %v686
  %v2935 = vunpack.c.h.b16 %v686
  %v2936 = vunpack.c.l.b16 %v687
  %v2937 = vunpack.c.h.b16 %v687
  %v2938 = vunpack.c.l.b16 %v688
  %v2939 = vunpack.c.h.b16 %v688
  %v2940 = vunpack.c.l.b16 %v689
  %v2941 = vunpack.c.h.b16 %v689
  %v2942 = vunpack.c.l.b16 %v690
  %v2943 = vunpack.c.h.b16 %v690
  %v2944 = vunpack.c.l.b16 %v691
  %v2945 = vunpack.c.h.b16 %v691
  %v2946 = vunpack.c.l.b16 %v692
  %v2947 = vunpack.c.h.b16 %v692
  %v2948 = vunpack.c.l.b16 %v693
  %v2949 = vunpack.c.h.b16 %v693
  %v2950 = vunpack.c.l.b16 %v694
  %v2951 = vunpack.c.h.b16 %v694
  %v2952 = vunpack.c.l.b16 %v695
  %v2953 = vunpack.c.h.b16 %v695
  %v2954 = vunpack.c.l.b16 %v696
  %v2955 = vunpack.c.h.b16 %v696
  %v2956 = vunpack.c.l.b16 %v697
  %v2957 = vunpack.c.h.b16 %v697
  %v2958 = vunpack.c.l.b16 %v698
  %v2959 = vunpack.c.h.b16 %v698
  %v2960 = vunpack.c.l.b16 %v699
  %v2961 = vunpack.c.h.b16 %v699
  %v2962 = vunpack.c.l.b16 %v700
  %v2963 = vunpack.c.h.b16 %v700
  %v2964 = vunpack.c.l.b16 %v701
  %v2965 = vunpack.c.h.b16 %v701
  %v2966 = vunpack.c.l.b16 %v702
  %v2967 = vunpack.c.h.b16 %v702
  %v2968 = vunpack.c.l.b16 %v703
  %v2969 = vunpack.c.h.b16 %v703
  %v2970 = vunpack.c.l.b16 %v704
  %v2971 = vunpack.c.h.b16 %v704
  %v2972 = vunpack.c.l.b16 %v705
  %v2973 = vunpack.c.h.b16 %v705
  %v2974 = vunpack.c.l.b16 %v706
  %v2975 = vunpack.c.h.b16 %v706
  %v2976 = vunpack.c.l.b16 %v707
  %v2977 = vunpack.c.h.b16 %v707
  %v2978 = vunpack.c.l.b16 %v708
  %v2979 = vunpack.c.h.b16 %v708
  %v2980 = vunpack.c.l.b16 %v709
  %v2981 = vunpack.c.h.b16 %v709
  %v2982 = vunpack.c.l.b16 %v710
  %v2983 = vunpack.c.h.b16 %v710
  %v2984 = vunpack.c.l.b16 %v711
  %v2985 = vunpack.c.h.b16 %v711
  %v2986 = vunpack.c.l.b16 %v712
  %v2987 = vunpack.c.h.b16 %v712
  %v2988 = vunpack.c.l.b16 %v713
  %v2989 = vunpack.c.h.b16 %v713
  %v2990 = vunpack.c.l.b16 %v714
  %v2991 = vunpack.c.h.b16 %v714
  %v2992 = vunpack.c.l.b16 %v715
  %v2993 = vunpack.c.h.b16 %v715
  %v2994 = vunpack.c.l.b16 %v716
  %v2995 = vunpack.c.h.b16 %v716
  %v2996 = vunpack.c.l.b16 %v717
  %v2997 = vunpack.c.h.b16 %v717
  %v2998 = vunpack.c.l.b16 %v718
  %v2999 = vunpack.c.h.b16 %v718
  %v3000 = vunpack.c.l.b16 %v719
  %v3001 = vunpack.c.h.b16 %v719
  %v3002 = vunpack.c.l.b16 %v720
  %v3003 = vunpack.c.h.b16 %v720
  %v3004 = vunpack.c.l.b16 %v721
  %v3005 = vunpack.c.h.b16 %v721
  %v3006 = vunpack.c.l.b16 %v722
  %v3007 = vunpack.c.h.b16 %v722
  %v3008 = vunpack.c.l.b16 %v723
  %v3009 = vunpack.c.h.b16 %v723
  %v3010 = vunpack.c.l.b16 %v724
  %v3011 = vunpack.c.h.b16 %v724
  %v3012 = vunpack.c.l.b16 %v725
  %v3013 = vunpack.c.h.b16 %v725
  %v3014 = vunpack.c.l.b16 %v726
  %v3015 = vunpack.c.h.b16 %v726
  %v3016 = vunpack.c.l.b16 %v727
  %v3017 = vunpack.c.h.b16 %v727
  %v3018 = vunpack.c.l.b16 %v728
  %v3019 = vunpack.c.h.b16 %v728
  %v3020 = vunpack.c.l.b16 %v729
  %v3021 = vunpack.c.h.b16 %v729
  %v3022 = vunpack.c.l.b16 %v730
  %v3023 = vunpack.c.h.b16 %v730
  %v3024 = vunpack.c.l.b16 %v731
  %v3025 = vunpack.c.h.b16 %v731
  %v3026 = vunpack.c.l.b16 %v732
  %v3027 = vunpack.c.h.b16 %v732
  %v3028 = vunpack.c.l.b16 %v733
  %v3029 = vunpack.c.h.b16 %v733
  %v3030 = vunpack.c.l.b16 %v734
  %v3031 = vunpack.c.h.b16 %v734
  %v3032 = vunpack.c.l.b16 %v735
  %v3033 = vunpack.c.h.b16 %v735
  %v3034 = vunpack.c.l.b16 %v736
  %v3035 = vunpack.c.h.b16 %v736
  %v3036 = vunpack.c.l.b16 %v737
  %v3037 = vunpack.c.h.b16 %v737
  %v3038 = vunpack.c.l.b16 %v738
  %v3039 = vunpack.c.h.b16 %v738
  %v3040 = vunpack.c.l.b16 %v739
  %v3041 = vunpack.c.h.b16 %v739
  %v3042 = vunpack.c.l.b16 %v740
  %v3043 = vunpack.c.h.b16 %v740
  %v3044 = vunpack.c.l.b16 %v741
  %v3045 = vunpack.c.h.b16 %v741
  %v3046 = vunpack.c.l.b16 %v742
  %v3047 = vunpack.c.h.b16 %v742
  %v3048 = vunpack.c.l.b16 %v743
  %v3049 = vunpack.c.h.b16 %v743
  %v3050 = vunpack.c.l.b16 %v744
  %v3051 = vunpack.c.h.b16 %v744
  %v3052 = vunpack.c.l.b16 %v745
  %v3053 = vunpack.c.h.b16 %v745
  %v3054 = vunpack.c.l.b16 %v746
  %v3055 = vunpack.c.h.b16 %v746
  %v3056 = vunpack.c.l.b16 %v747
  %v3057 = vunpack.c.h.b16 %v747
  %v3058 = vunpack.c.l.b16 %v748
  %v3059 = vunpack.c.h.b16 %v748
  %v3060 = vunpack.c.l.b16 %v749
  %v3061 = vunpack.c.h.b16 %v749
  %v3062 = vunpack.c.l.b16 %v750
  %v3063 = vunpack.c.h.b16 %v750
  %v3064 = vunpack.c.l.b16 %v751
  %v3065 = vunpack.c.h.b16 %v751
  %v3066 = vunpack.c.l.b16 %v752
  %v3067 = vunpack.c.h.b16 %v752
  %v3068 = vunpack.c.l.b16 %v753
  %v3069 = vunpack.c.h.b16 %v753
  %v3070 = vunpack.c.l.b16 %v754
  %v3071 = vunpack.c.h.b16 %v754
  %v3072 = vunpack.c.l.b16 %v755
  %v3073 = vunpack.c.h.b16 %v755
  %v3074 = vunpack.c.l.b16 %v756
  %v3075 = vunpack.c.h.b16 %v756
  %v3076 = vunpack.c.l.b16 %v757
  %v3077 = vunpack.c.h.b16 %v757
  %v3078 = vunpack.c.l.b16 %v758
  %v3079 = vunpack.c.h.b16 %v758
  %v3080 = vunpack.c.l.b16 %v759
  %v3081 = vunpack.c.h.b16 %v759
  %v3082 = vunpack.c.l.b16 %v760
  %v3083 = vunpack.c.h.b16 %v760
  %v3084 = vunpack.c.l.b16 %v761
  %v3085 = vunpack.c.h.b16 %v761
  %v3086 = vunpack.c.l.b16 %v762
  %v3087 = vunpack.c.h.b16 %v762
  %v3088 = vunpack.c.l.b16 %v763
  %v3089 = vunpack.c.h.b16 %v763
  %v3090 = vunpack.c.l.b16 %v764
  %v3091 = vunpack.c.h.b16 %v764
  %v3092 = vunpack.c.l.b16 %v765
  %v3093 = vunpack.c.h.b16 %v765
  %v3094 = vunpack.c.l.b16 %v766
  %v3095 = vunpack.c.h.b16 %v766
  %v3096 = vunpack.c.l.b16 %v767
  %v3097 = vunpack.c.h.b16 %v767
  %v3098 = vunpack.c.l.b16 %v768
  %v3099 = vunpack.c.h.b16 %v768
  %v3100 = vunpack.c.l.b16 %v769
  %v3101 = vunpack.c.h.b16 %v769
  %v3102 = vunpack.c.l.b16 %v770
  %v3103 = vunpack.c.h.b16 %v770
  %v3104 = vunpack.c.l.b16 %v771
  %v3105 = vunpack.c.h.b16 %v771
  %v3106 = vunpack.c.l.b16 %v772
  %v3107 = vunpack.c.h.b16 %v772
  %v3108 = vunpack.c.l.b16 %v773
  %v3109 = vunpack.c.h.b16 %v773
  %v3110 = vunpack.c.l.b16 %v774
  %v3111 = vunpack.c.h.b16 %v774
  %v3112 = vunpack.c.l.b16 %v775
  %v3113 = vunpack.c.h.b16 %v775
  %v3114 = vunpack.c.l.b16 %v776
  %v3115 = vunpack.c.h.b16 %v776
  %v3116 = vunpack.c.l.b16 %v777
  %v3117 = vunpack.c.h.b16 %v777
  %v3118 = vunpack.c.l.b16 %v778
  %v3119 = vunpack.c.h.b16 %v778
  %v3120 = vunpack.c.l.b16 %v779
  %v3121 = vunpack.c.h.b16 %v779
  %v3122 = vunpack.c.l.b16 %v780
  %v3123 = vunpack.c.h.b16 %v780
  %v3124 = vunpack.c.l.b16 %v781
  %v3125 = vunpack.c.h.b16 %v781
  %v3126 = vunpack.c.l.b16 %v782
  %v3127 = vunpack.c.h.b16 %v782
  %v3128 = vunpack.c.l.b16 %v783
  %v3129 = vunpack.c.h.b16 %v783
  %v3130 = vunpack.c.l.b16 %v784
  %v3131 = vunpack.c.h.b16 %v784
  %v3132 = vunpack.c.l.b16 %v785
  %v3133 = vunpack.c.h.b16 %v785
  %v3134 = vunpack.c.l.b16 %v786
  %v3135 = vunpack.c.h.b16 %v786
  %v3136 = vunpack.c.l.b16 %v787
  %v3137 = vunpack.c.h.b16 %v787
  %v3138 = vunpack.c.l.b16 %v788
  %v3139 = vunpack.c.h.b16 %v788
  %v3140 = vunpack.c.l.b16 %v789
  %v3141 = vunpack.c.h.b16 %v789
  %v3142 = vunpack.c.l.b16 %v790
  %v3143 = vunpack.c.h.b16 %v790
  %v3144 = vunpack.c.l.b16 %v791
  %v3145 = vunpack.c.h.b16 %v791
  %v3146 = vunpack.c.l.b16 %v792
  %v3147 = vunpack.c.h.b16 %v792
  %v3148 = vunpack.c.l.b16 %v793
  %v3149 = vunpack.c.h.b16 %v793
  %v3150 = vunpack.c.l.b16 %v794
  %v3151 = vunpack.c.h.b16 %v794
  %v3152 = vunpack.c.l.b16 %v795
  %v3153 = vunpack.c.h.b16 %v795
  %v3154 = vunpack.c.l.b16 %v796
  %v3155 = vunpack.c.h.b16 %v796
  %v3156 = vunpack.c.l.b16 %v797
  %v3157 = vunpack.c.h.b16 %v797
  %v3158 = vunpack.c.l.b16 %v798
  %v3159 = vunpack.c.h.b16 %v798
  %v3160 = vpack.c.b16 %v1640, %v1624
  %v3161 = vpack.c.b16 %v1641, %v1625
  %v3162 = vpack.c.b16 %v1642, %v1626
  %v3163 = vpack.c.b16 %v1643, %v1627
  %v3164 = vpack.c.b16 %v1644, %v1628
  %v3165 = vpack.c.b16 %v1645, %v1629
  %v3166 = vpack.c.b16 %v1646, %v1630
  %v3167 = vpack.c.b16 %v1647, %v1631
  %v3168 = vpack.c.b16 %v1648, %v1632
  %v3169 = vpack.c.b16 %v1649, %v1633
  %v3170 = vpack.c.b16 %v1650, %v1634
  %v3171 = vpack.c.b16 %v1651, %v1635
  %v3172 = vpack.c.b16 %v1652, %v1636
  %v3173 = vpack.c.b16 %v1653, %v1637
  %v3174 = vpack.c.b16 %v1654, %v1638
  %v3175 = vpack.c.b16 %v1655, %v1639
  %v3176 = vpack.c.b16 %v1672, %v1656
  %v3177 = vpack.c.b16 %v1673, %v1657
  %v3178 = vpack.c.b16 %v1674, %v1658
  %v3179 = vpack.c.b16 %v1675, %v1659
  %v3180 = vpack.c.b16 %v1676, %v1660
  %v3181 = vpack.c.b16 %v1677, %v1661
  %v3182 = vpack.c.b16 %v1678, %v1662
  %v3183 = vpack.c.b16 %v1679, %v1663
  %v3184 = vpack.c.b16 %v1680, %v1664
  %v3185 = vpack.c.b16 %v1681, %v1665
  %v3186 = vpack.c.b16 %v1682, %v1666
  %v3187 = vpack.c.b16 %v1683, %v1667
  %v3188 = vpack.c.b16 %v1684, %v1668
  %v3189 = vpack.c.b16 %v1685, %v1669
  %v3190 = vpack.c.b16 %v1686, %v1670
  %v3191 = vpack.c.b16 %v1687, %v1671
  %v3192 = vpack.c.b16 %v1704, %v1688
  %v3193 = vpack.c.b16 %v1705, %v1689
  %v3194 = vpack.c.b16 %v1706, %v1690
  %v3195 = vpack.c.b16 %v1707, %v1691
  %v3196 = vpack.c.b16 %v1708, %v1692
  %v3197 = vpack.c.b16 %v1709, %v1693
  %v3198 = vpack.c.b16 %v1710, %v1694
  %v3199 = vpack.c.b16 %v1711, %v1695
  %v3200 = vpack.c.b16 %v1712, %v1696
  %v3201 = vpack.c.b16 %v1713, %v1697
  %v3202 = vpack.c.b16 %v1714, %v1698
  %v3203 = vpack.c.b16 %v1715, %v1699
  %v3204 = vpack.c.b16 %v1716, %v1700
  %v3205 = vpack.c.b16 %v1717, %v1701
  %v3206 = vpack.c.b16 %v1718, %v1702
  %v3207 = vpack.c.b16 %v1719, %v1703
  %v3208 = vpack.c.b16 %v1736, %v1720
  %v3209 = vpack.c.b16 %v1737, %v1721
  %v3210 = vpack.c.b16 %v1738, %v1722
  %v3211 = vpack.c.b16 %v1739, %v1723
  %v3212 = vpack.c.b16 %v1740, %v1724
  %v3213 = vpack.c.b16 %v1741, %v1725
  %v3214 = vpack.c.b16 %v1742, %v1726
  %v3215 = vpack.c.b16 %v1743, %v1727
  %v3216 = vpack.c.b16 %v1744, %v1728
  %v3217 = vpack.c.b16 %v1745, %v1729
  %v3218 = vpack.c.b16 %v1746, %v1730
  %v3219 = vpack.c.b16 %v1747, %v1731
  %v3220 = vpack.c.b16 %v1748, %v1732
  %v3221 = vpack.c.b16 %v1749, %v1733
  %v3222 = vpack.c.b16 %v1750, %v1734
  %v3223 = vpack.c.b16 %v1751, %v1735
  %v3224 = vpack.c.b16 %v1768, %v1752
  %v3225 = vpack.c.b16 %v1769, %v1753
  %v3226 = vpack.c.b16 %v1770, %v1754
  %v3227 = vpack.c.b16 %v1771, %v1755
  %v3228 = vpack.c.b16 %v1772, %v1756
  %v3229 = vpack.c.b16 %v1773, %v1757
  %v3230 = vpack.c.b16 %v1774, %v1758
  %v3231 = vpack.c.b16 %v1775, %v1759
  %v3232 = vpack.c.b16 %v1776, %v1760
  %v3233 = vpack.c.b16 %v1777, %v1761
  %v3234 = vpack.c.b16 %v1778, %v1762
  %v3235 = vpack.c.b16 %v1779, %v1763
  %v3236 = vpack.c.b16 %v1780, %v1764
  %v3237 = vpack.c.b16 %v1781, %v1765
  %v3238 = vpack.c.b16 %v1782, %v1766
  %v3239 = vpack.c.b16 %v1783, %v1767
  %v3240 = vpack.c.b16 %v1800, %v1784
  %v3241 = vpack.c.b16 %v1801, %v1785
  %v3242 = vpack.c.b16 %v1802, %v1786
  %v3243 = vpack.c.b16 %v1803, %v1787
  %v3244 = vpack.c.b16 %v1804, %v1788
  %v3245 = vpack.c.b16 %v1805, %v1789
  %v3246 = vpack.c.b16 %v1806, %v1790
  %v3247 = vpack.c.b16 %v1807, %v1791
  %v3248 = vpack.c.b16 %v1808, %v1792
  %v3249 = vpack.c.b16 %v1809, %v1793
  %v3250 = vpack.c.b16 %v1810, %v1794
  %v3251 = vpack.c.b16 %v1811, %v1795
  %v3252 = vpack.c.b16 %v1812, %v1796
  %v3253 = vpack.c.b16 %v1813, %v1797
  %v3254 = vpack.c.b16 %v1814, %v1798
  %v3255 = vpack.c.b16 %v1815, %v1799
  %v3256 = vpack.c.b16 %v1832, %v1816
  %v3257 = vpack.c.b16 %v1833, %v1817
  %v3258 = vpack.c.b16 %v1834, %v1818
  %v3259 = vpack.c.b16 %v1835, %v1819
  %v3260 = vpack.c.b16 %v1836, %v1820
  %v3261 = vpack.c.b16 %v1837, %v1821
  %v3262 = vpack.c.b16 %v1838, %v1822
  %v3263 = vpack.c.b16 %v1839, %v1823
  %v3264 = vpack.c.b16 %v1840, %v1824
  %v3265 = vpack.c.b16 %v1841, %v1825
  %v3266 = vpack.c.b16 %v1842, %v1826
  %v3267 = vpack.c.b16 %v1843, %v1827
  %v3268 = vpack.c.b16 %v1844, %v1828
  %v3269 = vpack.c.b16 %v1845, %v1829
  %v3270 = vpack.c.b16 %v1846, %v1830
  %v3271 = vpack.c.b16 %v1847, %v1831
  %v3272 = vpack.c.b16 %v1864, %v1848
  %v3273 = vpack.c.b16 %v1865, %v1849
  %v3274 = vpack.c.b16 %v1866, %v1850
  %v3275 = vpack.c.b16 %v1867, %v1851
  %v3276 = vpack.c.b16 %v1868, %v1852
  %v3277 = vpack.c.b16 %v1869, %v1853
  %v3278 = vpack.c.b16 %v1870, %v1854
  %v3279 = vpack.c.b16 %v1871, %v1855
  %v3280 = vpack.c.b16 %v1872, %v1856
  %v3281 = vpack.c.b16 %v1873, %v1857
  %v3282 = vpack.c.b16 %v1874, %v1858
  %v3283 = vpack.c.b16 %v1875, %v1859
  %v3284 = vpack.c.b16 %v1876, %v1860
  %v3285 = vpack.c.b16 %v1877, %v1861
  %v3286 = vpack.c.b16 %v1878, %v1862
  %v3287 = vpack.c.b16 %v1879, %v1863
  %v3288 = vpack.c.b16 %v1896, %v1880
  %v3289 = vpack.c.b16 %v1897, %v1881
  %v3290 = vpack.c.b16 %v1898, %v1882
  %v3291 = vpack.c.b16 %v1899, %v1883
  %v3292 = vpack.c.b16 %v1900, %v1884
  %v3293 = vpack.c.b16 %v1901, %v1885
  %v3294 = vpack.c.b16 %v1902, %v1886
  %v3295 = vpack.c.b16 %v1903, %v1887
  %v3296 = vpack.c.b16 %v1904, %v1888
  %v3297 = vpack.c.b16 %v1905, %v1889
  %v3298 = vpack.c.b16 %v1906, %v1890
  %v3299 = vpack.c.b16 %v1907, %v1891
  %v3300 = vpack.c.b16 %v1908, %v1892
  %v3301 = vpack.c.b16 %v1909, %v1893
  %v3302 = vpack.c.b16 %v1910, %v1894
  %v3303 = vpack.c.b16 %v1911, %v1895
  %v3304 = vpack.c.b16 %v1928, %v1912
  %v3305 = vpack.c.b16 %v1929, %v1913
  %v3306 = vpack.c.b16 %v1930, %v1914
  %v3307 = vpack.c.b16 %v1931, %v1915
  %v3308 = vpack.c.b16 %v1932, %v1916
  %v3309 = vpack.c.b16 %v1933, %v1917
  %v3310 = vpack.c.b16 %v1934, %v1918
  %v3311 = vpack.c.b16 %v1935, %v1919
  %v3312 = vpack.c.b16 %v1936, %v1920
  %v3313 = vpack.c.b16 %v1937, %v1921
  %v3314 = vpack.c.b16 %v1938, %v1922
  %v3315 = vpack.c.b16 %v1939, %v1923
  %v3316 = vpack.c.b16 %v1940, %v1924
  %v3317 = vpack.c.b16 %v1941, %v1925
  %v3318 = vpack.c.b16 %v1942, %v1926
  %v3319 = vpack.c.b16 %v1943, %v1927
  %v3320 = vpack.c.b16 %v1960, %v1944
  %v3321 = vpack.c.b16 %v1961, %v1945
  %v3322 = vpack.c.b16 %v1962, %v1946
  %v3323 = vpack.c.b16 %v1963, %v1947
  %v3324 = vpack.c.b16 %v1964, %v1948
  %v3325 = vpack.c.b16 %v1965, %v1949
  %v3326 = vpack.c.b16 %v1966, %v1950
  %v3327 = vpack.c.b16 %v1967, %v1951
  %v3328 = vpack.c.b16 %v1968, %v1952
  %v3329 = vpack.c.b16 %v1969, %v1953
  %v3330 = vpack.c.b16 %v1970, %v1954
  %v3331 = vpack.c.b16 %v1971, %v1955
  %v3332 = vpack.c.b16 %v1972, %v1956
  %v3333 = vpack.c.b16 %v1973, %v1957
  %v3334 = vpack.c.b16 %v1974, %v1958
  %v3335 = vpack.c.b16 %v1975, %v1959
  %v3336 = vpack.c.b16 %v1992, %v1976
  %v3337 = vpack.c.b16 %v1993, %v1977
  %v3338 = vpack.c.b16 %v1994, %v1978
  %v3339 = vpack.c.b16 %v1995, %v1979
  %v3340 = vpack.c.b16 %v1996, %v1980
  %v3341 = vpack.c.b16 %v1997, %v1981
  %v3342 = vpack.c.b16 %v1998, %v1982
  %v3343 = vpack.c.b16 %v1999, %v1983
  %v3344 = vpack.c.b16 %v2000, %v1984
  %v3345 = vpack.c.b16 %v2001, %v1985
  %v3346 = vpack.c.b16 %v2002, %v1986
  %v3347 = vpack.c.b16 %v2003, %v1987
  %v3348 = vpack.c.b16 %v2004, %v1988
  %v3349 = vpack.c.b16 %v2005, %v1989
  %v3350 = vpack.c.b16 %v2006, %v1990
  %v3351 = vpack.c.b16 %v2007, %v1991
  %v3352 = vpack.c.b16 %v2024, %v2008
  %v3353 = vpack.c.b16 %v2025, %v2009
  %v3354 = vpack.c.b16 %v2026, %v2010
  %v3355 = vpack.c.b16 %v2027, %v2011
  %v3356 = vpack.c.b16 %v2028, %v2012
  %v3357 = vpack.c.b16 %v2029, %v2013
  %v3358 = vpack.c.b16 %v2030, %v2014
  %v3359 = vpack.c.b16 %v2031, %v2015
  %v3360 = vpack.c.b16 %v2032, %v2016
  %v3361 = vpack.c.b16 %v2033, %v2017
  %v3362 = vpack.c.b16 %v2034, %v2018
  %v3363 = vpack.c.b16 %v2035, %v2019
  %v3364 = vpack.c.b16 %v2036, %v2020
  %v3365 = vpack.c.b16 %v2037, %v2021
  %v3366 = vpack.c.b16 %v2038, %v2022
  %v3367 = vpack.c.b16 %v2039, %v2023
  %v3368 = vpack.c.b16 %v2056, %v2040
  %v3369 = vpack.c.b16 %v2057, %v2041
  %v3370 = vpack.c.b16 %v2058, %v2042
  %v3371 = vpack.c.b16 %v2059, %v2043
  %v3372 = vpack.c.b16 %v2060, %v2044
  %v3373 = vpack.c.b16 %v2061, %v2045
  %v3374 = vpack.c.b16 %v2062, %v2046
  %v3375 = vpack.c.b16 %v2063, %v2047
  %v3376 = vpack.c.b16 %v2064, %v2048
  %v3377 = vpack.c.b16 %v2065, %v2049
  %v3378 = vpack.c.b16 %v2066, %v2050
  %v3379 = vpack.c.b16 %v2067, %v2051
  %v3380 = vpack.c.b16 %v2068, %v2052
  %v3381 = vpack.c.b16 %v2069, %v2053
  %v3382 = vpack.c.b16 %v2070, %v2054
  %v3383 = vpack.c.b16 %v2071, %v2055
  %v3384 = vpack.c.b16 %v2088, %v2072
  %v3385 = vpack.c.b16 %v2089, %v2073
  %v3386 = vpack.c.b16 %v2090, %v2074
  %v3387 = vpack.c.b16 %v2091, %v2075
  %v3388 = vpack.c.b16 %v2092, %v2076
  %v3389 = vpack.c.b16 %v2093, %v2077
  %v3390 = vpack.c.b16 %v2094, %v2078
  %v3391 = vpack.c.b16 %v2095, %v2079
  %v3392 = vpack.c.b16 %v2096, %v2080
  %v3393 = vpack.c.b16 %v2097, %v2081
  %v3394 = vpack.c.b16 %v2098, %v2082
  %v3395 = vpack.c.b16 %v2099, %v2083
  %v3396 = vpack.c.b16 %v2100, %v2084
  %v3397 = vpack.c.b16 %v2101, %v2085
  %v3398 = vpack.c.b16 %v2102, %v2086
  %v3399 = vpack.c.b16 %v2103, %v2087
  %v3400 = vpack.c.b16 %v2120, %v2104
  %v3401 = vpack.c.b16 %v2121, %v2105
  %v3402 = vpack.c.b16 %v2122, %v2106
  %v3403 = vpack.c.b16 %v2123, %v2107
  %v3404 = vpack.c.b16 %v2124, %v2108
  %v3405 = vpack.c.b16 %v2125, %v2109
  %v3406 = vpack.c.b16 %v2126, %v2110
  %v3407 = vpack.c.b16 %v2127, %v2111
  %v3408 = vpack.c.b16 %v2128, %v2112
  %v3409 = vpack.c.b16 %v2129, %v2113
  %v3410 = vpack.c.b16 %v2130, %v2114
  %v3411 = vpack.c.b16 %v2131, %v2115
  %v3412 = vpack.c.b16 %v2132, %v2116
  %v3413 = vpack.c.b16 %v2133, %v2117
  %v3414 = vpack.c.b16 %v2134, %v2118
  %v3415 = vpack.c.b16 %v2135, %v2119
  %v3416 = vpack.c.b16 %v2152, %v2136
  %v3417 = vpack.c.b16 %v2153, %v2137
  %v3418 = vpack.c.b16 %v2154, %v2138
  %v3419 = vpack.c.b16 %v2155, %v2139
  %v3420 = vpack.c.b16 %v2156, %v2140
  %v3421 = vpack.c.b16 %v2157, %v2141
  %v3422 = vpack.c.b16 %v2158, %v2142
  %v3423 = vpack.c.b16 %v2159, %v2143
  %v3424 = vpack.c.b16 %v2160, %v2144
  %v3425 = vpack.c.b16 %v2161, %v2145
  %v3426 = vpack.c.b16 %v2162, %v2146
  %v3427 = vpack.c.b16 %v2163, %v2147
  %v3428 = vpack.c.b16 %v2164, %v2148
  %v3429 = vpack.c.b16 %v2165, %v2149
  %v3430 = vpack.c.b16 %v2166, %v2150
  %v3431 = vpack.c.b16 %v2167, %v2151
  %v3432 = vpack.c.b16 %v2184, %v2168
  %v3433 = vpack.c.b16 %v2185, %v2169
  %v3434 = vpack.c.b16 %v2186, %v2170
  %v3435 = vpack.c.b16 %v2187, %v2171
  %v3436 = vpack.c.b16 %v2188, %v2172
  %v3437 = vpack.c.b16 %v2189, %v2173
  %v3438 = vpack.c.b16 %v2190, %v2174
  %v3439 = vpack.c.b16 %v2191, %v2175
  %v3440 = vpack.c.b16 %v2192, %v2176
  %v3441 = vpack.c.b16 %v2193, %v2177
  %v3442 = vpack.c.b16 %v2194, %v2178
  %v3443 = vpack.c.b16 %v2195, %v2179
  %v3444 = vpack.c.b16 %v2196, %v2180
  %v3445 = vpack.c.b16 %v2197, %v2181
  %v3446 = vpack.c.b16 %v2198, %v2182
  %v3447 = vpack.c.b16 %v2199, %v2183
  %v3448 = vpack.c.b16 %v2216, %v2200
  %v3449 = vpack.c.b16 %v2217, %v2201
  %v3450 = vpack.c.b16 %v2218, %v2202
  %v3451 = vpack.c.b16 %v2219, %v2203
  %v3452 = vpack.c.b16 %v2220, %v2204
  %v3453 = vpack.c.b16 %v2221, %v2205
  %v3454 = vpack.c.b16 %v2222, %v2206
  %v3455 = vpack.c.b16 %v2223, %v2207
  %v3456 = vpack.c.b16 %v2224, %v2208
  %v3457 = vpack.c.b16 %v2225, %v2209
  %v3458 = vpack.c.b16 %v2226, %v2210
  %v3459 = vpack.c.b16 %v2227, %v2211
  %v3460 = vpack.c.b16 %v2228, %v2212
  %v3461 = vpack.c.b16 %v2229, %v2213
  %v3462 = vpack.c.b16 %v2230, %v2214
  %v3463 = vpack.c.b16 %v2231, %v2215
  %v3464 = vpack.c.b16 %v2248, %v2232
  %v3465 = vpack.c.b16 %v2249, %v2233
  %v3466 = vpack.c.b16 %v2250, %v2234
  %v3467 = vpack.c.b16 %v2251, %v2235
  %v3468 = vpack.c.b16 %v2252, %v2236
  %v3469 = vpack.c.b16 %v2253, %v2237
  %v3470 = vpack.c.b16 %v2254, %v2238
  %v3471 = vpack.c.b16 %v2255, %v2239
  %v3472 = vpack.c.b16 %v2256, %v2240
  %v3473 = vpack.c.b16 %v2257, %v2241
  %v3474 = vpack.c.b16 %v2258, %v2242
  %v3475 = vpack.c.b16 %v2259, %v2243
  %v3476 = vpack.c.b16 %v2260, %v2244
  %v3477 = vpack.c.b16 %v2261, %v2245
  %v3478 = vpack.c.b16 %v2262, %v2246
  %v3479 = vpack.c.b16 %v2263, %v2247
  %v3480 = vpack.c.b16 %v2280, %v2264
  %v3481 = vpack.c.b16 %v2281, %v2265
  %v3482 = vpack.c.b16 %v2282, %v2266
  %v3483 = vpack.c.b16 %v2283, %v2267
  %v3484 = vpack.c.b16 %v2284, %v2268
  %v3485 = vpack.c.b16 %v2285, %v2269
  %v3486 = vpack.c.b16 %v2286, %v2270
  %v3487 = vpack.c.b16 %v2287, %v2271
  %v3488 = vpack.c.b16 %v2288, %v2272
  %v3489 = vpack.c.b16 %v2289, %v2273
  %v3490 = vpack.c.b16 %v2290, %v2274
  %v3491 = vpack.c.b16 %v2291, %v2275
  %v3492 = vpack.c.b16 %v2292, %v2276
  %v3493 = vpack.c.b16 %v2293, %v2277
  %v3494 = vpack.c.b16 %v2294, %v2278
  %v3495 = vpack.c.b16 %v2295, %v2279
  %v3496 = vpack.c.b16 %v2312, %v2296
  %v3497 = vpack.c.b16 %v2313, %v2297
  %v3498 = vpack.c.b16 %v2314, %v2298
  %v3499 = vpack.c.b16 %v2315, %v2299
  %v3500 = vpack.c.b16 %v2316, %v2300
  %v3501 = vpack.c.b16 %v2317, %v2301
  %v3502 = vpack.c.b16 %v2318, %v2302
  %v3503 = vpack.c.b16 %v2319, %v2303
  %v3504 = vpack.c.b16 %v2320, %v2304
  %v3505 = vpack.c.b16 %v2321, %v2305
  %v3506 = vpack.c.b16 %v2322, %v2306
  %v3507 = vpack.c.b16 %v2323, %v2307
  %v3508 = vpack.c.b16 %v2324, %v2308
  %v3509 = vpack.c.b16 %v2325, %v2309
  %v3510 = vpack.c.b16 %v2326, %v2310
  %v3511 = vpack.c.b16 %v2327, %v2311
  %v3512 = vpack.c.b16 %v2344, %v2328
  %v3513 = vpack.c.b16 %v2345, %v2329
  %v3514 = vpack.c.b16 %v2346, %v2330
  %v3515 = vpack.c.b16 %v2347, %v2331
  %v3516 = vpack.c.b16 %v2348, %v2332
  %v3517 = vpack.c.b16 %v2349, %v2333
  %v3518 = vpack.c.b16 %v2350, %v2334
  %v3519 = vpack.c.b16 %v2351, %v2335
  %v3520 = vpack.c.b16 %v2352, %v2336
  %v3521 = vpack.c.b16 %v2353, %v2337
  %v3522 = vpack.c.b16 %v2354, %v2338
  %v3523 = vpack.c.b16 %v2355, %v2339
  %v3524 = vpack.c.b16 %v2356, %v2340
  %v3525 = vpack.c.b16 %v2357, %v2341
  %v3526 = vpack.c.b16 %v2358, %v2342
  %v3527 = vpack.c.b16 %v2359, %v2343
  %v3528 = vpack.c.b16 %v2376, %v2360
  %v3529 = vpack.c.b16 %v2377, %v2361
  %v3530 = vpack.c.b16 %v2378, %v2362
  %v3531 = vpack.c.b16 %v2379, %v2363
  %v3532 = vpack.c.b16 %v2380, %v2364
  %v3533 = vpack.c.b16 %v2381, %v2365
  %v3534 = vpack.c.b16 %v2382, %v2366
  %v3535 = vpack.c.b16 %v2383, %v2367
  %v3536 = vpack.c.b16 %v2384, %v2368
  %v3537 = vpack.c.b16 %v2385, %v2369
  %v3538 = vpack.c.b16 %v2386, %v2370
  %v3539 = vpack.c.b16 %v2387, %v2371
  %v3540 = vpack.c.b16 %v2388, %v2372
  %v3541 = vpack.c.b16 %v2389, %v2373
  %v3542 = vpack.c.b16 %v2390, %v2374
  %v3543 = vpack.c.b16 %v2391, %v2375
  %v3544 = vpack.c.b16 %v2408, %v2392
  %v3545 = vpack.c.b16 %v2409, %v2393
  %v3546 = vpack.c.b16 %v2410, %v2394
  %v3547 = vpack.c.b16 %v2411, %v2395
  %v3548 = vpack.c.b16 %v2412, %v2396
  %v3549 = vpack.c.b16 %v2413, %v2397
  %v3550 = vpack.c.b16 %v2414, %v2398
  %v3551 = vpack.c.b16 %v2415, %v2399
  %v3552 = vpack.c.b16 %v2416, %v2400
  %v3553 = vpack.c.b16 %v2417, %v2401
  %v3554 = vpack.c.b16 %v2418, %v2402
  %v3555 = vpack.c.b16 %v2419, %v2403
  %v3556 = vpack.c.b16 %v2420, %v2404
  %v3557 = vpack.c.b16 %v2421, %v2405
  %v3558 = vpack.c.b16 %v2422, %v2406
  %v3559 = vpack.c.b16 %v2423, %v2407
  %v3560 = vpack.c.b16 %v2440, %v2424
  %v3561 = vpack.c.b16 %v2441, %v2425
  %v3562 = vpack.c.b16 %v2442, %v2426
  %v3563 = vpack.c.b16 %v2443, %v2427
  %v3564 = vpack.c.b16 %v2444, %v2428
  %v3565 = vpack.c.b16 %v2445, %v2429
  %v3566 = vpack.c.b16 %v2446, %v2430
  %v3567 = vpack.c.b16 %v2447, %v2431
  %v3568 = vpack.c.b16 %v2448, %v2432
  %v3569 = vpack.c.b16 %v2449, %v2433
  %v3570 = vpack.c.b16 %v2450, %v2434
  %v3571 = vpack.c.b16 %v2451, %v2435
  %v3572 = vpack.c.b16 %v2452, %v2436
  %v3573 = vpack.c.b16 %v2453, %v2437
  %v3574 = vpack.c.b16 %v2454, %v2438
  %v3575 = vpack.c.b16 %v2455, %v2439
  %v3576 = vpack.c.b16 %v2472, %v2456
  %v3577 = vpack.c.b16 %v2473, %v2457
  %v3578 = vpack.c.b16 %v2474, %v2458
  %v3579 = vpack.c.b16 %v2475, %v2459
  %v3580 = vpack.c.b16 %v2476, %v2460
  %v3581 = vpack.c.b16 %v2477, %v2461
  %v3582 = vpack.c.b16 %v2478, %v2462
  %v3583 = vpack.c.b16 %v2479, %v2463
  %v3584 = vpack.c.b16 %v2480, %v2464
  %v3585 = vpack.c.b16 %v2481, %v2465
  %v3586 = vpack.c.b16 %v2482, %v2466
  %v3587 = vpack.c.b16 %v2483, %v2467
  %v3588 = vpack.c.b16 %v2484, %v2468
  %v3589 = vpack.c.b16 %v2485, %v2469
  %v3590 = vpack.c.b16 %v2486, %v2470
  %v3591 = vpack.c.b16 %v2487, %v2471
  %v3592 = vpack.c.b16 %v2504, %v2488
  %v3593 = vpack.c.b16 %v2505, %v2489
  %v3594 = vpack.c.b16 %v2506, %v2490
  %v3595 = vpack.c.b16 %v2507, %v2491
  %v3596 = vpack.c.b16 %v2508, %v2492
  %v3597 = vpack.c.b16 %v2509, %v2493
  %v3598 = vpack.c.b16 %v2510, %v2494
  %v3599 = vpack.c.b16 %v2511, %v2495
  %v3600 = vpack.c.b16 %v2512, %v2496
  %v3601 = vpack.c.b16 %v2513, %v2497
  %v3602 = vpack.c.b16 %v2514, %v2498
  %v3603 = vpack.c.b16 %v2515, %v2499
  %v3604 = vpack.c.b16 %v2516, %v2500
  %v3605 = vpack.c.b16 %v2517, %v2501
  %v3606 = vpack.c.b16 %v2518, %v2502
  %v3607 = vpack.c.b16 %v2519, %v2503
  %v3608 = vpack.c.b16 %v2536, %v2520
  %v3609 = vpack.c.b16 %v2537, %v2521
  %v3610 = vpack.c.b16 %v2538, %v2522
  %v3611 = vpack.c.b16 %v2539, %v2523
  %v3612 = vpack.c.b16 %v2540, %v2524
  %v3613 = vpack.c.b16 %v2541, %v2525
  %v3614 = vpack.c.b16 %v2542, %v2526
  %v3615 = vpack.c.b16 %v2543, %v2527
  %v3616 = vpack.c.b16 %v2544, %v2528
  %v3617 = vpack.c.b16 %v2545, %v2529
  %v3618 = vpack.c.b16 %v2546, %v2530
  %v3619 = vpack.c.b16 %v2547, %v2531
  %v3620 = vpack.c.b16 %v2548, %v2532
  %v3621 = vpack.c.b16 %v2549, %v2533
  %v3622 = vpack.c.b16 %v2550, %v2534
  %v3623 = vpack.c.b16 %v2551, %v2535
  %v3624 = vpack.c.b16 %v2568, %v2552
  %v3625 = vpack.c.b16 %v2569, %v2553
  %v3626 = vpack.c.b16 %v2570, %v2554
  %v3627 = vpack.c.b16 %v2571, %v2555
  %v3628 = vpack.c.b16 %v2572, %v2556
  %v3629 = vpack.c.b16 %v2573, %v2557
  %v3630 = vpack.c.b16 %v2574, %v2558
  %v3631 = vpack.c.b16 %v2575, %v2559
  %v3632 = vpack.c.b16 %v2576, %v2560
  %v3633 = vpack.c.b16 %v2577, %v2561
  %v3634 = vpack.c.b16 %v2578, %v2562
  %v3635 = vpack.c.b16 %v2579, %v2563
  %v3636 = vpack.c.b16 %v2580, %v2564
  %v3637 = vpack.c.b16 %v2581, %v2565
  %v3638 = vpack.c.b16 %v2582, %v2566
  %v3639 = vpack.c.b16 %v2583, %v2567
  %v3640 = vpack.c.b16 %v2600, %v2584
  %v3641 = vpack.c.b16 %v2601, %v2585
  %v3642 = vpack.c.b16 %v2602, %v2586
  %v3643 = vpack.c.b16 %v2603, %v2587
  %v3644 = vpack.c.b16 %v2604, %v2588
  %v3645 = vpack.c.b16 %v2605, %v2589
  %v3646 = vpack.c.b16 %v2606, %v2590
  %v3647 = vpack.c.b16 %v2607, %v2591
  %v3648 = vpack.c.b16 %v2608, %v2592
  %v3649 = vpack.c.b16 %v2609, %v2593
  %v3650 = vpack.c.b16 %v2610, %v2594
  %v3651 = vpack.c.b16 %v2611, %v2595
  %v3652 = vpack.c.b16 %v2612, %v2596
  %v3653 = vpack.c.b16 %v2613, %v2597
  %v3654 = vpack.c.b16 %v2614, %v2598
  %v3655 = vpack.c.b16 %v2615, %v2599
  %v3656 = vpack.c.b16 %v2632, %v2616
  %v3657 = vpack.c.b16 %v2633, %v2617
  %v3658 = vpack.c.b16 %v2634, %v2618
  %v3659 = vpack.c.b16 %v2635, %v2619
  %v3660 = vpack.c.b16 %v2636, %v2620
  %v3661 = vpack.c.b16 %v2637, %v2621
  %v3662 = vpack.c.b16 %v2638, %v2622
  %v3663 = vpack.c.b16 %v2639, %v2623
  %v3664 = vpack.c.b16 %v2640, %v2624
  %v3665 = vpack.c.b16 %v2641, %v2625
  %v3666 = vpack.c.b16 %v2642, %v2626
  %v3667 = vpack.c.b16 %v2643, %v2627
  %v3668 = vpack.c.b16 %v2644, %v2628
  %v3669 = vpack.c.b16 %v2645, %v2629
  %v3670 = vpack.c.b16 %v2646, %v2630
  %v3671 = vpack.c.b16 %v2647, %v2631
  %v3672 = vpack.c.b16 %v2664, %v2648
  %v3673 = vpack.c.b16 %v2665, %v2649
  %v3674 = vpack.c.b16 %v2666, %v2650
  %v3675 = vpack.c.b16 %v2667, %v2651
  %v3676 = vpack.c.b16 %v2668, %v2652
  %v3677 = vpack.c.b16 %v2669, %v2653
  %v3678 = vpack.c.b16 %v2670, %v2654
  %v3679 = vpack.c.b16 %v2671, %v2655
  %v3680 = vpack.c.b16 %v2672, %v2656
  %v3681 = vpack.c.b16 %v2673, %v2657
  %v3682 = vpack.c.b16 %v2674, %v2658
  %v3683 = vpack.c.b16 %v2675, %v2659
  %v3684 = vpack.c.b16 %v2676, %v2660
  %v3685 = vpack.c.b16 %v2677, %v2661
  %v3686 = vpack.c.b16 %v2678, %v2662
  %v3687 = vpack.c.b16 %v2679, %v2663
  %v3688 = vpack.c.b16 %v2696, %v2680
  %v3689 = vpack.c.b16 %v2697, %v2681
  %v3690 = vpack.c.b16 %v2698, %v2682
  %v3691 = vpack.c.b16 %v2699, %v2683
  %v3692 = vpack.c.b16 %v2700, %v2684
  %v3693 = vpack.c.b16 %v2701, %v2685
  %v3694 = vpack.c.b16 %v2702, %v2686
  %v3695 = vpack.c.b16 %v2703, %v2687
  %v3696 = vpack.c.b16 %v2704, %v2688
  %v3697 = vpack.c.b16 %v2705, %v2689
  %v3698 = vpack.c.b16 %v2706, %v2690
  %v3699 = vpack.c.b16 %v2707, %v2691
  %v3700 = vpack.c.b16 %v2708, %v2692
  %v3701 = vpack.c.b16 %v2709, %v2693
  %v3702 = vpack.c.b16 %v2710, %v2694
  %v3703 = vpack.c.b16 %v2711, %v2695
  %v3704 = vpack.c.b16 %v2728, %v2712
  %v3705 = vpack.c.b16 %v2729, %v2713
  %v3706 = vpack.c.b16 %v2730, %v2714
  %v3707 = vpack.c.b16 %v2731, %v2715
  %v3708 = vpack.c.b16 %v2732, %v2716
  %v3709 = vpack.c.b16 %v2733, %v2717
  %v3710 = vpack.c.b16 %v2734, %v2718
  %v3711 = vpack.c.b16 %v2735, %v2719
  %v3712 = vpack.c.b16 %v2736, %v2720
  %v3713 = vpack.c.b16 %v2737, %v2721
  %v3714 = vpack.c.b16 %v2738, %v2722
  %v3715 = vpack.c.b16 %v2739, %v2723
  %v3716 = vpack.c.b16 %v2740, %v2724
  %v3717 = vpack.c.b16 %v2741, %v2725
  %v3718 = vpack.c.b16 %v2742, %v2726
  %v3719 = vpack.c.b16 %v2743, %v2727
  %v3720 = vpack.c.b16 %v2760, %v2744
  %v3721 = vpack.c.b16 %v2761, %v2745
  %v3722 = vpack.c.b16 %v2762, %v2746
  %v3723 = vpack.c.b16 %v2763, %v2747
  %v3724 = vpack.c.b16 %v2764, %v2748
  %v3725 = vpack.c.b16 %v2765, %v2749
  %v3726 = vpack.c.b16 %v2766, %v2750
  %v3727 = vpack.c.b16 %v2767, %v2751
  %v3728 = vpack.c.b16 %v2768, %v2752
  %v3729 = vpack.c.b16 %v2769, %v2753
  %v3730 = vpack.c.b16 %v2770, %v2754
  %v3731 = vpack.c.b16 %v2771, %v2755
  %v3732 = vpack.c.b16 %v2772, %v2756
  %v3733 = vpack.c.b16 %v2773, %v2757
  %v3734 = vpack.c.b16 %v2774, %v2758
  %v3735 = vpack.c.b16 %v2775, %v2759
  %v3736 = vpack.c.b16 %v2792, %v2776
  %v3737 = vpack.c.b16 %v2793, %v2777
  %v3738 = vpack.c.b16 %v2794, %v2778
  %v3739 = vpack.c.b16 %v2795, %v2779
  %v3740 = vpack.c.b16 %v2796, %v2780
  %v3741 = vpack.c.b16 %v2797, %v2781
  %v3742 = vpack.c.b16 %v2798, %v2782
  %v3743 = vpack.c.b16 %v2799, %v2783
  %v3744 = vpack.c.b16 %v2800, %v2784
  %v3745 = vpack.c.b16 %v2801, %v2785
  %v3746 = vpack.c.b16 %v2802, %v2786
  %v3747 = vpack.c.b16 %v2803, %v2787
  %v3748 = vpack.c.b16 %v2804, %v2788
  %v3749 = vpack.c.b16 %v2805, %v2789
  %v3750 = vpack.c.b16 %v2806, %v2790
  %v3751 = vpack.c.b16 %v2807, %v2791
  %v3752 = vpack.c.b16 %v2824, %v2808
  %v3753 = vpack.c.b16 %v2825, %v2809
  %v3754 = vpack.c.b16 %v2826, %v2810
  %v3755 = vpack.c.b16 %v2827, %v2811
  %v3756 = vpack.c.b16 %v2828, %v2812
  %v3757 = vpack.c.b16 %v2829, %v2813
  %v3758 = vpack.c.b16 %v2830, %v2814
  %v3759 = vpack.c.b16 %v2831, %v2815
  %v3760 = vpack.c.b16 %v2832, %v2816
  %v3761 = vpack.c.b16 %v2833, %v2817
  %v3762 = vpack.c.b16 %v2834, %v2818
  %v3763 = vpack.c.b16 %v2835, %v2819
  %v3764 = vpack.c.b16 %v2836, %v2820
  %v3765 = vpack.c.b16 %v2837, %v2821
  %v3766 = vpack.c.b16 %v2838, %v2822
  %v3767 = vpack.c.b16 %v2839, %v2823
  %v3768 = vpack.c.b16 %v2856, %v2840
  %v3769 = vpack.c.b16 %v2857, %v2841
  %v3770 = vpack.c.b16 %v2858, %v2842
  %v3771 = vpack.c.b16 %v2859, %v2843
  %v3772 = vpack.c.b16 %v2860, %v2844
  %v3773 = vpack.c.b16 %v2861, %v2845
  %v3774 = vpack.c.b16 %v2862, %v2846
  %v3775 = vpack.c.b16 %v2863, %v2847
  %v3776 = vpack.c.b16 %v2864, %v2848
  %v3777 = vpack.c.b16 %v2865, %v2849
  %v3778 = vpack.c.b16 %v2866, %v2850
  %v3779 = vpack.c.b16 %v2867, %v2851
  %v3780 = vpack.c.b16 %v2868, %v2852
  %v3781 = vpack.c.b16 %v2869, %v2853
  %v3782 = vpack.c.b16 %v2870, %v2854
  %v3783 = vpack.c.b16 %v2871, %v2855
  %v3784 = vpack.c.b16 %v2888, %v2872
  %v3785 = vpack.c.b16 %v2889, %v2873
  %v3786 = vpack.c.b16 %v2890, %v2874
  %v3787 = vpack.c.b16 %v2891, %v2875
  %v3788 = vpack.c.b16 %v2892, %v2876
  %v3789 = vpack.c.b16 %v2893, %v2877
  %v3790 = vpack.c.b16 %v2894, %v2878
  %v3791 = vpack.c.b16 %v2895, %v2879
  %v3792 = vpack.c.b16 %v2896, %v2880
  %v3793 = vpack.c.b16 %v2897, %v2881
  %v3794 = vpack.c.b16 %v2898, %v2882
  %v3795 = vpack.c.b16 %v2899, %v2883
  %v3796 = vpack.c.b16 %v2900, %v2884
  %v3797 = vpack.c.b16 %v2901, %v2885
  %v3798 = vpack.c.b16 %v2902, %v2886
  %v3799 = vpack.c.b16 %v2903, %v2887
  %v3800 = vpack.c.b16 %v2920, %v2904
  %v3801 = vpack.c.b16 %v2921, %v2905
  %v3802 = vpack.c.b16 %v2922, %v2906
  %v3803 = vpack.c.b16 %v2923, %v2907
  %v3804 = vpack.c.b16 %v2924, %v2908
  %v3805 = vpack.c.b16 %v2925, %v2909
  %v3806 = vpack.c.b16 %v2926, %v2910
  %v3807 = vpack.c.b16 %v2927, %v2911
  %v3808 = vpack.c.b16 %v2928, %v2912
  %v3809 = vpack.c.b16 %v2929, %v2913
  %v3810 = vpack.c.b16 %v2930, %v2914
  %v3811 = vpack.c.b16 %v2931, %v2915
  %v3812 = vpack.c.b16 %v2932, %v2916
  %v3813 = vpack.c.b16 %v2933, %v2917
  %v3814 = vpack.c.b16 %v2934, %v2918
  %v3815 = vpack.c.b16 %v2935, %v2919
  %v3816 = vpack.c.b16 %v2952, %v2936
  %v3817 = vpack.c.b16 %v2953, %v2937
  %v3818 = vpack.c.b16 %v2954, %v2938
  %v3819 = vpack.c.b16 %v2955, %v2939
  %v3820 = vpack.c.b16 %v2956, %v2940
  %v3821 = vpack.c.b16 %v2957, %v2941
  %v3822 = vpack.c.b16 %v2958, %v2942
  %v3823 = vpack.c.b16 %v2959, %v2943
  %v3824 = vpack.c.b16 %v2960, %v2944
  %v3825 = vpack.c.b16 %v2961, %v2945
  %v3826 = vpack.c.b16 %v2962, %v2946
  %v3827 = vpack.c.b16 %v2963, %v2947
  %v3828 = vpack.c.b16 %v2964, %v2948
  %v3829 = vpack.c.b16 %v2965, %v2949
  %v3830 = vpack.c.b16 %v2966, %v2950
  %v3831 = vpack.c.b16 %v2967, %v2951
  %v3832 = vpack.c.b16 %v2984, %v2968
  %v3833 = vpack.c.b16 %v2985, %v2969
  %v3834 = vpack.c.b16 %v2986, %v2970
  %v3835 = vpack.c.b16 %v2987, %v2971
  %v3836 = vpack.c.b16 %v2988, %v2972
  %v3837 = vpack.c.b16 %v2989, %v2973
  %v3838 = vpack.c.b16 %v2990, %v2974
  %v3839 = vpack.c.b16 %v2991, %v2975
  %v3840 = vpack.c.b16 %v2992, %v2976
  %v3841 = vpack.c.b16 %v2993, %v2977
  %v3842 = vpack.c.b16 %v2994, %v2978
  %v3843 = vpack.c.b16 %v2995, %v2979
  %v3844 = vpack.c.b16 %v2996, %v2980
  %v3845 = vpack.c.b16 %v2997, %v2981
  %v3846 = vpack.c.b16 %v2998, %v2982
  %v3847 = vpack.c.b16 %v2999, %v2983
  %v3848 = vpack.c.b16 %v3016, %v3000
  %v3849 = vpack.c.b16 %v3017, %v3001
  %v3850 = vpack.c.b16 %v3018, %v3002
  %v3851 = vpack.c.b16 %v3019, %v3003
  %v3852 = vpack.c.b16 %v3020, %v3004
  %v3853 = vpack.c.b16 %v3021, %v3005
  %v3854 = vpack.c.b16 %v3022, %v3006
  %v3855 = vpack.c.b16 %v3023, %v3007
  %v3856 = vpack.c.b16 %v3024, %v3008
  %v3857 = vpack.c.b16 %v3025, %v3009
  %v3858 = vpack.c.b16 %v3026, %v3010
  %v3859 = vpack.c.b16 %v3027, %v3011
  %v3860 = vpack.c.b16 %v3028, %v3012
  %v3861 = vpack.c.b16 %v3029, %v3013
  %v3862 = vpack.c.b16 %v3030, %v3014
  %v3863 = vpack.c.b16 %v3031, %v3015
  %v3864 = vpack.c.b16 %v3048, %v3032
  %v3865 = vpack.c.b16 %v3049, %v3033
  %v3866 = vpack.c.b16 %v3050, %v3034
  %v3867 = vpack.c.b16 %v3051, %v3035
  %v3868 = vpack.c.b16 %v3052, %v3036
  %v3869 = vpack.c.b16 %v3053, %v3037
  %v3870 = vpack.c.b16 %v3054, %v3038
  %v3871 = vpack.c.b16 %v3055, %v3039
  %v3872 = vpack.c.b16 %v3056, %v3040
  %v3873 = vpack.c.b16 %v3057, %v3041
  %v3874 = vpack.c.b16 %v3058, %v3042
  %v3875 = vpack.c.b16 %v3059, %v3043
  %v3876 = vpack.c.b16 %v3060, %v3044
  %v3877 = vpack.c.b16 %v3061, %v3045
  %v3878 = vpack.c.b16 %v3062, %v3046
  %v3879 = vpack.c.b16 %v3063, %v3047
  %v3880 = vpack.c.b16 %v3080, %v3064
  %v3881 = vpack.c.b16 %v3081, %v3065
  %v3882 = vpack.c.b16 %v3082, %v3066
  %v3883 = vpack.c.b16 %v3083, %v3067
  %v3884 = vpack.c.b16 %v3084, %v3068
  %v3885 = vpack.c.b16 %v3085, %v3069
  %v3886 = vpack.c.b16 %v3086, %v3070
  %v3887 = vpack.c.b16 %v3087, %v3071
  %v3888 = vpack.c.b16 %v3088, %v3072
  %v3889 = vpack.c.b16 %v3089, %v3073
  %v3890 = vpack.c.b16 %v3090, %v3074
  %v3891 = vpack.c.b16 %v3091, %v3075
  %v3892 = vpack.c.b16 %v3092, %v3076
  %v3893 = vpack.c.b16 %v3093, %v3077
  %v3894 = vpack.c.b16 %v3094, %v3078
  %v3895 = vpack.c.b16 %v3095, %v3079
  %v3896 = vpack.c.b16 %v3112, %v3096
  %v3897 = vpack.c.b16 %v3113, %v3097
  %v3898 = vpack.c.b16 %v3114, %v3098
  %v3899 = vpack.c.b16 %v3115, %v3099
  %v3900 = vpack.c.b16 %v3116, %v3100
  %v3901 = vpack.c.b16 %v3117, %v3101
  %v3902 = vpack.c.b16 %v3118, %v3102
  %v3903 = vpack.c.b16 %v3119, %v3103
  %v3904 = vpack.c.b16 %v3120, %v3104
  %v3905 = vpack.c.b16 %v3121, %v3105
  %v3906 = vpack.c.b16 %v3122, %v3106
  %v3907 = vpack.c.b16 %v3123, %v3107
  %v3908 = vpack.c.b16 %v3124, %v3108
  %v3909 = vpack.c.b16 %v3125, %v3109
  %v3910 = vpack.c.b16 %v3126, %v3110
  %v3911 = vpack.c.b16 %v3127, %v3111
  %v3912 = vpack.c.b16 %v3144, %v3128
  %v3913 = vpack.c.b16 %v3145, %v3129
  %v3914 = vpack.c.b16 %v3146, %v3130
  %v3915 = vpack.c.b16 %v3147, %v3131
  %v3916 = vpack.c.b16 %v3148, %v3132
  %v3917 = vpack.c.b16 %v3149, %v3133
  %v3918 = vpack.c.b16 %v3150, %v3134
  %v3919 = vpack.c.b16 %v3151, %v3135
  %v3920 = vpack.c.b16 %v3152, %v3136
  %v3921 = vpack.c.b16 %v3153, %v3137
  %v3922 = vpack.c.b16 %v3154, %v3138
  %v3923 = vpack.c.b16 %v3155, %v3139
  %v3924 = vpack.c.b16 %v3156, %v3140
  %v3925 = vpack.c.b16 %v3157, %v3141
  %v3926 = vpack.c.b16 %v3158, %v3142
  %v3927 = vpack.c.b16 %v3159, %v3143
  %4696 = vmatpush.bf16.msra.mxu0 %v3272
  %4697 = vmatpush.bf16.msra.mxu0 %v3256
  %4698 = vmatpush.bf16.msra.mxu0 %v3240
  %4699 = vmatpush.bf16.msra.mxu0 %v3224
  %4700 = vmatpush.bf16.msra.mxu0 %v3208
  %4701 = vmatpush.bf16.msra.mxu0 %v3192
  %4702 = vmatpush.bf16.msra.mxu0 %v3176
  %4703 = vmatpush.bf16.msra.mxu0 %v3160
  %4704 = vmatmul.bf16.gmra.mxu0 %v844
  %v4705 = vpop.f32.mrf.mxu0
  %v4706 = vadd.f32 %v803, %v4705
  %v4707 = vpop.f32.mrf.mxu0
  %4708 = vdwg.mxu0
  %4709 = vmatpush.bf16.msra.mxu0 %v3400
  %4710 = vmatpush.bf16.msra.mxu0 %v3384
  %4711 = vmatpush.bf16.msra.mxu0 %v3368
  %4712 = vmatpush.bf16.msra.mxu0 %v3352
  %4713 = vmatpush.bf16.msra.mxu0 %v3336
  %4714 = vmatpush.bf16.msra.mxu0 %v3320
  %4715 = vmatpush.bf16.msra.mxu0 %v3304
  %4716 = vmatpush.bf16.msra.mxu0 %v3288
  %4717 = vmatmul.bf16.gmra.mxu0 %v845
  %v4718 = vpop.f32.mrf.mxu0
  %v4719 = vadd.f32 %v4706, %v4718
  %v4720 = vpop.f32.mrf.mxu0
  %4721 = vdwg.mxu0
  %4722 = vmatpush.bf16.msra.mxu0 %v3528
  %4723 = vmatpush.bf16.msra.mxu0 %v3512
  %4724 = vmatpush.bf16.msra.mxu0 %v3496
  %4725 = vmatpush.bf16.msra.mxu0 %v3480
  %4726 = vmatpush.bf16.msra.mxu0 %v3464
  %4727 = vmatpush.bf16.msra.mxu0 %v3448
  %4728 = vmatpush.bf16.msra.mxu0 %v3432
  %4729 = vmatpush.bf16.msra.mxu0 %v3416
  %4730 = vmatmul.bf16.gmra.mxu0 %v846
  %v4731 = vpop.f32.mrf.mxu0
  %v4732 = vadd.f32 %v4719, %v4731
  %v4733 = vpop.f32.mrf.mxu0
  %4734 = vdwg.mxu0
  %4735 = vmatpush.bf16.msra.mxu0 %v3656
  %4736 = vmatpush.bf16.msra.mxu0 %v3640
  %4737 = vmatpush.bf16.msra.mxu0 %v3624
  %4738 = vmatpush.bf16.msra.mxu0 %v3608
  %4739 = vmatpush.bf16.msra.mxu0 %v3592
  %4740 = vmatpush.bf16.msra.mxu0 %v3576
  %4741 = vmatpush.bf16.msra.mxu0 %v3560
  %4742 = vmatpush.bf16.msra.mxu0 %v3544
  %4743 = vmatmul.bf16.gmra.mxu0 %v847
  %v4744 = vpop.f32.mrf.mxu0
  %v4745 = vadd.f32 %v4732, %v4744
  %v4746 = vpop.f32.mrf.mxu0
  %4747 = vdwg.mxu0
  %4748 = vmatpush.bf16.msra.mxu0 %v3784
  %4749 = vmatpush.bf16.msra.mxu0 %v3768
  %4750 = vmatpush.bf16.msra.mxu0 %v3752
  %4751 = vmatpush.bf16.msra.mxu0 %v3736
  %4752 = vmatpush.bf16.msra.mxu0 %v3720
  %4753 = vmatpush.bf16.msra.mxu0 %v3704
  %4754 = vmatpush.bf16.msra.mxu0 %v3688
  %4755 = vmatpush.bf16.msra.mxu0 %v3672
  %4756 = vmatmul.bf16.gmra.mxu0 %v848
  %v4757 = vpop.f32.mrf.mxu0
  %v4758 = vadd.f32 %v4745, %v4757
  %v4759 = vpop.f32.mrf.mxu0
  %4760 = vdwg.mxu0
  %4761 = vmatpush.bf16.msra.mxu0 %v3912
  %4762 = vmatpush.bf16.msra.mxu0 %v3896
  %4763 = vmatpush.bf16.msra.mxu0 %v3880
  %4764 = vmatpush.bf16.msra.mxu0 %v3864
  %4765 = vmatpush.bf16.msra.mxu0 %v3848
  %4766 = vmatpush.bf16.msra.mxu0 %v3832
  %4767 = vmatpush.bf16.msra.mxu0 %v3816
  %4768 = vmatpush.bf16.msra.mxu0 %v3800
  %4769 = vmatmul.bf16.gmra.mxu0 %v849
  %v4770 = vpop.f32.mrf.mxu0
  %v4771 = vadd.f32 %v4758, %v4770
  %v4772 = vpop.f32.mrf.mxu0
  %4773 = vdwg.mxu0
  %4774 = vmatpush.bf16.msra.mxu0 %v3273
  %4775 = vmatpush.bf16.msra.mxu0 %v3257
  %4776 = vmatpush.bf16.msra.mxu0 %v3241
  %4777 = vmatpush.bf16.msra.mxu0 %v3225
  %4778 = vmatpush.bf16.msra.mxu0 %v3209
  %4779 = vmatpush.bf16.msra.mxu0 %v3193
  %4780 = vmatpush.bf16.msra.mxu0 %v3177
  %4781 = vmatpush.bf16.msra.mxu0 %v3161
  %4782 = vmatmul.bf16.gmra.mxu0 %v844
  %v4783 = vpop.f32.mrf.mxu0
  %v4784 = vadd.f32 %v804, %v4783
  %v4785 = vpop.f32.mrf.mxu0
  %4786 = vdwg.mxu0
  %4787 = vmatpush.bf16.msra.mxu0 %v3401
  %4788 = vmatpush.bf16.msra.mxu0 %v3385
  %4789 = vmatpush.bf16.msra.mxu0 %v3369
  %4790 = vmatpush.bf16.msra.mxu0 %v3353
  %4791 = vmatpush.bf16.msra.mxu0 %v3337
  %4792 = vmatpush.bf16.msra.mxu0 %v3321
  %4793 = vmatpush.bf16.msra.mxu0 %v3305
  %4794 = vmatpush.bf16.msra.mxu0 %v3289
  %4795 = vmatmul.bf16.gmra.mxu0 %v845
  %v4796 = vpop.f32.mrf.mxu0
  %v4797 = vadd.f32 %v4784, %v4796
  %v4798 = vpop.f32.mrf.mxu0
  %4799 = vdwg.mxu0
  %4800 = vmatpush.bf16.msra.mxu0 %v3529
  %4801 = vmatpush.bf16.msra.mxu0 %v3513
  %4802 = vmatpush.bf16.msra.mxu0 %v3497
  %4803 = vmatpush.bf16.msra.mxu0 %v3481
  %4804 = vmatpush.bf16.msra.mxu0 %v3465
  %4805 = vmatpush.bf16.msra.mxu0 %v3449
  %4806 = vmatpush.bf16.msra.mxu0 %v3433
  %4807 = vmatpush.bf16.msra.mxu0 %v3417
  %4808 = vmatmul.bf16.gmra.mxu0 %v846
  %v4809 = vpop.f32.mrf.mxu0
  %v4810 = vadd.f32 %v4797, %v4809
  %v4811 = vpop.f32.mrf.mxu0
  %4812 = vdwg.mxu0
  %4813 = vmatpush.bf16.msra.mxu0 %v3657
  %4814 = vmatpush.bf16.msra.mxu0 %v3641
  %4815 = vmatpush.bf16.msra.mxu0 %v3625
  %4816 = vmatpush.bf16.msra.mxu0 %v3609
  %4817 = vmatpush.bf16.msra.mxu0 %v3593
  %4818 = vmatpush.bf16.msra.mxu0 %v3577
  %4819 = vmatpush.bf16.msra.mxu0 %v3561
  %4820 = vmatpush.bf16.msra.mxu0 %v3545
  %4821 = vmatmul.bf16.gmra.mxu0 %v847
  %v4822 = vpop.f32.mrf.mxu0
  %v4823 = vadd.f32 %v4810, %v4822
  %v4824 = vpop.f32.mrf.mxu0
  %4825 = vdwg.mxu0
  %4826 = vmatpush.bf16.msra.mxu0 %v3785
  %4827 = vmatpush.bf16.msra.mxu0 %v3769
  %4828 = vmatpush.bf16.msra.mxu0 %v3753
  %4829 = vmatpush.bf16.msra.mxu0 %v3737
  %4830 = vmatpush.bf16.msra.mxu0 %v3721
  %4831 = vmatpush.bf16.msra.mxu0 %v3705
  %4832 = vmatpush.bf16.msra.mxu0 %v3689
  %4833 = vmatpush.bf16.msra.mxu0 %v3673
  %4834 = vmatmul.bf16.gmra.mxu0 %v848
  %v4835 = vpop.f32.mrf.mxu0
  %v4836 = vadd.f32 %v4823, %v4835
  %v4837 = vpop.f32.mrf.mxu0
  %4838 = vdwg.mxu0
  %4839 = vmatpush.bf16.msra.mxu0 %v3913
  %4840 = vmatpush.bf16.msra.mxu0 %v3897
  %4841 = vmatpush.bf16.msra.mxu0 %v3881
  %4842 = vmatpush.bf16.msra.mxu0 %v3865
  %4843 = vmatpush.bf16.msra.mxu0 %v3849
  %4844 = vmatpush.bf16.msra.mxu0 %v3833
  %4845 = vmatpush.bf16.msra.mxu0 %v3817
  %4846 = vmatpush.bf16.msra.mxu0 %v3801
  %4847 = vmatmul.bf16.gmra.mxu0 %v849
  %v4848 = vpop.f32.mrf.mxu0
  %v4849 = vadd.f32 %v4836, %v4848
  %v4850 = vpop.f32.mrf.mxu0
  %4851 = vdwg.mxu0
  %4852 = vmatpush.bf16.msra.mxu0 %v3274
  %4853 = vmatpush.bf16.msra.mxu0 %v3258
  %4854 = vmatpush.bf16.msra.mxu0 %v3242
  %4855 = vmatpush.bf16.msra.mxu0 %v3226
  %4856 = vmatpush.bf16.msra.mxu0 %v3210
  %4857 = vmatpush.bf16.msra.mxu0 %v3194
  %4858 = vmatpush.bf16.msra.mxu0 %v3178
  %4859 = vmatpush.bf16.msra.mxu0 %v3162
  %4860 = vmatmul.bf16.gmra.mxu0 %v844
  %v4861 = vpop.f32.mrf.mxu0
  %v4862 = vadd.f32 %v805, %v4861
  %v4863 = vpop.f32.mrf.mxu0
  %4864 = vdwg.mxu0
  %4865 = vmatpush.bf16.msra.mxu0 %v3402
  %4866 = vmatpush.bf16.msra.mxu0 %v3386
  %4867 = vmatpush.bf16.msra.mxu0 %v3370
  %4868 = vmatpush.bf16.msra.mxu0 %v3354
  %4869 = vmatpush.bf16.msra.mxu0 %v3338
  %4870 = vmatpush.bf16.msra.mxu0 %v3322
  %4871 = vmatpush.bf16.msra.mxu0 %v3306
  %4872 = vmatpush.bf16.msra.mxu0 %v3290
  %4873 = vmatmul.bf16.gmra.mxu0 %v845
  %v4874 = vpop.f32.mrf.mxu0
  %v4875 = vadd.f32 %v4862, %v4874
  %v4876 = vpop.f32.mrf.mxu0
  %4877 = vdwg.mxu0
  %4878 = vmatpush.bf16.msra.mxu0 %v3530
  %4879 = vmatpush.bf16.msra.mxu0 %v3514
  %4880 = vmatpush.bf16.msra.mxu0 %v3498
  %4881 = vmatpush.bf16.msra.mxu0 %v3482
  %4882 = vmatpush.bf16.msra.mxu0 %v3466
  %4883 = vmatpush.bf16.msra.mxu0 %v3450
  %4884 = vmatpush.bf16.msra.mxu0 %v3434
  %4885 = vmatpush.bf16.msra.mxu0 %v3418
  %4886 = vmatmul.bf16.gmra.mxu0 %v846
  %v4887 = vpop.f32.mrf.mxu0
  %v4888 = vadd.f32 %v4875, %v4887
  %v4889 = vpop.f32.mrf.mxu0
  %4890 = vdwg.mxu0
  %4891 = vmatpush.bf16.msra.mxu0 %v3658
  %4892 = vmatpush.bf16.msra.mxu0 %v3642
  %4893 = vmatpush.bf16.msra.mxu0 %v3626
  %4894 = vmatpush.bf16.msra.mxu0 %v3610
  %4895 = vmatpush.bf16.msra.mxu0 %v3594
  %4896 = vmatpush.bf16.msra.mxu0 %v3578
  %4897 = vmatpush.bf16.msra.mxu0 %v3562
  %4898 = vmatpush.bf16.msra.mxu0 %v3546
  %4899 = vmatmul.bf16.gmra.mxu0 %v847
  %v4900 = vpop.f32.mrf.mxu0
  %v4901 = vadd.f32 %v4888, %v4900
  %v4902 = vpop.f32.mrf.mxu0
  %4903 = vdwg.mxu0
  %4904 = vmatpush.bf16.msra.mxu0 %v3786
  %4905 = vmatpush.bf16.msra.mxu0 %v3770
  %4906 = vmatpush.bf16.msra.mxu0 %v3754
  %4907 = vmatpush.bf16.msra.mxu0 %v3738
  %4908 = vmatpush.bf16.msra.mxu0 %v3722
  %4909 = vmatpush.bf16.msra.mxu0 %v3706
  %4910 = vmatpush.bf16.msra.mxu0 %v3690
  %4911 = vmatpush.bf16.msra.mxu0 %v3674
  %4912 = vmatmul.bf16.gmra.mxu0 %v848
  %v4913 = vpop.f32.mrf.mxu0
  %v4914 = vadd.f32 %v4901, %v4913
  %v4915 = vpop.f32.mrf.mxu0
  %4916 = vdwg.mxu0
  %4917 = vmatpush.bf16.msra.mxu0 %v3914
  %4918 = vmatpush.bf16.msra.mxu0 %v3898
  %4919 = vmatpush.bf16.msra.mxu0 %v3882
  %4920 = vmatpush.bf16.msra.mxu0 %v3866
  %4921 = vmatpush.bf16.msra.mxu0 %v3850
  %4922 = vmatpush.bf16.msra.mxu0 %v3834
  %4923 = vmatpush.bf16.msra.mxu0 %v3818
  %4924 = vmatpush.bf16.msra.mxu0 %v3802
  %4925 = vmatmul.bf16.gmra.mxu0 %v849
  %v4926 = vpop.f32.mrf.mxu0
  %v4927 = vadd.f32 %v4914, %v4926
  %v4928 = vpop.f32.mrf.mxu0
  %4929 = vdwg.mxu0
  %4930 = vmatpush.bf16.msra.mxu0 %v3275
  %4931 = vmatpush.bf16.msra.mxu0 %v3259
  %4932 = vmatpush.bf16.msra.mxu0 %v3243
  %4933 = vmatpush.bf16.msra.mxu0 %v3227
  %4934 = vmatpush.bf16.msra.mxu0 %v3211
  %4935 = vmatpush.bf16.msra.mxu0 %v3195
  %4936 = vmatpush.bf16.msra.mxu0 %v3179
  %4937 = vmatpush.bf16.msra.mxu0 %v3163
  %4938 = vmatmul.bf16.gmra.mxu0 %v844
  %v4939 = vpop.f32.mrf.mxu0
  %v4940 = vadd.f32 %v806, %v4939
  %v4941 = vpop.f32.mrf.mxu0
  %4942 = vdwg.mxu0
  %4943 = vmatpush.bf16.msra.mxu0 %v3403
  %4944 = vmatpush.bf16.msra.mxu0 %v3387
  %4945 = vmatpush.bf16.msra.mxu0 %v3371
  %4946 = vmatpush.bf16.msra.mxu0 %v3355
  %4947 = vmatpush.bf16.msra.mxu0 %v3339
  %4948 = vmatpush.bf16.msra.mxu0 %v3323
  %4949 = vmatpush.bf16.msra.mxu0 %v3307
  %4950 = vmatpush.bf16.msra.mxu0 %v3291
  %4951 = vmatmul.bf16.gmra.mxu0 %v845
  %v4952 = vpop.f32.mrf.mxu0
  %v4953 = vadd.f32 %v4940, %v4952
  %v4954 = vpop.f32.mrf.mxu0
  %4955 = vdwg.mxu0
  %4956 = vmatpush.bf16.msra.mxu0 %v3531
  %4957 = vmatpush.bf16.msra.mxu0 %v3515
  %4958 = vmatpush.bf16.msra.mxu0 %v3499
  %4959 = vmatpush.bf16.msra.mxu0 %v3483
  %4960 = vmatpush.bf16.msra.mxu0 %v3467
  %4961 = vmatpush.bf16.msra.mxu0 %v3451
  %4962 = vmatpush.bf16.msra.mxu0 %v3435
  %4963 = vmatpush.bf16.msra.mxu0 %v3419
  %4964 = vmatmul.bf16.gmra.mxu0 %v846
  %v4965 = vpop.f32.mrf.mxu0
  %v4966 = vadd.f32 %v4953, %v4965
  %v4967 = vpop.f32.mrf.mxu0
  %4968 = vdwg.mxu0
  %4969 = vmatpush.bf16.msra.mxu0 %v3659
  %4970 = vmatpush.bf16.msra.mxu0 %v3643
  %4971 = vmatpush.bf16.msra.mxu0 %v3627
  %4972 = vmatpush.bf16.msra.mxu0 %v3611
  %4973 = vmatpush.bf16.msra.mxu0 %v3595
  %4974 = vmatpush.bf16.msra.mxu0 %v3579
  %4975 = vmatpush.bf16.msra.mxu0 %v3563
  %4976 = vmatpush.bf16.msra.mxu0 %v3547
  %4977 = vmatmul.bf16.gmra.mxu0 %v847
  %v4978 = vpop.f32.mrf.mxu0
  %v4979 = vadd.f32 %v4966, %v4978
  %v4980 = vpop.f32.mrf.mxu0
  %4981 = vdwg.mxu0
  %4982 = vmatpush.bf16.msra.mxu0 %v3787
  %4983 = vmatpush.bf16.msra.mxu0 %v3771
  %4984 = vmatpush.bf16.msra.mxu0 %v3755
  %4985 = vmatpush.bf16.msra.mxu0 %v3739
  %4986 = vmatpush.bf16.msra.mxu0 %v3723
  %4987 = vmatpush.bf16.msra.mxu0 %v3707
  %4988 = vmatpush.bf16.msra.mxu0 %v3691
  %4989 = vmatpush.bf16.msra.mxu0 %v3675
  %4990 = vmatmul.bf16.gmra.mxu0 %v848
  %v4991 = vpop.f32.mrf.mxu0
  %v4992 = vadd.f32 %v4979, %v4991
  %v4993 = vpop.f32.mrf.mxu0
  %4994 = vdwg.mxu0
  %4995 = vmatpush.bf16.msra.mxu0 %v3915
  %4996 = vmatpush.bf16.msra.mxu0 %v3899
  %4997 = vmatpush.bf16.msra.mxu0 %v3883
  %4998 = vmatpush.bf16.msra.mxu0 %v3867
  %4999 = vmatpush.bf16.msra.mxu0 %v3851
  %5000 = vmatpush.bf16.msra.mxu0 %v3835
  %5001 = vmatpush.bf16.msra.mxu0 %v3819
  %5002 = vmatpush.bf16.msra.mxu0 %v3803
  %5003 = vmatmul.bf16.gmra.mxu0 %v849
  %v5004 = vpop.f32.mrf.mxu0
  %v5005 = vadd.f32 %v4992, %v5004
  %v5006 = vpop.f32.mrf.mxu0
  %5007 = vdwg.mxu0
  %5008 = vmatpush.bf16.msra.mxu0 %v3276
  %5009 = vmatpush.bf16.msra.mxu0 %v3260
  %5010 = vmatpush.bf16.msra.mxu0 %v3244
  %5011 = vmatpush.bf16.msra.mxu0 %v3228
  %5012 = vmatpush.bf16.msra.mxu0 %v3212
  %5013 = vmatpush.bf16.msra.mxu0 %v3196
  %5014 = vmatpush.bf16.msra.mxu0 %v3180
  %5015 = vmatpush.bf16.msra.mxu0 %v3164
  %5016 = vmatmul.bf16.gmra.mxu0 %v844
  %v5017 = vpop.f32.mrf.mxu0
  %v5018 = vadd.f32 %v807, %v5017
  %v5019 = vpop.f32.mrf.mxu0
  %5020 = vdwg.mxu0
  %5021 = vmatpush.bf16.msra.mxu0 %v3404
  %5022 = vmatpush.bf16.msra.mxu0 %v3388
  %5023 = vmatpush.bf16.msra.mxu0 %v3372
  %5024 = vmatpush.bf16.msra.mxu0 %v3356
  %5025 = vmatpush.bf16.msra.mxu0 %v3340
  %5026 = vmatpush.bf16.msra.mxu0 %v3324
  %5027 = vmatpush.bf16.msra.mxu0 %v3308
  %5028 = vmatpush.bf16.msra.mxu0 %v3292
  %5029 = vmatmul.bf16.gmra.mxu0 %v845
  %v5030 = vpop.f32.mrf.mxu0
  %v5031 = vadd.f32 %v5018, %v5030
  %v5032 = vpop.f32.mrf.mxu0
  %5033 = vdwg.mxu0
  %5034 = vmatpush.bf16.msra.mxu0 %v3532
  %5035 = vmatpush.bf16.msra.mxu0 %v3516
  %5036 = vmatpush.bf16.msra.mxu0 %v3500
  %5037 = vmatpush.bf16.msra.mxu0 %v3484
  %5038 = vmatpush.bf16.msra.mxu0 %v3468
  %5039 = vmatpush.bf16.msra.mxu0 %v3452
  %5040 = vmatpush.bf16.msra.mxu0 %v3436
  %5041 = vmatpush.bf16.msra.mxu0 %v3420
  %5042 = vmatmul.bf16.gmra.mxu0 %v846
  %v5043 = vpop.f32.mrf.mxu0
  %v5044 = vadd.f32 %v5031, %v5043
  %v5045 = vpop.f32.mrf.mxu0
  %5046 = vdwg.mxu0
  %5047 = vmatpush.bf16.msra.mxu0 %v3660
  %5048 = vmatpush.bf16.msra.mxu0 %v3644
  %5049 = vmatpush.bf16.msra.mxu0 %v3628
  %5050 = vmatpush.bf16.msra.mxu0 %v3612
  %5051 = vmatpush.bf16.msra.mxu0 %v3596
  %5052 = vmatpush.bf16.msra.mxu0 %v3580
  %5053 = vmatpush.bf16.msra.mxu0 %v3564
  %5054 = vmatpush.bf16.msra.mxu0 %v3548
  %5055 = vmatmul.bf16.gmra.mxu0 %v847
  %v5056 = vpop.f32.mrf.mxu0
  %v5057 = vadd.f32 %v5044, %v5056
  %v5058 = vpop.f32.mrf.mxu0
  %5059 = vdwg.mxu0
  %5060 = vmatpush.bf16.msra.mxu0 %v3788
  %5061 = vmatpush.bf16.msra.mxu0 %v3772
  %5062 = vmatpush.bf16.msra.mxu0 %v3756
  %5063 = vmatpush.bf16.msra.mxu0 %v3740
  %5064 = vmatpush.bf16.msra.mxu0 %v3724
  %5065 = vmatpush.bf16.msra.mxu0 %v3708
  %5066 = vmatpush.bf16.msra.mxu0 %v3692
  %5067 = vmatpush.bf16.msra.mxu0 %v3676
  %5068 = vmatmul.bf16.gmra.mxu0 %v848
  %v5069 = vpop.f32.mrf.mxu0
  %v5070 = vadd.f32 %v5057, %v5069
  %v5071 = vpop.f32.mrf.mxu0
  %5072 = vdwg.mxu0
  %5073 = vmatpush.bf16.msra.mxu0 %v3916
  %5074 = vmatpush.bf16.msra.mxu0 %v3900
  %5075 = vmatpush.bf16.msra.mxu0 %v3884
  %5076 = vmatpush.bf16.msra.mxu0 %v3868
  %5077 = vmatpush.bf16.msra.mxu0 %v3852
  %5078 = vmatpush.bf16.msra.mxu0 %v3836
  %5079 = vmatpush.bf16.msra.mxu0 %v3820
  %5080 = vmatpush.bf16.msra.mxu0 %v3804
  %5081 = vmatmul.bf16.gmra.mxu0 %v849
  %v5082 = vpop.f32.mrf.mxu0
  %v5083 = vadd.f32 %v5070, %v5082
  %v5084 = vpop.f32.mrf.mxu0
  %5085 = vdwg.mxu0
  %5086 = vmatpush.bf16.msra.mxu0 %v3277
  %5087 = vmatpush.bf16.msra.mxu0 %v3261
  %5088 = vmatpush.bf16.msra.mxu0 %v3245
  %5089 = vmatpush.bf16.msra.mxu0 %v3229
  %5090 = vmatpush.bf16.msra.mxu0 %v3213
  %5091 = vmatpush.bf16.msra.mxu0 %v3197
  %5092 = vmatpush.bf16.msra.mxu0 %v3181
  %5093 = vmatpush.bf16.msra.mxu0 %v3165
  %5094 = vmatmul.bf16.gmra.mxu0 %v844
  %v5095 = vpop.f32.mrf.mxu0
  %v5096 = vadd.f32 %v808, %v5095
  %v5097 = vpop.f32.mrf.mxu0
  %5098 = vdwg.mxu0
  %5099 = vmatpush.bf16.msra.mxu0 %v3405
  %5100 = vmatpush.bf16.msra.mxu0 %v3389
  %5101 = vmatpush.bf16.msra.mxu0 %v3373
  %5102 = vmatpush.bf16.msra.mxu0 %v3357
  %5103 = vmatpush.bf16.msra.mxu0 %v3341
  %5104 = vmatpush.bf16.msra.mxu0 %v3325
  %5105 = vmatpush.bf16.msra.mxu0 %v3309
  %5106 = vmatpush.bf16.msra.mxu0 %v3293
  %5107 = vmatmul.bf16.gmra.mxu0 %v845
  %v5108 = vpop.f32.mrf.mxu0
  %v5109 = vadd.f32 %v5096, %v5108
  %v5110 = vpop.f32.mrf.mxu0
  %5111 = vdwg.mxu0
  %5112 = vmatpush.bf16.msra.mxu0 %v3533
  %5113 = vmatpush.bf16.msra.mxu0 %v3517
  %5114 = vmatpush.bf16.msra.mxu0 %v3501
  %5115 = vmatpush.bf16.msra.mxu0 %v3485
  %5116 = vmatpush.bf16.msra.mxu0 %v3469
  %5117 = vmatpush.bf16.msra.mxu0 %v3453
  %5118 = vmatpush.bf16.msra.mxu0 %v3437
  %5119 = vmatpush.bf16.msra.mxu0 %v3421
  %5120 = vmatmul.bf16.gmra.mxu0 %v846
  %v5121 = vpop.f32.mrf.mxu0
  %v5122 = vadd.f32 %v5109, %v5121
  %v5123 = vpop.f32.mrf.mxu0
  %5124 = vdwg.mxu0
  %5125 = vmatpush.bf16.msra.mxu0 %v3661
  %5126 = vmatpush.bf16.msra.mxu0 %v3645
  %5127 = vmatpush.bf16.msra.mxu0 %v3629
  %5128 = vmatpush.bf16.msra.mxu0 %v3613
  %5129 = vmatpush.bf16.msra.mxu0 %v3597
  %5130 = vmatpush.bf16.msra.mxu0 %v3581
  %5131 = vmatpush.bf16.msra.mxu0 %v3565
  %5132 = vmatpush.bf16.msra.mxu0 %v3549
  %5133 = vmatmul.bf16.gmra.mxu0 %v847
  %v5134 = vpop.f32.mrf.mxu0
  %v5135 = vadd.f32 %v5122, %v5134
  %v5136 = vpop.f32.mrf.mxu0
  %5137 = vdwg.mxu0
  %5138 = vmatpush.bf16.msra.mxu0 %v3789
  %5139 = vmatpush.bf16.msra.mxu0 %v3773
  %5140 = vmatpush.bf16.msra.mxu0 %v3757
  %5141 = vmatpush.bf16.msra.mxu0 %v3741
  %5142 = vmatpush.bf16.msra.mxu0 %v3725
  %5143 = vmatpush.bf16.msra.mxu0 %v3709
  %5144 = vmatpush.bf16.msra.mxu0 %v3693
  %5145 = vmatpush.bf16.msra.mxu0 %v3677
  %5146 = vmatmul.bf16.gmra.mxu0 %v848
  %v5147 = vpop.f32.mrf.mxu0
  %v5148 = vadd.f32 %v5135, %v5147
  %v5149 = vpop.f32.mrf.mxu0
  %5150 = vdwg.mxu0
  %5151 = vmatpush.bf16.msra.mxu0 %v3917
  %5152 = vmatpush.bf16.msra.mxu0 %v3901
  %5153 = vmatpush.bf16.msra.mxu0 %v3885
  %5154 = vmatpush.bf16.msra.mxu0 %v3869
  %5155 = vmatpush.bf16.msra.mxu0 %v3853
  %5156 = vmatpush.bf16.msra.mxu0 %v3837
  %5157 = vmatpush.bf16.msra.mxu0 %v3821
  %5158 = vmatpush.bf16.msra.mxu0 %v3805
  %5159 = vmatmul.bf16.gmra.mxu0 %v849
  %v5160 = vpop.f32.mrf.mxu0
  %v5161 = vadd.f32 %v5148, %v5160
  %v5162 = vpop.f32.mrf.mxu0
  %5163 = vdwg.mxu0
  %5164 = vmatpush.bf16.msra.mxu0 %v3278
  %5165 = vmatpush.bf16.msra.mxu0 %v3262
  %5166 = vmatpush.bf16.msra.mxu0 %v3246
  %5167 = vmatpush.bf16.msra.mxu0 %v3230
  %5168 = vmatpush.bf16.msra.mxu0 %v3214
  %5169 = vmatpush.bf16.msra.mxu0 %v3198
  %5170 = vmatpush.bf16.msra.mxu0 %v3182
  %5171 = vmatpush.bf16.msra.mxu0 %v3166
  %5172 = vmatmul.bf16.gmra.mxu0 %v844
  %v5173 = vpop.f32.mrf.mxu0
  %v5174 = vadd.f32 %v809, %v5173
  %v5175 = vpop.f32.mrf.mxu0
  %5176 = vdwg.mxu0
  %5177 = vmatpush.bf16.msra.mxu0 %v3406
  %5178 = vmatpush.bf16.msra.mxu0 %v3390
  %5179 = vmatpush.bf16.msra.mxu0 %v3374
  %5180 = vmatpush.bf16.msra.mxu0 %v3358
  %5181 = vmatpush.bf16.msra.mxu0 %v3342
  %5182 = vmatpush.bf16.msra.mxu0 %v3326
  %5183 = vmatpush.bf16.msra.mxu0 %v3310
  %5184 = vmatpush.bf16.msra.mxu0 %v3294
  %5185 = vmatmul.bf16.gmra.mxu0 %v845
  %v5186 = vpop.f32.mrf.mxu0
  %v5187 = vadd.f32 %v5174, %v5186
  %v5188 = vpop.f32.mrf.mxu0
  %5189 = vdwg.mxu0
  %5190 = vmatpush.bf16.msra.mxu0 %v3534
  %5191 = vmatpush.bf16.msra.mxu0 %v3518
  %5192 = vmatpush.bf16.msra.mxu0 %v3502
  %5193 = vmatpush.bf16.msra.mxu0 %v3486
  %5194 = vmatpush.bf16.msra.mxu0 %v3470
  %5195 = vmatpush.bf16.msra.mxu0 %v3454
  %5196 = vmatpush.bf16.msra.mxu0 %v3438
  %5197 = vmatpush.bf16.msra.mxu0 %v3422
  %5198 = vmatmul.bf16.gmra.mxu0 %v846
  %v5199 = vpop.f32.mrf.mxu0
  %v5200 = vadd.f32 %v5187, %v5199
  %v5201 = vpop.f32.mrf.mxu0
  %5202 = vdwg.mxu0
  %5203 = vmatpush.bf16.msra.mxu0 %v3662
  %5204 = vmatpush.bf16.msra.mxu0 %v3646
  %5205 = vmatpush.bf16.msra.mxu0 %v3630
  %5206 = vmatpush.bf16.msra.mxu0 %v3614
  %5207 = vmatpush.bf16.msra.mxu0 %v3598
  %5208 = vmatpush.bf16.msra.mxu0 %v3582
  %5209 = vmatpush.bf16.msra.mxu0 %v3566
  %5210 = vmatpush.bf16.msra.mxu0 %v3550
  %5211 = vmatmul.bf16.gmra.mxu0 %v847
  %v5212 = vpop.f32.mrf.mxu0
  %v5213 = vadd.f32 %v5200, %v5212
  %v5214 = vpop.f32.mrf.mxu0
  %5215 = vdwg.mxu0
  %5216 = vmatpush.bf16.msra.mxu0 %v3790
  %5217 = vmatpush.bf16.msra.mxu0 %v3774
  %5218 = vmatpush.bf16.msra.mxu0 %v3758
  %5219 = vmatpush.bf16.msra.mxu0 %v3742
  %5220 = vmatpush.bf16.msra.mxu0 %v3726
  %5221 = vmatpush.bf16.msra.mxu0 %v3710
  %5222 = vmatpush.bf16.msra.mxu0 %v3694
  %5223 = vmatpush.bf16.msra.mxu0 %v3678
  %5224 = vmatmul.bf16.gmra.mxu0 %v848
  %v5225 = vpop.f32.mrf.mxu0
  %v5226 = vadd.f32 %v5213, %v5225
  %v5227 = vpop.f32.mrf.mxu0
  %5228 = vdwg.mxu0
  %5229 = vmatpush.bf16.msra.mxu0 %v3918
  %5230 = vmatpush.bf16.msra.mxu0 %v3902
  %5231 = vmatpush.bf16.msra.mxu0 %v3886
  %5232 = vmatpush.bf16.msra.mxu0 %v3870
  %5233 = vmatpush.bf16.msra.mxu0 %v3854
  %5234 = vmatpush.bf16.msra.mxu0 %v3838
  %5235 = vmatpush.bf16.msra.mxu0 %v3822
  %5236 = vmatpush.bf16.msra.mxu0 %v3806
  %5237 = vmatmul.bf16.gmra.mxu0 %v849
  %v5238 = vpop.f32.mrf.mxu0
  %v5239 = vadd.f32 %v5226, %v5238
  %v5240 = vpop.f32.mrf.mxu0
  %5241 = vdwg.mxu0
  %5242 = vmatpush.bf16.msra.mxu0 %v3279
  %5243 = vmatpush.bf16.msra.mxu0 %v3263
  %5244 = vmatpush.bf16.msra.mxu0 %v3247
  %5245 = vmatpush.bf16.msra.mxu0 %v3231
  %5246 = vmatpush.bf16.msra.mxu0 %v3215
  %5247 = vmatpush.bf16.msra.mxu0 %v3199
  %5248 = vmatpush.bf16.msra.mxu0 %v3183
  %5249 = vmatpush.bf16.msra.mxu0 %v3167
  %5250 = vmatmul.bf16.gmra.mxu0 %v844
  %v5251 = vpop.f32.mrf.mxu0
  %v5252 = vadd.f32 %v810, %v5251
  %v5253 = vpop.f32.mrf.mxu0
  %5254 = vdwg.mxu0
  %5255 = vmatpush.bf16.msra.mxu0 %v3407
  %5256 = vmatpush.bf16.msra.mxu0 %v3391
  %5257 = vmatpush.bf16.msra.mxu0 %v3375
  %5258 = vmatpush.bf16.msra.mxu0 %v3359
  %5259 = vmatpush.bf16.msra.mxu0 %v3343
  %5260 = vmatpush.bf16.msra.mxu0 %v3327
  %5261 = vmatpush.bf16.msra.mxu0 %v3311
  %5262 = vmatpush.bf16.msra.mxu0 %v3295
  %5263 = vmatmul.bf16.gmra.mxu0 %v845
  %v5264 = vpop.f32.mrf.mxu0
  %v5265 = vadd.f32 %v5252, %v5264
  %v5266 = vpop.f32.mrf.mxu0
  %5267 = vdwg.mxu0
  %5268 = vmatpush.bf16.msra.mxu0 %v3535
  %5269 = vmatpush.bf16.msra.mxu0 %v3519
  %5270 = vmatpush.bf16.msra.mxu0 %v3503
  %5271 = vmatpush.bf16.msra.mxu0 %v3487
  %5272 = vmatpush.bf16.msra.mxu0 %v3471
  %5273 = vmatpush.bf16.msra.mxu0 %v3455
  %5274 = vmatpush.bf16.msra.mxu0 %v3439
  %5275 = vmatpush.bf16.msra.mxu0 %v3423
  %5276 = vmatmul.bf16.gmra.mxu0 %v846
  %v5277 = vpop.f32.mrf.mxu0
  %v5278 = vadd.f32 %v5265, %v5277
  %v5279 = vpop.f32.mrf.mxu0
  %5280 = vdwg.mxu0
  %5281 = vmatpush.bf16.msra.mxu0 %v3663
  %5282 = vmatpush.bf16.msra.mxu0 %v3647
  %5283 = vmatpush.bf16.msra.mxu0 %v3631
  %5284 = vmatpush.bf16.msra.mxu0 %v3615
  %5285 = vmatpush.bf16.msra.mxu0 %v3599
  %5286 = vmatpush.bf16.msra.mxu0 %v3583
  %5287 = vmatpush.bf16.msra.mxu0 %v3567
  %5288 = vmatpush.bf16.msra.mxu0 %v3551
  %5289 = vmatmul.bf16.gmra.mxu0 %v847
  %v5290 = vpop.f32.mrf.mxu0
  %v5291 = vadd.f32 %v5278, %v5290
  %v5292 = vpop.f32.mrf.mxu0
  %5293 = vdwg.mxu0
  %5294 = vmatpush.bf16.msra.mxu0 %v3791
  %5295 = vmatpush.bf16.msra.mxu0 %v3775
  %5296 = vmatpush.bf16.msra.mxu0 %v3759
  %5297 = vmatpush.bf16.msra.mxu0 %v3743
  %5298 = vmatpush.bf16.msra.mxu0 %v3727
  %5299 = vmatpush.bf16.msra.mxu0 %v3711
  %5300 = vmatpush.bf16.msra.mxu0 %v3695
  %5301 = vmatpush.bf16.msra.mxu0 %v3679
  %5302 = vmatmul.bf16.gmra.mxu0 %v848
  %v5303 = vpop.f32.mrf.mxu0
  %v5304 = vadd.f32 %v5291, %v5303
  %v5305 = vpop.f32.mrf.mxu0
  %5306 = vdwg.mxu0
  %5307 = vmatpush.bf16.msra.mxu0 %v3919
  %5308 = vmatpush.bf16.msra.mxu0 %v3903
  %5309 = vmatpush.bf16.msra.mxu0 %v3887
  %5310 = vmatpush.bf16.msra.mxu0 %v3871
  %5311 = vmatpush.bf16.msra.mxu0 %v3855
  %5312 = vmatpush.bf16.msra.mxu0 %v3839
  %5313 = vmatpush.bf16.msra.mxu0 %v3823
  %5314 = vmatpush.bf16.msra.mxu0 %v3807
  %5315 = vmatmul.bf16.gmra.mxu0 %v849
  %v5316 = vpop.f32.mrf.mxu0
  %v5317 = vadd.f32 %v5304, %v5316
  %v5318 = vpop.f32.mrf.mxu0
  %5319 = vdwg.mxu0
  %5320 = vmatpush.bf16.msra.mxu0 %v3280
  %5321 = vmatpush.bf16.msra.mxu0 %v3264
  %5322 = vmatpush.bf16.msra.mxu0 %v3248
  %5323 = vmatpush.bf16.msra.mxu0 %v3232
  %5324 = vmatpush.bf16.msra.mxu0 %v3216
  %5325 = vmatpush.bf16.msra.mxu0 %v3200
  %5326 = vmatpush.bf16.msra.mxu0 %v3184
  %5327 = vmatpush.bf16.msra.mxu0 %v3168
  %5328 = vmatmul.bf16.gmra.mxu0 %v844
  %v5329 = vpop.f32.mrf.mxu0
  %v5330 = vadd.f32 %v811, %v5329
  %v5331 = vpop.f32.mrf.mxu0
  %5332 = vdwg.mxu0
  %5333 = vmatpush.bf16.msra.mxu0 %v3408
  %5334 = vmatpush.bf16.msra.mxu0 %v3392
  %5335 = vmatpush.bf16.msra.mxu0 %v3376
  %5336 = vmatpush.bf16.msra.mxu0 %v3360
  %5337 = vmatpush.bf16.msra.mxu0 %v3344
  %5338 = vmatpush.bf16.msra.mxu0 %v3328
  %5339 = vmatpush.bf16.msra.mxu0 %v3312
  %5340 = vmatpush.bf16.msra.mxu0 %v3296
  %5341 = vmatmul.bf16.gmra.mxu0 %v845
  %v5342 = vpop.f32.mrf.mxu0
  %v5343 = vadd.f32 %v5330, %v5342
  %v5344 = vpop.f32.mrf.mxu0
  %5345 = vdwg.mxu0
  %5346 = vmatpush.bf16.msra.mxu0 %v3536
  %5347 = vmatpush.bf16.msra.mxu0 %v3520
  %5348 = vmatpush.bf16.msra.mxu0 %v3504
  %5349 = vmatpush.bf16.msra.mxu0 %v3488
  %5350 = vmatpush.bf16.msra.mxu0 %v3472
  %5351 = vmatpush.bf16.msra.mxu0 %v3456
  %5352 = vmatpush.bf16.msra.mxu0 %v3440
  %5353 = vmatpush.bf16.msra.mxu0 %v3424
  %5354 = vmatmul.bf16.gmra.mxu0 %v846
  %v5355 = vpop.f32.mrf.mxu0
  %v5356 = vadd.f32 %v5343, %v5355
  %v5357 = vpop.f32.mrf.mxu0
  %5358 = vdwg.mxu0
  %5359 = vmatpush.bf16.msra.mxu0 %v3664
  %5360 = vmatpush.bf16.msra.mxu0 %v3648
  %5361 = vmatpush.bf16.msra.mxu0 %v3632
  %5362 = vmatpush.bf16.msra.mxu0 %v3616
  %5363 = vmatpush.bf16.msra.mxu0 %v3600
  %5364 = vmatpush.bf16.msra.mxu0 %v3584
  %5365 = vmatpush.bf16.msra.mxu0 %v3568
  %5366 = vmatpush.bf16.msra.mxu0 %v3552
  %5367 = vmatmul.bf16.gmra.mxu0 %v847
  %v5368 = vpop.f32.mrf.mxu0
  %v5369 = vadd.f32 %v5356, %v5368
  %v5370 = vpop.f32.mrf.mxu0
  %5371 = vdwg.mxu0
  %5372 = vmatpush.bf16.msra.mxu0 %v3792
  %5373 = vmatpush.bf16.msra.mxu0 %v3776
  %5374 = vmatpush.bf16.msra.mxu0 %v3760
  %5375 = vmatpush.bf16.msra.mxu0 %v3744
  %5376 = vmatpush.bf16.msra.mxu0 %v3728
  %5377 = vmatpush.bf16.msra.mxu0 %v3712
  %5378 = vmatpush.bf16.msra.mxu0 %v3696
  %5379 = vmatpush.bf16.msra.mxu0 %v3680
  %5380 = vmatmul.bf16.gmra.mxu0 %v848
  %v5381 = vpop.f32.mrf.mxu0
  %v5382 = vadd.f32 %v5369, %v5381
  %v5383 = vpop.f32.mrf.mxu0
  %5384 = vdwg.mxu0
  %5385 = vmatpush.bf16.msra.mxu0 %v3920
  %5386 = vmatpush.bf16.msra.mxu0 %v3904
  %5387 = vmatpush.bf16.msra.mxu0 %v3888
  %5388 = vmatpush.bf16.msra.mxu0 %v3872
  %5389 = vmatpush.bf16.msra.mxu0 %v3856
  %5390 = vmatpush.bf16.msra.mxu0 %v3840
  %5391 = vmatpush.bf16.msra.mxu0 %v3824
  %5392 = vmatpush.bf16.msra.mxu0 %v3808
  %5393 = vmatmul.bf16.gmra.mxu0 %v849
  %v5394 = vpop.f32.mrf.mxu0
  %v5395 = vadd.f32 %v5382, %v5394
  %v5396 = vpop.f32.mrf.mxu0
  %5397 = vdwg.mxu0
  %5398 = vmatpush.bf16.msra.mxu0 %v3281
  %5399 = vmatpush.bf16.msra.mxu0 %v3265
  %5400 = vmatpush.bf16.msra.mxu0 %v3249
  %5401 = vmatpush.bf16.msra.mxu0 %v3233
  %5402 = vmatpush.bf16.msra.mxu0 %v3217
  %5403 = vmatpush.bf16.msra.mxu0 %v3201
  %5404 = vmatpush.bf16.msra.mxu0 %v3185
  %5405 = vmatpush.bf16.msra.mxu0 %v3169
  %5406 = vmatmul.bf16.gmra.mxu0 %v844
  %v5407 = vpop.f32.mrf.mxu0
  %v5408 = vadd.f32 %v812, %v5407
  %v5409 = vpop.f32.mrf.mxu0
  %5410 = vdwg.mxu0
  %5411 = vmatpush.bf16.msra.mxu0 %v3409
  %5412 = vmatpush.bf16.msra.mxu0 %v3393
  %5413 = vmatpush.bf16.msra.mxu0 %v3377
  %5414 = vmatpush.bf16.msra.mxu0 %v3361
  %5415 = vmatpush.bf16.msra.mxu0 %v3345
  %5416 = vmatpush.bf16.msra.mxu0 %v3329
  %5417 = vmatpush.bf16.msra.mxu0 %v3313
  %5418 = vmatpush.bf16.msra.mxu0 %v3297
  %5419 = vmatmul.bf16.gmra.mxu0 %v845
  %v5420 = vpop.f32.mrf.mxu0
  %v5421 = vadd.f32 %v5408, %v5420
  %v5422 = vpop.f32.mrf.mxu0
  %5423 = vdwg.mxu0
  %5424 = vmatpush.bf16.msra.mxu0 %v3537
  %5425 = vmatpush.bf16.msra.mxu0 %v3521
  %5426 = vmatpush.bf16.msra.mxu0 %v3505
  %5427 = vmatpush.bf16.msra.mxu0 %v3489
  %5428 = vmatpush.bf16.msra.mxu0 %v3473
  %5429 = vmatpush.bf16.msra.mxu0 %v3457
  %5430 = vmatpush.bf16.msra.mxu0 %v3441
  %5431 = vmatpush.bf16.msra.mxu0 %v3425
  %5432 = vmatmul.bf16.gmra.mxu0 %v846
  %v5433 = vpop.f32.mrf.mxu0
  %v5434 = vadd.f32 %v5421, %v5433
  %v5435 = vpop.f32.mrf.mxu0
  %5436 = vdwg.mxu0
  %5437 = vmatpush.bf16.msra.mxu0 %v3665
  %5438 = vmatpush.bf16.msra.mxu0 %v3649
  %5439 = vmatpush.bf16.msra.mxu0 %v3633
  %5440 = vmatpush.bf16.msra.mxu0 %v3617
  %5441 = vmatpush.bf16.msra.mxu0 %v3601
  %5442 = vmatpush.bf16.msra.mxu0 %v3585
  %5443 = vmatpush.bf16.msra.mxu0 %v3569
  %5444 = vmatpush.bf16.msra.mxu0 %v3553
  %5445 = vmatmul.bf16.gmra.mxu0 %v847
  %v5446 = vpop.f32.mrf.mxu0
  %v5447 = vadd.f32 %v5434, %v5446
  %v5448 = vpop.f32.mrf.mxu0
  %5449 = vdwg.mxu0
  %5450 = vmatpush.bf16.msra.mxu0 %v3793
  %5451 = vmatpush.bf16.msra.mxu0 %v3777
  %5452 = vmatpush.bf16.msra.mxu0 %v3761
  %5453 = vmatpush.bf16.msra.mxu0 %v3745
  %5454 = vmatpush.bf16.msra.mxu0 %v3729
  %5455 = vmatpush.bf16.msra.mxu0 %v3713
  %5456 = vmatpush.bf16.msra.mxu0 %v3697
  %5457 = vmatpush.bf16.msra.mxu0 %v3681
  %5458 = vmatmul.bf16.gmra.mxu0 %v848
  %v5459 = vpop.f32.mrf.mxu0
  %v5460 = vadd.f32 %v5447, %v5459
  %v5461 = vpop.f32.mrf.mxu0
  %5462 = vdwg.mxu0
  %5463 = vmatpush.bf16.msra.mxu0 %v3921
  %5464 = vmatpush.bf16.msra.mxu0 %v3905
  %5465 = vmatpush.bf16.msra.mxu0 %v3889
  %5466 = vmatpush.bf16.msra.mxu0 %v3873
  %5467 = vmatpush.bf16.msra.mxu0 %v3857
  %5468 = vmatpush.bf16.msra.mxu0 %v3841
  %5469 = vmatpush.bf16.msra.mxu0 %v3825
  %5470 = vmatpush.bf16.msra.mxu0 %v3809
  %5471 = vmatmul.bf16.gmra.mxu0 %v849
  %v5472 = vpop.f32.mrf.mxu0
  %v5473 = vadd.f32 %v5460, %v5472
  %v5474 = vpop.f32.mrf.mxu0
  %5475 = vdwg.mxu0
  %5476 = vmatpush.bf16.msra.mxu0 %v3282
  %5477 = vmatpush.bf16.msra.mxu0 %v3266
  %5478 = vmatpush.bf16.msra.mxu0 %v3250
  %5479 = vmatpush.bf16.msra.mxu0 %v3234
  %5480 = vmatpush.bf16.msra.mxu0 %v3218
  %5481 = vmatpush.bf16.msra.mxu0 %v3202
  %5482 = vmatpush.bf16.msra.mxu0 %v3186
  %5483 = vmatpush.bf16.msra.mxu0 %v3170
  %5484 = vmatmul.bf16.gmra.mxu0 %v844
  %v5485 = vpop.f32.mrf.mxu0
  %v5486 = vadd.f32 %v813, %v5485
  %v5487 = vpop.f32.mrf.mxu0
  %5488 = vdwg.mxu0
  %5489 = vmatpush.bf16.msra.mxu0 %v3410
  %5490 = vmatpush.bf16.msra.mxu0 %v3394
  %5491 = vmatpush.bf16.msra.mxu0 %v3378
  %5492 = vmatpush.bf16.msra.mxu0 %v3362
  %5493 = vmatpush.bf16.msra.mxu0 %v3346
  %5494 = vmatpush.bf16.msra.mxu0 %v3330
  %5495 = vmatpush.bf16.msra.mxu0 %v3314
  %5496 = vmatpush.bf16.msra.mxu0 %v3298
  %5497 = vmatmul.bf16.gmra.mxu0 %v845
  %v5498 = vpop.f32.mrf.mxu0
  %v5499 = vadd.f32 %v5486, %v5498
  %v5500 = vpop.f32.mrf.mxu0
  %5501 = vdwg.mxu0
  %5502 = vmatpush.bf16.msra.mxu0 %v3538
  %5503 = vmatpush.bf16.msra.mxu0 %v3522
  %5504 = vmatpush.bf16.msra.mxu0 %v3506
  %5505 = vmatpush.bf16.msra.mxu0 %v3490
  %5506 = vmatpush.bf16.msra.mxu0 %v3474
  %5507 = vmatpush.bf16.msra.mxu0 %v3458
  %5508 = vmatpush.bf16.msra.mxu0 %v3442
  %5509 = vmatpush.bf16.msra.mxu0 %v3426
  %5510 = vmatmul.bf16.gmra.mxu0 %v846
  %v5511 = vpop.f32.mrf.mxu0
  %v5512 = vadd.f32 %v5499, %v5511
  %v5513 = vpop.f32.mrf.mxu0
  %5514 = vdwg.mxu0
  %5515 = vmatpush.bf16.msra.mxu0 %v3666
  %5516 = vmatpush.bf16.msra.mxu0 %v3650
  %5517 = vmatpush.bf16.msra.mxu0 %v3634
  %5518 = vmatpush.bf16.msra.mxu0 %v3618
  %5519 = vmatpush.bf16.msra.mxu0 %v3602
  %5520 = vmatpush.bf16.msra.mxu0 %v3586
  %5521 = vmatpush.bf16.msra.mxu0 %v3570
  %5522 = vmatpush.bf16.msra.mxu0 %v3554
  %5523 = vmatmul.bf16.gmra.mxu0 %v847
  %v5524 = vpop.f32.mrf.mxu0
  %v5525 = vadd.f32 %v5512, %v5524
  %v5526 = vpop.f32.mrf.mxu0
  %5527 = vdwg.mxu0
  %5528 = vmatpush.bf16.msra.mxu0 %v3794
  %5529 = vmatpush.bf16.msra.mxu0 %v3778
  %5530 = vmatpush.bf16.msra.mxu0 %v3762
  %5531 = vmatpush.bf16.msra.mxu0 %v3746
  %5532 = vmatpush.bf16.msra.mxu0 %v3730
  %5533 = vmatpush.bf16.msra.mxu0 %v3714
  %5534 = vmatpush.bf16.msra.mxu0 %v3698
  %5535 = vmatpush.bf16.msra.mxu0 %v3682
  %5536 = vmatmul.bf16.gmra.mxu0 %v848
  %v5537 = vpop.f32.mrf.mxu0
  %v5538 = vadd.f32 %v5525, %v5537
  %v5539 = vpop.f32.mrf.mxu0
  %5540 = vdwg.mxu0
  %5541 = vmatpush.bf16.msra.mxu0 %v3922
  %5542 = vmatpush.bf16.msra.mxu0 %v3906
  %5543 = vmatpush.bf16.msra.mxu0 %v3890
  %5544 = vmatpush.bf16.msra.mxu0 %v3874
  %5545 = vmatpush.bf16.msra.mxu0 %v3858
  %5546 = vmatpush.bf16.msra.mxu0 %v3842
  %5547 = vmatpush.bf16.msra.mxu0 %v3826
  %5548 = vmatpush.bf16.msra.mxu0 %v3810
  %5549 = vmatmul.bf16.gmra.mxu0 %v849
  %v5550 = vpop.f32.mrf.mxu0
  %v5551 = vadd.f32 %v5538, %v5550
  %v5552 = vpop.f32.mrf.mxu0
  %5553 = vdwg.mxu0
  %5554 = vmatpush.bf16.msra.mxu0 %v3283
  %5555 = vmatpush.bf16.msra.mxu0 %v3267
  %5556 = vmatpush.bf16.msra.mxu0 %v3251
  %5557 = vmatpush.bf16.msra.mxu0 %v3235
  %5558 = vmatpush.bf16.msra.mxu0 %v3219
  %5559 = vmatpush.bf16.msra.mxu0 %v3203
  %5560 = vmatpush.bf16.msra.mxu0 %v3187
  %5561 = vmatpush.bf16.msra.mxu0 %v3171
  %5562 = vmatmul.bf16.gmra.mxu0 %v844
  %v5563 = vpop.f32.mrf.mxu0
  %v5564 = vadd.f32 %v814, %v5563
  %v5565 = vpop.f32.mrf.mxu0
  %5566 = vdwg.mxu0
  %5567 = vmatpush.bf16.msra.mxu0 %v3411
  %5568 = vmatpush.bf16.msra.mxu0 %v3395
  %5569 = vmatpush.bf16.msra.mxu0 %v3379
  %5570 = vmatpush.bf16.msra.mxu0 %v3363
  %5571 = vmatpush.bf16.msra.mxu0 %v3347
  %5572 = vmatpush.bf16.msra.mxu0 %v3331
  %5573 = vmatpush.bf16.msra.mxu0 %v3315
  %5574 = vmatpush.bf16.msra.mxu0 %v3299
  %5575 = vmatmul.bf16.gmra.mxu0 %v845
  %v5576 = vpop.f32.mrf.mxu0
  %v5577 = vadd.f32 %v5564, %v5576
  %v5578 = vpop.f32.mrf.mxu0
  %5579 = vdwg.mxu0
  %5580 = vmatpush.bf16.msra.mxu0 %v3539
  %5581 = vmatpush.bf16.msra.mxu0 %v3523
  %5582 = vmatpush.bf16.msra.mxu0 %v3507
  %5583 = vmatpush.bf16.msra.mxu0 %v3491
  %5584 = vmatpush.bf16.msra.mxu0 %v3475
  %5585 = vmatpush.bf16.msra.mxu0 %v3459
  %5586 = vmatpush.bf16.msra.mxu0 %v3443
  %5587 = vmatpush.bf16.msra.mxu0 %v3427
  %5588 = vmatmul.bf16.gmra.mxu0 %v846
  %v5589 = vpop.f32.mrf.mxu0
  %v5590 = vadd.f32 %v5577, %v5589
  %v5591 = vpop.f32.mrf.mxu0
  %5592 = vdwg.mxu0
  %5593 = vmatpush.bf16.msra.mxu0 %v3667
  %5594 = vmatpush.bf16.msra.mxu0 %v3651
  %5595 = vmatpush.bf16.msra.mxu0 %v3635
  %5596 = vmatpush.bf16.msra.mxu0 %v3619
  %5597 = vmatpush.bf16.msra.mxu0 %v3603
  %5598 = vmatpush.bf16.msra.mxu0 %v3587
  %5599 = vmatpush.bf16.msra.mxu0 %v3571
  %5600 = vmatpush.bf16.msra.mxu0 %v3555
  %5601 = vmatmul.bf16.gmra.mxu0 %v847
  %v5602 = vpop.f32.mrf.mxu0
  %v5603 = vadd.f32 %v5590, %v5602
  %v5604 = vpop.f32.mrf.mxu0
  %5605 = vdwg.mxu0
  %5606 = vmatpush.bf16.msra.mxu0 %v3795
  %5607 = vmatpush.bf16.msra.mxu0 %v3779
  %5608 = vmatpush.bf16.msra.mxu0 %v3763
  %5609 = vmatpush.bf16.msra.mxu0 %v3747
  %5610 = vmatpush.bf16.msra.mxu0 %v3731
  %5611 = vmatpush.bf16.msra.mxu0 %v3715
  %5612 = vmatpush.bf16.msra.mxu0 %v3699
  %5613 = vmatpush.bf16.msra.mxu0 %v3683
  %5614 = vmatmul.bf16.gmra.mxu0 %v848
  %v5615 = vpop.f32.mrf.mxu0
  %v5616 = vadd.f32 %v5603, %v5615
  %v5617 = vpop.f32.mrf.mxu0
  %5618 = vdwg.mxu0
  %5619 = vmatpush.bf16.msra.mxu0 %v3923
  %5620 = vmatpush.bf16.msra.mxu0 %v3907
  %5621 = vmatpush.bf16.msra.mxu0 %v3891
  %5622 = vmatpush.bf16.msra.mxu0 %v3875
  %5623 = vmatpush.bf16.msra.mxu0 %v3859
  %5624 = vmatpush.bf16.msra.mxu0 %v3843
  %5625 = vmatpush.bf16.msra.mxu0 %v3827
  %5626 = vmatpush.bf16.msra.mxu0 %v3811
  %5627 = vmatmul.bf16.gmra.mxu0 %v849
  %v5628 = vpop.f32.mrf.mxu0
  %v5629 = vadd.f32 %v5616, %v5628
  %v5630 = vpop.f32.mrf.mxu0
  %5631 = vdwg.mxu0
  %5632 = vmatpush.bf16.msra.mxu0 %v3284
  %5633 = vmatpush.bf16.msra.mxu0 %v3268
  %5634 = vmatpush.bf16.msra.mxu0 %v3252
  %5635 = vmatpush.bf16.msra.mxu0 %v3236
  %5636 = vmatpush.bf16.msra.mxu0 %v3220
  %5637 = vmatpush.bf16.msra.mxu0 %v3204
  %5638 = vmatpush.bf16.msra.mxu0 %v3188
  %5639 = vmatpush.bf16.msra.mxu0 %v3172
  %5640 = vmatmul.bf16.gmra.mxu0 %v844
  %v5641 = vpop.f32.mrf.mxu0
  %v5642 = vadd.f32 %v815, %v5641
  %v5643 = vpop.f32.mrf.mxu0
  %5644 = vdwg.mxu0
  %5645 = vmatpush.bf16.msra.mxu0 %v3412
  %5646 = vmatpush.bf16.msra.mxu0 %v3396
  %5647 = vmatpush.bf16.msra.mxu0 %v3380
  %5648 = vmatpush.bf16.msra.mxu0 %v3364
  %5649 = vmatpush.bf16.msra.mxu0 %v3348
  %5650 = vmatpush.bf16.msra.mxu0 %v3332
  %5651 = vmatpush.bf16.msra.mxu0 %v3316
  %5652 = vmatpush.bf16.msra.mxu0 %v3300
  %5653 = vmatmul.bf16.gmra.mxu0 %v845
  %v5654 = vpop.f32.mrf.mxu0
  %v5655 = vadd.f32 %v5642, %v5654
  %v5656 = vpop.f32.mrf.mxu0
  %5657 = vdwg.mxu0
  %5658 = vmatpush.bf16.msra.mxu0 %v3540
  %5659 = vmatpush.bf16.msra.mxu0 %v3524
  %5660 = vmatpush.bf16.msra.mxu0 %v3508
  %5661 = vmatpush.bf16.msra.mxu0 %v3492
  %5662 = vmatpush.bf16.msra.mxu0 %v3476
  %5663 = vmatpush.bf16.msra.mxu0 %v3460
  %5664 = vmatpush.bf16.msra.mxu0 %v3444
  %5665 = vmatpush.bf16.msra.mxu0 %v3428
  %5666 = vmatmul.bf16.gmra.mxu0 %v846
  %v5667 = vpop.f32.mrf.mxu0
  %v5668 = vadd.f32 %v5655, %v5667
  %v5669 = vpop.f32.mrf.mxu0
  %5670 = vdwg.mxu0
  %5671 = vmatpush.bf16.msra.mxu0 %v3668
  %5672 = vmatpush.bf16.msra.mxu0 %v3652
  %5673 = vmatpush.bf16.msra.mxu0 %v3636
  %5674 = vmatpush.bf16.msra.mxu0 %v3620
  %5675 = vmatpush.bf16.msra.mxu0 %v3604
  %5676 = vmatpush.bf16.msra.mxu0 %v3588
  %5677 = vmatpush.bf16.msra.mxu0 %v3572
  %5678 = vmatpush.bf16.msra.mxu0 %v3556
  %5679 = vmatmul.bf16.gmra.mxu0 %v847
  %v5680 = vpop.f32.mrf.mxu0
  %v5681 = vadd.f32 %v5668, %v5680
  %v5682 = vpop.f32.mrf.mxu0
  %5683 = vdwg.mxu0
  %5684 = vmatpush.bf16.msra.mxu0 %v3796
  %5685 = vmatpush.bf16.msra.mxu0 %v3780
  %5686 = vmatpush.bf16.msra.mxu0 %v3764
  %5687 = vmatpush.bf16.msra.mxu0 %v3748
  %5688 = vmatpush.bf16.msra.mxu0 %v3732
  %5689 = vmatpush.bf16.msra.mxu0 %v3716
  %5690 = vmatpush.bf16.msra.mxu0 %v3700
  %5691 = vmatpush.bf16.msra.mxu0 %v3684
  %5692 = vmatmul.bf16.gmra.mxu0 %v848
  %v5693 = vpop.f32.mrf.mxu0
  %v5694 = vadd.f32 %v5681, %v5693
  %v5695 = vpop.f32.mrf.mxu0
  %5696 = vdwg.mxu0
  %5697 = vmatpush.bf16.msra.mxu0 %v3924
  %5698 = vmatpush.bf16.msra.mxu0 %v3908
  %5699 = vmatpush.bf16.msra.mxu0 %v3892
  %5700 = vmatpush.bf16.msra.mxu0 %v3876
  %5701 = vmatpush.bf16.msra.mxu0 %v3860
  %5702 = vmatpush.bf16.msra.mxu0 %v3844
  %5703 = vmatpush.bf16.msra.mxu0 %v3828
  %5704 = vmatpush.bf16.msra.mxu0 %v3812
  %5705 = vmatmul.bf16.gmra.mxu0 %v849
  %v5706 = vpop.f32.mrf.mxu0
  %v5707 = vadd.f32 %v5694, %v5706
  %v5708 = vpop.f32.mrf.mxu0
  %5709 = vdwg.mxu0
  %5710 = vmatpush.bf16.msra.mxu0 %v3285
  %5711 = vmatpush.bf16.msra.mxu0 %v3269
  %5712 = vmatpush.bf16.msra.mxu0 %v3253
  %5713 = vmatpush.bf16.msra.mxu0 %v3237
  %5714 = vmatpush.bf16.msra.mxu0 %v3221
  %5715 = vmatpush.bf16.msra.mxu0 %v3205
  %5716 = vmatpush.bf16.msra.mxu0 %v3189
  %5717 = vmatpush.bf16.msra.mxu0 %v3173
  %5718 = vmatmul.bf16.gmra.mxu0 %v844
  %v5719 = vpop.f32.mrf.mxu0
  %v5720 = vadd.f32 %v816, %v5719
  %v5721 = vpop.f32.mrf.mxu0
  %5722 = vdwg.mxu0
  %5723 = vmatpush.bf16.msra.mxu0 %v3413
  %5724 = vmatpush.bf16.msra.mxu0 %v3397
  %5725 = vmatpush.bf16.msra.mxu0 %v3381
  %5726 = vmatpush.bf16.msra.mxu0 %v3365
  %5727 = vmatpush.bf16.msra.mxu0 %v3349
  %5728 = vmatpush.bf16.msra.mxu0 %v3333
  %5729 = vmatpush.bf16.msra.mxu0 %v3317
  %5730 = vmatpush.bf16.msra.mxu0 %v3301
  %5731 = vmatmul.bf16.gmra.mxu0 %v845
  %v5732 = vpop.f32.mrf.mxu0
  %v5733 = vadd.f32 %v5720, %v5732
  %v5734 = vpop.f32.mrf.mxu0
  %5735 = vdwg.mxu0
  %5736 = vmatpush.bf16.msra.mxu0 %v3541
  %5737 = vmatpush.bf16.msra.mxu0 %v3525
  %5738 = vmatpush.bf16.msra.mxu0 %v3509
  %5739 = vmatpush.bf16.msra.mxu0 %v3493
  %5740 = vmatpush.bf16.msra.mxu0 %v3477
  %5741 = vmatpush.bf16.msra.mxu0 %v3461
  %5742 = vmatpush.bf16.msra.mxu0 %v3445
  %5743 = vmatpush.bf16.msra.mxu0 %v3429
  %5744 = vmatmul.bf16.gmra.mxu0 %v846
  %v5745 = vpop.f32.mrf.mxu0
  %v5746 = vadd.f32 %v5733, %v5745
  %v5747 = vpop.f32.mrf.mxu0
  %5748 = vdwg.mxu0
  %5749 = vmatpush.bf16.msra.mxu0 %v3669
  %5750 = vmatpush.bf16.msra.mxu0 %v3653
  %5751 = vmatpush.bf16.msra.mxu0 %v3637
  %5752 = vmatpush.bf16.msra.mxu0 %v3621
  %5753 = vmatpush.bf16.msra.mxu0 %v3605
  %5754 = vmatpush.bf16.msra.mxu0 %v3589
  %5755 = vmatpush.bf16.msra.mxu0 %v3573
  %5756 = vmatpush.bf16.msra.mxu0 %v3557
  %5757 = vmatmul.bf16.gmra.mxu0 %v847
  %v5758 = vpop.f32.mrf.mxu0
  %v5759 = vadd.f32 %v5746, %v5758
  %v5760 = vpop.f32.mrf.mxu0
  %5761 = vdwg.mxu0
  %5762 = vmatpush.bf16.msra.mxu0 %v3797
  %5763 = vmatpush.bf16.msra.mxu0 %v3781
  %5764 = vmatpush.bf16.msra.mxu0 %v3765
  %5765 = vmatpush.bf16.msra.mxu0 %v3749
  %5766 = vmatpush.bf16.msra.mxu0 %v3733
  %5767 = vmatpush.bf16.msra.mxu0 %v3717
  %5768 = vmatpush.bf16.msra.mxu0 %v3701
  %5769 = vmatpush.bf16.msra.mxu0 %v3685
  %5770 = vmatmul.bf16.gmra.mxu0 %v848
  %v5771 = vpop.f32.mrf.mxu0
  %v5772 = vadd.f32 %v5759, %v5771
  %v5773 = vpop.f32.mrf.mxu0
  %5774 = vdwg.mxu0
  %5775 = vmatpush.bf16.msra.mxu0 %v3925
  %5776 = vmatpush.bf16.msra.mxu0 %v3909
  %5777 = vmatpush.bf16.msra.mxu0 %v3893
  %5778 = vmatpush.bf16.msra.mxu0 %v3877
  %5779 = vmatpush.bf16.msra.mxu0 %v3861
  %5780 = vmatpush.bf16.msra.mxu0 %v3845
  %5781 = vmatpush.bf16.msra.mxu0 %v3829
  %5782 = vmatpush.bf16.msra.mxu0 %v3813
  %5783 = vmatmul.bf16.gmra.mxu0 %v849
  %v5784 = vpop.f32.mrf.mxu0
  %v5785 = vadd.f32 %v5772, %v5784
  %v5786 = vpop.f32.mrf.mxu0
  %5787 = vdwg.mxu0
  %5788 = vmatpush.bf16.msra.mxu0 %v3286
  %5789 = vmatpush.bf16.msra.mxu0 %v3270
  %5790 = vmatpush.bf16.msra.mxu0 %v3254
  %5791 = vmatpush.bf16.msra.mxu0 %v3238
  %5792 = vmatpush.bf16.msra.mxu0 %v3222
  %5793 = vmatpush.bf16.msra.mxu0 %v3206
  %5794 = vmatpush.bf16.msra.mxu0 %v3190
  %5795 = vmatpush.bf16.msra.mxu0 %v3174
  %5796 = vmatmul.bf16.gmra.mxu0 %v844
  %v5797 = vpop.f32.mrf.mxu0
  %v5798 = vadd.f32 %v817, %v5797
  %v5799 = vpop.f32.mrf.mxu0
  %5800 = vdwg.mxu0
  %5801 = vmatpush.bf16.msra.mxu0 %v3414
  %5802 = vmatpush.bf16.msra.mxu0 %v3398
  %5803 = vmatpush.bf16.msra.mxu0 %v3382
  %5804 = vmatpush.bf16.msra.mxu0 %v3366
  %5805 = vmatpush.bf16.msra.mxu0 %v3350
  %5806 = vmatpush.bf16.msra.mxu0 %v3334
  %5807 = vmatpush.bf16.msra.mxu0 %v3318
  %5808 = vmatpush.bf16.msra.mxu0 %v3302
  %5809 = vmatmul.bf16.gmra.mxu0 %v845
  %v5810 = vpop.f32.mrf.mxu0
  %v5811 = vadd.f32 %v5798, %v5810
  %v5812 = vpop.f32.mrf.mxu0
  %5813 = vdwg.mxu0
  %5814 = vmatpush.bf16.msra.mxu0 %v3542
  %5815 = vmatpush.bf16.msra.mxu0 %v3526
  %5816 = vmatpush.bf16.msra.mxu0 %v3510
  %5817 = vmatpush.bf16.msra.mxu0 %v3494
  %5818 = vmatpush.bf16.msra.mxu0 %v3478
  %5819 = vmatpush.bf16.msra.mxu0 %v3462
  %5820 = vmatpush.bf16.msra.mxu0 %v3446
  %5821 = vmatpush.bf16.msra.mxu0 %v3430
  %5822 = vmatmul.bf16.gmra.mxu0 %v846
  %v5823 = vpop.f32.mrf.mxu0
  %v5824 = vadd.f32 %v5811, %v5823
  %v5825 = vpop.f32.mrf.mxu0
  %5826 = vdwg.mxu0
  %5827 = vmatpush.bf16.msra.mxu0 %v3670
  %5828 = vmatpush.bf16.msra.mxu0 %v3654
  %5829 = vmatpush.bf16.msra.mxu0 %v3638
  %5830 = vmatpush.bf16.msra.mxu0 %v3622
  %5831 = vmatpush.bf16.msra.mxu0 %v3606
  %5832 = vmatpush.bf16.msra.mxu0 %v3590
  %5833 = vmatpush.bf16.msra.mxu0 %v3574
  %5834 = vmatpush.bf16.msra.mxu0 %v3558
  %5835 = vmatmul.bf16.gmra.mxu0 %v847
  %v5836 = vpop.f32.mrf.mxu0
  %v5837 = vadd.f32 %v5824, %v5836
  %v5838 = vpop.f32.mrf.mxu0
  %5839 = vdwg.mxu0
  %5840 = vmatpush.bf16.msra.mxu0 %v3798
  %5841 = vmatpush.bf16.msra.mxu0 %v3782
  %5842 = vmatpush.bf16.msra.mxu0 %v3766
  %5843 = vmatpush.bf16.msra.mxu0 %v3750
  %5844 = vmatpush.bf16.msra.mxu0 %v3734
  %5845 = vmatpush.bf16.msra.mxu0 %v3718
  %5846 = vmatpush.bf16.msra.mxu0 %v3702
  %5847 = vmatpush.bf16.msra.mxu0 %v3686
  %5848 = vmatmul.bf16.gmra.mxu0 %v848
  %v5849 = vpop.f32.mrf.mxu0
  %v5850 = vadd.f32 %v5837, %v5849
  %v5851 = vpop.f32.mrf.mxu0
  %5852 = vdwg.mxu0
  %5853 = vmatpush.bf16.msra.mxu0 %v3926
  %5854 = vmatpush.bf16.msra.mxu0 %v3910
  %5855 = vmatpush.bf16.msra.mxu0 %v3894
  %5856 = vmatpush.bf16.msra.mxu0 %v3878
  %5857 = vmatpush.bf16.msra.mxu0 %v3862
  %5858 = vmatpush.bf16.msra.mxu0 %v3846
  %5859 = vmatpush.bf16.msra.mxu0 %v3830
  %5860 = vmatpush.bf16.msra.mxu0 %v3814
  %5861 = vmatmul.bf16.gmra.mxu0 %v849
  %v5862 = vpop.f32.mrf.mxu0
  %v5863 = vadd.f32 %v5850, %v5862
  %v5864 = vpop.f32.mrf.mxu0
  %5865 = vdwg.mxu0
  %5866 = vmatpush.bf16.msra.mxu0 %v3287
  %5867 = vmatpush.bf16.msra.mxu0 %v3271
  %5868 = vmatpush.bf16.msra.mxu0 %v3255
  %5869 = vmatpush.bf16.msra.mxu0 %v3239
  %5870 = vmatpush.bf16.msra.mxu0 %v3223
  %5871 = vmatpush.bf16.msra.mxu0 %v3207
  %5872 = vmatpush.bf16.msra.mxu0 %v3191
  %5873 = vmatpush.bf16.msra.mxu0 %v3175
  %5874 = vmatmul.bf16.gmra.mxu0 %v844
  %v5875 = vpop.f32.mrf.mxu0
  %v5876 = vadd.f32 %v818, %v5875
  %v5877 = vpop.f32.mrf.mxu0
  %5878 = vdwg.mxu0
  %5879 = vmatpush.bf16.msra.mxu0 %v3415
  %5880 = vmatpush.bf16.msra.mxu0 %v3399
  %5881 = vmatpush.bf16.msra.mxu0 %v3383
  %5882 = vmatpush.bf16.msra.mxu0 %v3367
  %5883 = vmatpush.bf16.msra.mxu0 %v3351
  %5884 = vmatpush.bf16.msra.mxu0 %v3335
  %5885 = vmatpush.bf16.msra.mxu0 %v3319
  %5886 = vmatpush.bf16.msra.mxu0 %v3303
  %5887 = vmatmul.bf16.gmra.mxu0 %v845
  %v5888 = vpop.f32.mrf.mxu0
  %v5889 = vadd.f32 %v5876, %v5888
  %v5890 = vpop.f32.mrf.mxu0
  %5891 = vdwg.mxu0
  %5892 = vmatpush.bf16.msra.mxu0 %v3543
  %5893 = vmatpush.bf16.msra.mxu0 %v3527
  %5894 = vmatpush.bf16.msra.mxu0 %v3511
  %5895 = vmatpush.bf16.msra.mxu0 %v3495
  %5896 = vmatpush.bf16.msra.mxu0 %v3479
  %5897 = vmatpush.bf16.msra.mxu0 %v3463
  %5898 = vmatpush.bf16.msra.mxu0 %v3447
  %5899 = vmatpush.bf16.msra.mxu0 %v3431
  %5900 = vmatmul.bf16.gmra.mxu0 %v846
  %v5901 = vpop.f32.mrf.mxu0
  %v5902 = vadd.f32 %v5889, %v5901
  %v5903 = vpop.f32.mrf.mxu0
  %5904 = vdwg.mxu0
  %5905 = vmatpush.bf16.msra.mxu0 %v3671
  %5906 = vmatpush.bf16.msra.mxu0 %v3655
  %5907 = vmatpush.bf16.msra.mxu0 %v3639
  %5908 = vmatpush.bf16.msra.mxu0 %v3623
  %5909 = vmatpush.bf16.msra.mxu0 %v3607
  %5910 = vmatpush.bf16.msra.mxu0 %v3591
  %5911 = vmatpush.bf16.msra.mxu0 %v3575
  %5912 = vmatpush.bf16.msra.mxu0 %v3559
  %5913 = vmatmul.bf16.gmra.mxu0 %v847
  %v5914 = vpop.f32.mrf.mxu0
  %v5915 = vadd.f32 %v5902, %v5914
  %v5916 = vpop.f32.mrf.mxu0
  %5917 = vdwg.mxu0
  %5918 = vmatpush.bf16.msra.mxu0 %v3799
  %5919 = vmatpush.bf16.msra.mxu0 %v3783
  %5920 = vmatpush.bf16.msra.mxu0 %v3767
  %5921 = vmatpush.bf16.msra.mxu0 %v3751
  %5922 = vmatpush.bf16.msra.mxu0 %v3735
  %5923 = vmatpush.bf16.msra.mxu0 %v3719
  %5924 = vmatpush.bf16.msra.mxu0 %v3703
  %5925 = vmatpush.bf16.msra.mxu0 %v3687
  %5926 = vmatmul.bf16.gmra.mxu0 %v848
  %v5927 = vpop.f32.mrf.mxu0
  %v5928 = vadd.f32 %v5915, %v5927
  %v5929 = vpop.f32.mrf.mxu0
  %5930 = vdwg.mxu0
  %5931 = vmatpush.bf16.msra.mxu0 %v3927
  %5932 = vmatpush.bf16.msra.mxu0 %v3911
  %5933 = vmatpush.bf16.msra.mxu0 %v3895
  %5934 = vmatpush.bf16.msra.mxu0 %v3879
  %5935 = vmatpush.bf16.msra.mxu0 %v3863
  %5936 = vmatpush.bf16.msra.mxu0 %v3847
  %5937 = vmatpush.bf16.msra.mxu0 %v3831
  %5938 = vmatpush.bf16.msra.mxu0 %v3815
  %5939 = vmatmul.bf16.gmra.mxu0 %v849
  %v5940 = vpop.f32.mrf.mxu0
  %v5941 = vadd.f32 %v5928, %v5940
  %v5942 = vpop.f32.mrf.mxu0
  %5943 = vdwg.mxu0
  %v5944 = vmax.f32 %v4771, 0.0
  %v5945 = vmax.f32 %v4849, 0.0
  %v5946 = vmax.f32 %v4927, 0.0
  %v5947 = vmax.f32 %v5005, 0.0
  %v5948 = vmax.f32 %v5083, 0.0
  %v5949 = vmax.f32 %v5161, 0.0
  %v5950 = vmax.f32 %v5239, 0.0
  %v5951 = vmax.f32 %v5317, 0.0
  %v5952 = vmax.f32 %v5395, 0.0
  %v5953 = vmax.f32 %v5473, 0.0
  %v5954 = vmax.f32 %v5551, 0.0
  %v5955 = vmax.f32 %v5629, 0.0
  %v5956 = vmax.f32 %v5707, 0.0
  %v5957 = vmax.f32 %v5785, 0.0
  %v5958 = vmax.f32 %v5863, 0.0
  %v5959 = vmax.f32 %v5941, 0.0
  %v5960 = vmin.f32 %v5944, 1.0
  %v5961 = vmin.f32 %v5945, 1.0
  %v5962 = vmin.f32 %v5946, 1.0
  %v5963 = vmin.f32 %v5947, 1.0
  %v5964 = vmin.f32 %v5948, 1.0
  %v5965 = vmin.f32 %v5949, 1.0
  %v5966 = vmin.f32 %v5950, 1.0
  %v5967 = vmin.f32 %v5951, 1.0
  %v5968 = vmin.f32 %v5952, 1.0
  %v5969 = vmin.f32 %v5953, 1.0
  %v5970 = vmin.f32 %v5954, 1.0
  %v5971 = vmin.f32 %v5955, 1.0
  %v5972 = vmin.f32 %v5956, 1.0
  %v5973 = vmin.f32 %v5957, 1.0
  %v5974 = vmin.f32 %v5958, 1.0
  %v5975 = vmin.f32 %v5959, 1.0
  %v5976 = vmul.f32 %v5960, %v5960
  %v5977 = vmul.f32 %v5961, %v5961
  %v5978 = vmul.f32 %v5962, %v5962
  %v5979 = vmul.f32 %v5963, %v5963
  %v5980 = vmul.f32 %v5964, %v5964
  %v5981 = vmul.f32 %v5965, %v5965
  %v5982 = vmul.f32 %v5966, %v5966
  %v5983 = vmul.f32 %v5967, %v5967
  %v5984 = vmul.f32 %v5968, %v5968
  %v5985 = vmul.f32 %v5969, %v5969
  %v5986 = vmul.f32 %v5970, %v5970
  %v5987 = vmul.f32 %v5971, %v5971
  %v5988 = vmul.f32 %v5972, %v5972
  %v5989 = vmul.f32 %v5973, %v5973
  %v5990 = vmul.f32 %v5974, %v5974
  %v5991 = vmul.f32 %v5975, %v5975
  %v5992 = vadd.f32 %v5976, %v5984
  %v5993 = vadd.f32 %v5977, %v5985
  %v5994 = vadd.f32 %v5978, %v5986
  %v5995 = vadd.f32 %v5979, %v5987
  %v5996 = vadd.f32 %v5980, %v5988
  %v5997 = vadd.f32 %v5981, %v5989
  %v5998 = vadd.f32 %v5982, %v5990
  %v5999 = vadd.f32 %v5983, %v5991
  %v6000 = vsub.f32 %v5976, %v5984
  %v6001 = vsub.f32 %v5977, %v5985
  %v6002 = vsub.f32 %v5978, %v5986
  %v6003 = vsub.f32 %v5979, %v5987
  %v6004 = vsub.f32 %v5980, %v5988
  %v6005 = vsub.f32 %v5981, %v5989
  %v6006 = vsub.f32 %v5982, %v5990
  %v6007 = vsub.f32 %v5983, %v5991
  %v6008 = vld [vmem:[%s4] sm:$0xff]
  %v6010 = vperm.slane %v6008, 0
  %v6011 = vperm.slane %v6008, 1
  %v6012 = vperm.slane %v6008, 2
  %v6013 = vperm.slane %v6008, 3
  %v6014 = vperm.slane %v6008, 4
  %v6015 = vperm.slane %v6008, 5
  %v6016 = vperm.slane %v6008, 6
  %v6017 = vperm.slane %v6008, 7
  %v6026 = vmul.f32 %v5992, %v6010
  %v6027 = vmul.f32 %v5993, %v6011
  %v6028 = vmul.f32 %v5994, %v6012
  %v6029 = vmul.f32 %v5995, %v6013
  %v6030 = vmul.f32 %v5996, %v6014
  %v6031 = vmul.f32 %v5997, %v6015
  %v6032 = vmul.f32 %v5998, %v6016
  %v6033 = vmul.f32 %v5999, %v6017
  %v6034 = vadd.f32 %v6026, %v6027
  %v6035 = vadd.f32 %v6034, %v6028
  %v6036 = vadd.f32 %v6035, %v6029
  %v6037 = vadd.f32 %v6036, %v6030
  %v6038 = vadd.f32 %v6037, %v6031
  %v6039 = vadd.f32 %v6038, %v6032
  %v6040 = vadd.f32 %v6039, %v6033
  %6041 = vadd.xlane.f32.xlu0 %v6040
  %v6042 = vpop.xlane.xlu0 %6041
  %v6043 = vld [vmem:[%s5] sm:$0xff]
  %v6045 = vperm.slane %v6043, 0
  %v6046 = vperm.slane %v6043, 1
  %v6047 = vperm.slane %v6043, 2
  %v6048 = vperm.slane %v6043, 3
  %v6049 = vperm.slane %v6043, 4
  %v6050 = vperm.slane %v6043, 5
  %v6051 = vperm.slane %v6043, 6
  %v6052 = vperm.slane %v6043, 7
  %v6061 = vmul.f32 %v6000, %v6045
  %v6062 = vmul.f32 %v6001, %v6046
  %v6063 = vmul.f32 %v6002, %v6047
  %v6064 = vmul.f32 %v6003, %v6048
  %v6065 = vmul.f32 %v6004, %v6049
  %v6066 = vmul.f32 %v6005, %v6050
  %v6067 = vmul.f32 %v6006, %v6051
  %v6068 = vmul.f32 %v6007, %v6052
  %v6069 = vadd.f32 %v6061, %v6062
  %v6070 = vadd.f32 %v6069, %v6063
  %v6071 = vadd.f32 %v6070, %v6064
  %v6072 = vadd.f32 %v6071, %v6065
  %v6073 = vadd.f32 %v6072, %v6066
  %v6074 = vadd.f32 %v6073, %v6067
  %v6075 = vadd.f32 %v6074, %v6068
  %6076 = vadd.xlane.f32.xlu0 %v6075
  %v6077 = vpop.xlane.xlu0 %6076
  %v6078 = vld [vmem:[#allocation2] sm:$0x1]
  %v6079 = vadd.f32 %v6042, %v6077
  %v6081 = vperm.slane %v6078, 0
  %v6083 = vadd.f32 %v6079, %v6081
  %v6084 = vsub.f32 %v6042, %v6077
  %v6085 = vadd.f32 %v6084, %v6081
  %v6086 = vld [vmem:[%s1] sm:$0xff]
  %vm6087 = vcmp.gt.f32.partialorder %v6086, 0.5
  %v6088 = vsub.f32 0.0, %v6085
  %v6089 = vsel %vm6087, %v6088, %v6083
  %vm6090 = vcmask 7168
  %6091 = vst.msk [vmem:[%s7] sm:$0xff] %vm6090, %v6089
  // Predicated region
  $region30: #{nnue_forward.1} parent=0 // pred_check
    _
  $region31: #{nnue_forward.1} parent=0 // pred_check_branch
    %6093 = sbr.rel (0) target = $region33
  $region32: #{nnue_forward.1} parent=0 // pred_region
    _
  $region33: #{nnue_forward.1} parent=0 // pred_fallthru
    _
  // Predicated region
  $region34: #{nnue_forward.1} parent=0 // pred_check
    _
  $region35: #{nnue_forward.1} parent=0 // pred_check_branch
    %6095 = sbr.rel (0) target = $region37
  $region36: #{nnue_forward.1} parent=0 // pred_region
    _
  $region37: #{nnue_forward.1} parent=0 // pred_fallthru
    _

</llo_original>
